<compile_context>
chip_gen: v5e
topology: v5e:2x2
jax: 0.10.0
libtpu: 0.0.40
codegen_flags: <defaults>
</compile_context>

<pallas_src>
import jax
import jax.numpy as jnp
from jax import lax
from jax.experimental import pallas as pl
from jax.experimental.pallas import tpu as pltpu

_EPS = 1e-5


def _fold_bn(gamma, beta, mean, var, eps=_EPS):
    """Fold eval-mode BatchNorm into per-channel scale/bias."""
    scale = gamma / jnp.sqrt(var + eps)
    bias = beta - mean * scale
    return scale.astype(jnp.float32), bias.astype(jnp.float32)


def _rup(v, m):
    return -(-v // m) * m


def _tile_bytes(rows, cols, itemsize):
    """VMEM footprint of a (rows, cols) tile including (8, 128) layout padding."""
    return _rup(max(int(rows), 1), 8) * _rup(max(int(cols), 1), 128) * itemsize


def _vmem_ceiling_bytes():
    cap = 128 << 20                      # v5e / v6e physical VMEM
    try:
        info = pltpu.get_tpu_info()
        cap = int(getattr(info, "vmem_capacity_bytes", cap))
    except Exception:
        pass
    # ~12.5% headroom for compiler-internal scratch / pipeline bookkeeping:
    # ~56 MiB on v7x (64 MiB physical), ~112 MiB on v5e/v6e (128 MiB physical).
    return max(32 << 20, (cap * 7) // 8)


def _pick_row_tile(H, W, Cmid, Cexp, compute_itemsize, budget_bytes):
    """Largest TH (divisor of H; (TH*W)%8==0 unless TH==H) whose per-step
    activation footprint fits the budget."""
    def step_bytes(th):
        rows = th * W
        return (_tile_bytes(rows, 9 * Cmid, compute_itemsize)          # im2col slab
                + _tile_bytes((th + 4) * W, Cmid, compute_itemsize)    # halo-extended h1
                + 3 * _tile_bytes(rows, Cmid, 4)                       # f32 h1/h2 temps
                + 4 * _tile_bytes(rows, Cexp, 4))                      # y + out tile bufs
    cands = [th for th in range(H, 0, -1)
             if H % th == 0 and (th == H or (th * W) % 8 == 0)]
    for th in cands:
        if step_bytes(th) <= budget_bytes:
            return th
    return cands[-1]


# ---------------------------------------------------------------------------
# Fused kernel: conv1+bn1+relu -> conv2(3x3)+bn2+relu -> conv3+bn3+res+relu
# ---------------------------------------------------------------------------
def _make_bottleneck_kernel(H, W, TH, Cmid, n_row_tiles, compute_dtype):
    HWT = TH * W

    def kernel(x_ref, w1_ref, b1_ref, w2_ref, b2_ref, w3_ref, b3_ref, o_ref):
        h_idx = pl.program_id(1)
        r0 = h_idx * TH

        w1 = w1_ref[...]
        b1 = b1_ref[...]

        # ---- conv1 (1x1) + folded BN1 + ReLU on this row tile --------------
        mid_start = pl.multiple_of(h_idx * HWT, 8)
        x_mid = x_ref[pl.ds(mid_start, HWT), :]                  # (TH*W, Cin)
        h1_mid = jnp.maximum(
            jnp.dot(x_mid, w1, preferred_element_type=jnp.float32) + b1, 0.0)

        # ---- conv1 recomputed on the two 1-row halos (zeroed at edges) -----
        top_row = jnp.maximum(r0 - 1, 0)
        x_top = x_ref[pl.ds(top_row * W, W), :]                  # (W, Cin)
        h1_top = jnp.maximum(
            jnp.dot(x_top, w1, preferred_element_type=jnp.float32) + b1, 0.0)
        h1_top = h1_top * (h_idx > 0).astype(jnp.float32)

        bot_row = jnp.minimum(r0 + TH, H - 1)
        x_bot = x_ref[pl.ds(bot_row * W, W), :]
        h1_bot = jnp.maximum(
            jnp.dot(x_bot, w1, preferred_element_type=jnp.float32) + b1, 0.0)
        h1_bot = h1_bot * (h_idx < n_row_tiles - 1).astype(jnp.float32)

        # ---- conv2 (3x3, pad=1, stride=1) as ONE concatenated-K MXU dot ----
        # Flat halo-extended slab; the nine taps are contiguous sublane-offset
        # slices (no 3-D halo scratch, no per-tap reshape relayouts).  A single
        # (TH*W, 9*Cmid) x (9*Cmid, Cmid) dot replaces nine K=N=Cmid dots.
        zrow = jnp.zeros((W, Cmid), compute_dtype)
        ext = jnp.concatenate(
            [zrow,
             h1_top.astype(compute_dtype),
             h1_mid.astype(compute_dtype),
             h1_bot.astype(compute_dtype),
             zrow], axis=0)                                      # ((TH+4)*W, Cmid)

        col = lax.broadcasted_iota(jnp.int32, (HWT, 1), 0) % W
        not_left = (col >= 1).astype(compute_dtype)              # tap kw=0 validity
        not_right = (col <= W - 2).astype(compute_dtype)         # tap kw=2 validity

        wins = []
        for kh in range(3):
            for kw in range(3):
                off = W + kh * W + (kw - 1)                      # >= W-1 >= 0
                win = ext[off:off + HWT, :]
                if kw == 0:
                    win = win * not_left
                elif kw == 2:
                    win = win * not_right
                wins.append(win)
        im2col = jnp.concatenate(wins, axis=1)                   # (TH*W, 9*Cmid)
        h2 = jnp.maximum(
            jnp.dot(im2col, w2_ref[...], preferred_element_type=jnp.float32)
            + b2_ref[...], 0.0)

        # ---- conv3 (1x1) + folded BN3 + residual + ReLU ---------------------
        y = jnp.dot(h2.astype(compute_dtype), w3_ref[...],
                    preferred_element_type=jnp.float32)
        y = y + b3_ref[...] + x_mid.astype(jnp.float32)          # Cin == Cexp
        o_ref[...] = jnp.maximum(y, 0.0).astype(o_ref.dtype)

    return kernel


# ---------------------------------------------------------------------------
# Bottleneck forward (wrapper)
# ---------------------------------------------------------------------------
def bottleneck_forward(x_nchw, params, stride=1,
                       compute_dtype=jnp.bfloat16, row_tile=None):
    if stride != 1:
        # TODO(synk): general stride needs a strided conv2 + downsample branch.
        raise NotImplementedError("downsample=None requires stride == 1")

    # Module boundary is NCHW (PyTorch); the kernel runs channels-last.
    x = jnp.transpose(x_nchw, (0, 2, 3, 1))                     # NHWC
    N, H, W, Cin = x.shape

    w1, w2, w3 = params["w1"], params["w2"], params["w3"]
    Cmid = w1.shape[1]
    Cexp = w3.shape[1]
    if Cin != Cexp:
        raise ValueError(
            f"identity residual requires in_channels == 4*out_channels "
            f"(got in_channels={Cin}, conv3 out={Cexp})")
    HW = H * W
    cds = jnp.dtype(compute_dtype).itemsize

    # Fold BN scale into the conv weights once (weights stay resident in VMEM);
    # the kernel epilogue only adds the per-channel bias.
    s1, b1 = _fold_bn(*params["bn1"])
    s2, b2 = _fold_bn(*params["bn2"])
    s3, b3 = _fold_bn(*params["bn3"])
    w1s = (w1.astype(jnp.float32) * s1[None, :]).astype(compute_dtype)
    w2s = (w2.astype(jnp.float32) * s2[None, None, None, :]
           ).reshape(9 * Cmid, Cmid).astype(compute_dtype)       # (kh,kw,cin)-major K
    w3s = (w3.astype(jnp.float32) * s3[None, :]).astype(compute_dtype)
    b1 = b1.reshape(1, Cmid)
    b2 = b2.reshape(1, Cmid)
    b3 = b3.reshape(1, Cexp)

    # GEMM operands (including the dominant x read) travel in compute_dtype;
    # accumulation, bias/residual epilogue and the output stay f32.  Note: in
    # bf16 mode the residual is the bf16-rounded x (accepted precision trade).
    x3 = x.reshape(N, HW, Cin).astype(compute_dtype)

    ceiling = _vmem_ceiling_bytes()
    if row_tile is None:
        TH = _pick_row_tile(H, W, Cmid, Cexp, cds, max(8 << 20, ceiling // 6))
    else:
        TH = int(row_tile)
        if H % TH or (TH != H and (TH * W) % 8):
            raise ValueError(
                f"row_tile={TH} must divide H={H} and give a sublane-aligned "
                f"tile (row_tile*W % 8 == 0)")
    nH = H // TH
    HWT = TH * W

    # VMEM estimate including (8,128) layout padding; clamp to the
    # generation-aware ceiling (never below the 32 MiB scoped default).
    est = (2 * _tile_bytes(HW, Cin, cds)                 # x image (resident, 2 bufs)
           + 2 * _tile_bytes(HWT, Cexp, 4)               # f32 output tile (2 bufs)
           + 2 * (_tile_bytes(Cin, Cmid, cds)
                  + _tile_bytes(9 * Cmid, Cmid, cds)
                  + _tile_bytes(Cmid, Cexp, cds))        # weights (2 bufs)
           + 2 * (2 * _tile_bytes(1, Cmid, 4) + _tile_bytes(1, Cexp, 4))
           + _tile_bytes((TH + 4) * W, Cmid, cds)        # halo-extended h1 slab
           + _tile_bytes(HWT, 9 * Cmid, cds)             # im2col slab
           + 3 * _tile_bytes(HWT, Cmid, 4)               # f32 h1/h2 temporaries
           + 2 * _tile_bytes(HWT, Cexp, 4)               # conv3 out + epilogue temp
           + (4 << 20))                                  # compiler slack
    vmem_limit = int(min(max(est, 32 << 20), ceiling))

    kernel = _make_bottleneck_kernel(H, W, TH, Cmid, nH, compute_dtype)

    # TODO(synk): single-buffer the constant weight/bias specs (pipeline_mode)
    # and use deeper x buffering on v5e/v6e; present a lane-dense output block
    # when Cexp < 128 (only matters for toy channel counts).
    out = pl.pallas_call(
        kernel,
        out_shape=jax.ShapeDtypeStruct((N, HW, Cexp), jnp.float32),
        grid=(N, nH),
        in_specs=[
            pl.BlockSpec((None, HW, Cin), lambda n, h: (n, 0, 0)),  # x: per-image, resident over h
            pl.BlockSpec((Cin, Cmid), lambda n, h: (0, 0)),         # w1 * bn1.scale
            pl.BlockSpec((1, Cmid), lambda n, h: (0, 0)),           # bn1 bias
            pl.BlockSpec((9 * Cmid, Cmid), lambda n, h: (0, 0)),    # w2 * bn2.scale (tap-major)
            pl.BlockSpec((1, Cmid), lambda n, h: (0, 0)),           # bn2 bias
            pl.BlockSpec((Cmid, Cexp), lambda n, h: (0, 0)),        # w3 * bn3.scale
            pl.BlockSpec((1, Cexp), lambda n, h: (0, 0)),           # bn3 bias
        ],
        out_specs=pl.BlockSpec((None, HWT, Cexp), lambda n, h: (n, h, 0)),
        compiler_params=pltpu.CompilerParams(
            dimension_semantics=("parallel", "parallel"),
            vmem_limit_bytes=vmem_limit),
    )(x3, w1s, b1, w2s, b2, w3s, b3)

    out = out.reshape(N, H, W, Cexp)
    return jnp.transpose(out, (0, 3, 1, 2))                     # back to NCHW


# ---------------------------------------------------------------------------
# Pure-JAX reference (correctness check only)
# ---------------------------------------------------------------------------
def reference_forward(x_nchw, params):
    x = x_nchw.astype(jnp.float32)

    def bn(y, p):
        g, b, m, v = [t[None, :, None, None] for t in p]
        return (y - m) / jnp.sqrt(v + _EPS) * g + b

    dn = ("NCHW", "OIHW", "NCHW")
    w1 = jnp.transpose(params["w1"])[:, :, None, None]
    w2 = jnp.transpose(params["w2"], (3, 2, 0, 1))
    w3 = jnp.transpose(params["w3"])[:, :, None, None]

    out = lax.conv_general_dilated(x, w1, (1, 1), "VALID", dimension_numbers=dn)
    out = jax.nn.relu(bn(out, params["bn1"]))
    out = lax.conv_general_dilated(out, w2, (1, 1), ((1, 1), (1, 1)),
                                   dimension_numbers=dn)
    out = jax.nn.relu(bn(out, params["bn2"]))
    out = lax.conv_general_dilated(out, w3, (1, 1), "VALID", dimension_numbers=dn)
    out = bn(out, params["bn3"]) + x
    return jax.nn.relu(out)


# ---------------------------------------------------------------------------
if __name__ == "__main__":
    key = jax.random.PRNGKey(0)
    keys = jax.random.split(key, 8)

    in_channels, out_channels = 16, 4    # expansion 4 -> conv3 out = 16 = in_channels
    N, H, W = 2, 16, 16
    Cmid, Cexp = out_channels, out_channels * 4

    x = jax.random.normal(keys[0], (N, in_channels, H, W), jnp.float32)

    def make_bn(k, c):
        ka, kb, kc, kd = jax.random.split(k, 4)
        gamma = jax.random.uniform(ka, (c,), jnp.float32, 0.5, 1.5)
        beta = 0.1 * jax.random.normal(kb, (c,), jnp.float32)
        mean = 0.1 * jax.random.normal(kc, (c,), jnp.float32)
        var = jax.random.uniform(kd, (c,), jnp.float32, 0.5, 1.5)
        return (gamma, beta, mean, var)

    params = {
        "w1": 0.1 * jax.random.normal(keys[1], (in_channels, Cmid), jnp.float32),
        "w2": 0.1 * jax.random.normal(keys[2], (3, 3, Cmid, Cmid), jnp.float32),
        "w3": 0.1 * jax.random.normal(keys[3], (Cmid, Cexp), jnp.float32),
        "bn1": make_bn(keys[4], Cmid),
        "bn2": make_bn(keys[5], Cmid),
        "bn3": make_bn(keys[6], Cexp),
    }

    ref = jax.block_until_ready(reference_forward(x, params))

    # f32 GEMM operands, auto row tile (whole image per step): exact check.
    out = jax.block_until_ready(
        bottleneck_forward(x, params, compute_dtype=jnp.float32))
    assert out.shape == (N, Cexp, H, W), out.shape
    assert jnp.allclose(out, ref, atol=1e-4, rtol=1e-4), float(
        jnp.max(jnp.abs(out - ref)))

    # f32 with forced row tiling (4 row tiles) to exercise the halo path.
    out_rt = jax.block_until_ready(
        bottleneck_forward(x, params, compute_dtype=jnp.float32, row_tile=4))
    assert jnp.allclose(out_rt, ref, atol=1e-4, rtol=1e-4), float(
        jnp.max(jnp.abs(out_rt - ref)))

    # Default bf16 GEMM operands (f32 accumulation / epilogue): loose tolerance.
    out_bf16 = jax.block_until_ready(bottleneck_forward(x, params))
    assert jnp.allclose(out_bf16, ref, atol=1e-1, rtol=1e-1), float(
        jnp.max(jnp.abs(out_bf16 - ref)))

    print("KERNEL_OK")
</pallas_src>

<mosaic_0001>
module attributes {stable_mosaic.version = 11 : i64} {
  func.func @kernel(%arg0: i32, %arg1: i32, %arg2: memref<1x256x16xf32, #tpu.memory_space<vmem>>, %arg3: memref<16x4xf32, #tpu.memory_space<vmem>>, %arg4: memref<1x4xf32, #tpu.memory_space<vmem>>, %arg5: memref<36x4xf32, #tpu.memory_space<vmem>>, %arg6: memref<1x4xf32, #tpu.memory_space<vmem>>, %arg7: memref<4x16xf32, #tpu.memory_space<vmem>>, %arg8: memref<1x16xf32, #tpu.memory_space<vmem>>, %arg9: memref<1x256x16xf32, #tpu.memory_space<vmem>>) attributes {dimension_semantics = [#tpu.dimension_semantics<parallel>, #tpu.dimension_semantics<parallel>], iteration_bounds = array<i64: 2, 1>, scalar_prefetch = 0 : i64, scratch_operands = 0 : i64, tpu.core_type = #tpu.core_type<tc>, window_params = [{transform_indices = @transform_0, window_bounds = array<i64: 1, 256, 16>}, {pipeline_mode = #tpu.pipeline_mode<synchronous>, transform_indices = @transform_1, window_bounds = array<i64: 16, 4>}, {pipeline_mode = #tpu.pipeline_mode<synchronous>, transform_indices = @transform_2, window_bounds = array<i64: 1, 4>}, {pipeline_mode = #tpu.pipeline_mode<synchronous>, transform_indices = @transform_3, window_bounds = array<i64: 36, 4>}, {pipeline_mode = #tpu.pipeline_mode<synchronous>, transform_indices = @transform_4, window_bounds = array<i64: 1, 4>}, {pipeline_mode = #tpu.pipeline_mode<synchronous>, transform_indices = @transform_5, window_bounds = array<i64: 4, 16>}, {pipeline_mode = #tpu.pipeline_mode<synchronous>, transform_indices = @transform_6, window_bounds = array<i64: 1, 16>}, {transform_indices = @transform_7, window_bounds = array<i64: 1, 256, 16>}]} {
    %c16_i32 = arith.constant 16 : i32
    %0 = arith.muli %arg1, %c16_i32 : i32
    %c0 = arith.constant 0 : index
    %c0_0 = arith.constant 0 : index
    %1 = vector.load %arg3[%c0, %c0_0] : memref<16x4xf32, #tpu.memory_space<vmem>>, vector<16x4xf32>
    %c0_1 = arith.constant 0 : index
    %c0_2 = arith.constant 0 : index
    %2 = vector.load %arg4[%c0_1, %c0_2] : memref<1x4xf32, #tpu.memory_space<vmem>>, vector<1x4xf32>
    %c256_i32 = arith.constant 256 : i32
    %3 = arith.muli %arg1, %c256_i32 : i32
    %4 = tpu.assume_multiple %3, 8 : i32
    %c0_3 = arith.constant 0 : index
    %5 = arith.index_cast %4 : i32 to index
    %c0_4 = arith.constant 0 : index
    %6 = vector.load %arg2[%c0_3, %5, %c0_4] : memref<1x256x16xf32, #tpu.memory_space<vmem>>, vector<1x256x16xf32>
    %7 = vector.shape_cast %6 : vector<1x256x16xf32> to vector<256x16xf32>
    %cst = arith.constant dense<0.000000e+00> : vector<256x4xf32>
    %8 = tpu.matmul %7, %1, %cst {dimension_numbers = #tpu.dot_dimension_numbers<[1], [0], [0], [1], [0, 0, 1, 1], [], []>} : vector<256x16xf32>, vector<16x4xf32>, vector<256x4xf32> -> vector<256x4xf32>
    %9 = vector.broadcast %2 : vector<1x4xf32> to vector<256x4xf32>
    %10 = arith.addf %8, %9 : vector<256x4xf32>
    %cst_5 = arith.constant 0.000000e+00 : f32
    %11 = vector.broadcast %cst_5 : f32 to vector<256x4xf32>
    %12 = arith.maximumf %10, %11 : vector<256x4xf32>
    %c1_i32 = arith.constant 1 : i32
    %13 = arith.subi %0, %c1_i32 : i32
    %c0_i32 = arith.constant 0 : i32
    %14 = arith.maxsi %13, %c0_i32 : i32
    %c16_i32_6 = arith.constant 16 : i32
    %15 = arith.muli %14, %c16_i32_6 : i32
    %c0_7 = arith.constant 0 : index
    %16 = arith.index_cast %15 : i32 to index
    %c0_8 = arith.constant 0 : index
    %17 = vector.load %arg2[%c0_7, %16, %c0_8] : memref<1x256x16xf32, #tpu.memory_space<vmem>>, vector<1x16x16xf32>
    %18 = vector.shape_cast %17 : vector<1x16x16xf32> to vector<16x16xf32>
    %cst_9 = arith.constant dense<0.000000e+00> : vector<16x4xf32>
    %19 = tpu.matmul %18, %1, %cst_9 {dimension_numbers = #tpu.dot_dimension_numbers<[1], [0], [0], [1], [0, 0, 1, 1], [], []>} : vector<16x16xf32>, vector<16x4xf32>, vector<16x4xf32> -> vector<16x4xf32>
    %20 = vector.broadcast %2 : vector<1x4xf32> to vector<16x4xf32>
    %21 = arith.addf %19, %20 : vector<16x4xf32>
    %cst_10 = arith.constant 0.000000e+00 : f32
    %22 = vector.broadcast %cst_10 : f32 to vector<16x4xf32>
    %23 = arith.maximumf %21, %22 : vector<16x4xf32>
    %c0_i32_11 = arith.constant 0 : i32
    %24 = arith.cmpi sgt, %arg1, %c0_i32_11 : i32
    %25 = arith.extui %24 : i1 to i32
    %26 = arith.sitofp %25 : i32 to f32
    %27 = vector.broadcast %26 : f32 to vector<16x4xf32>
    %28 = arith.mulf %23, %27 : vector<16x4xf32>
    %c16_i32_12 = arith.constant 16 : i32
    %29 = arith.addi %0, %c16_i32_12 : i32
    %c15_i32 = arith.constant 15 : i32
    %30 = arith.minsi %29, %c15_i32 : i32
    %c16_i32_13 = arith.constant 16 : i32
    %31 = arith.muli %30, %c16_i32_13 : i32
    %c0_14 = arith.constant 0 : index
    %32 = arith.index_cast %31 : i32 to index
    %c0_15 = arith.constant 0 : index
    %33 = vector.load %arg2[%c0_14, %32, %c0_15] : memref<1x256x16xf32, #tpu.memory_space<vmem>>, vector<1x16x16xf32>
    %34 = vector.shape_cast %33 : vector<1x16x16xf32> to vector<16x16xf32>
    %cst_16 = arith.constant dense<0.000000e+00> : vector<16x4xf32>
    %35 = tpu.matmul %34, %1, %cst_16 {dimension_numbers = #tpu.dot_dimension_numbers<[1], [0], [0], [1], [0, 0, 1, 1], [], []>} : vector<16x16xf32>, vector<16x4xf32>, vector<16x4xf32> -> vector<16x4xf32>
    %36 = vector.broadcast %2 : vector<1x4xf32> to vector<16x4xf32>
    %37 = arith.addf %35, %36 : vector<16x4xf32>
    %cst_17 = arith.constant 0.000000e+00 : f32
    %38 = vector.broadcast %cst_17 : f32 to vector<16x4xf32>
    %39 = arith.maximumf %37, %38 : vector<16x4xf32>
    %c0_i32_18 = arith.constant 0 : i32
    %40 = arith.cmpi slt, %arg1, %c0_i32_18 : i32
    %41 = arith.extui %40 : i1 to i32
    %42 = arith.sitofp %41 : i32 to f32
    %43 = vector.broadcast %42 : f32 to vector<16x4xf32>
    %44 = arith.mulf %39, %43 : vector<16x4xf32>
    %cst_19 = arith.constant 0.000000e+00 : f32
    %45 = vector.broadcast %cst_19 : f32 to vector<16x4xf32>
    %46 = tpu.concatenate %45, %28, %12, %44, %45 in 0 : vector<16x4xf32>, vector<16x4xf32>, vector<256x4xf32>, vector<16x4xf32>, vector<16x4xf32> -> vector<320x4xf32>
    %47 = tpu.iota {dimensions = array<i32: 0>} : vector<256x1xi32>
    %c16_i32_20 = arith.constant 16 : i32
    %c0_i32_21 = arith.constant 0 : i32
    %48 = arith.cmpi eq, %c16_i32_20, %c0_i32_21 : i32
    %c1_i32_22 = arith.constant 1 : i32
    %49 = arith.select %48, %c1_i32_22, %c16_i32_20 : i32
    %50 = vector.broadcast %49 : i32 to vector<256x1xi32>
    %51 = arith.remsi %47, %50 : vector<256x1xi32>
    %c0_i32_23 = arith.constant 0 : i32
    %52 = vector.broadcast %c0_i32_23 : i32 to vector<256x1xi32>
    %53 = arith.cmpi ne, %51, %52 : vector<256x1xi32>
    %c0_i32_24 = arith.constant 0 : i32
    %54 = vector.broadcast %c0_i32_24 : i32 to vector<256x1xi32>
    %55 = arith.cmpi slt, %51, %54 : vector<256x1xi32>
    %c0_i32_25 = arith.constant 0 : i32
    %56 = arith.cmpi slt, %49, %c0_i32_25 : i32
    %57 = vector.broadcast %56 : i1 to vector<256x1xi1>
    %58 = vector.broadcast %57 : vector<256x1xi1> to vector<256x1xi1>
    %59 = arith.xori %55, %58 : vector<256x1xi1>
    %60 = arith.andi %59, %53 : vector<256x1xi1>
    %61 = vector.broadcast %49 : i32 to vector<256x1xi32>
    %62 = arith.addi %51, %61 : vector<256x1xi32>
    %63 = arith.select %60, %62, %51 : vector<256x1xi1>, vector<256x1xi32>
    %c1_i32_26 = arith.constant 1 : i32
    %64 = vector.broadcast %c1_i32_26 : i32 to vector<256x1xi32>
    %65 = arith.cmpi sge, %63, %64 : vector<256x1xi32>
    %66 = arith.extui %65 : vector<256x1xi1> to vector<256x1xi32>
    %67 = arith.sitofp %66 : vector<256x1xi32> to vector<256x1xf32>
    %c14_i32 = arith.constant 14 : i32
    %68 = vector.broadcast %c14_i32 : i32 to vector<256x1xi32>
    %69 = arith.cmpi sle, %63, %68 : vector<256x1xi32>
    %70 = arith.extui %69 : vector<256x1xi1> to vector<256x1xi32>
    %71 = arith.sitofp %70 : vector<256x1xi32> to vector<256x1xf32>
    %72 = vector.extract_strided_slice %46 {offsets = [15, 0], sizes = [256, 4], strides = [1, 1]} : vector<320x4xf32> to vector<256x4xf32>
    %73 = vector.broadcast %67 : vector<256x1xf32> to vector<256x4xf32>
    %74 = arith.mulf %72, %73 : vector<256x4xf32>
    %75 = vector.extract_strided_slice %46 {offsets = [16, 0], sizes = [256, 4], strides = [1, 1]} : vector<320x4xf32> to vector<256x4xf32>
    %76 = vector.extract_strided_slice %46 {offsets = [17, 0], sizes = [256, 4], strides = [1, 1]} : vector<320x4xf32> to vector<256x4xf32>
    %77 = vector.broadcast %71 : vector<256x1xf32> to vector<256x4xf32>
    %78 = arith.mulf %76, %77 : vector<256x4xf32>
    %79 = vector.extract_strided_slice %46 {offsets = [31, 0], sizes = [256, 4], strides = [1, 1]} : vector<320x4xf32> to vector<256x4xf32>
    %80 = vector.broadcast %67 : vector<256x1xf32> to vector<256x4xf32>
    %81 = arith.mulf %79, %80 : vector<256x4xf32>
    %82 = vector.extract_strided_slice %46 {offsets = [32, 0], sizes = [256, 4], strides = [1, 1]} : vector<320x4xf32> to vector<256x4xf32>
    %83 = vector.extract_strided_slice %46 {offsets = [33, 0], sizes = [256, 4], strides = [1, 1]} : vector<320x4xf32> to vector<256x4xf32>
    %84 = vector.broadcast %71 : vector<256x1xf32> to vector<256x4xf32>
    %85 = arith.mulf %83, %84 : vector<256x4xf32>
    %86 = vector.extract_strided_slice %46 {offsets = [47, 0], sizes = [256, 4], strides = [1, 1]} : vector<320x4xf32> to vector<256x4xf32>
    %87 = vector.broadcast %67 : vector<256x1xf32> to vector<256x4xf32>
    %88 = arith.mulf %86, %87 : vector<256x4xf32>
    %89 = vector.extract_strided_slice %46 {offsets = [48, 0], sizes = [256, 4], strides = [1, 1]} : vector<320x4xf32> to vector<256x4xf32>
    %90 = vector.extract_strided_slice %46 {offsets = [49, 0], sizes = [256, 4], strides = [1, 1]} : vector<320x4xf32> to vector<256x4xf32>
    %91 = vector.broadcast %71 : vector<256x1xf32> to vector<256x4xf32>
    %92 = arith.mulf %90, %91 : vector<256x4xf32>
    %93 = tpu.concatenate %74, %75, %78, %81, %82, %85, %88, %89, %92 in 1 : vector<256x4xf32>, vector<256x4xf32>, vector<256x4xf32>, vector<256x4xf32>, vector<256x4xf32>, vector<256x4xf32>, vector<256x4xf32>, vector<256x4xf32>, vector<256x4xf32> -> vector<256x36xf32>
    %c0_27 = arith.constant 0 : index
    %c0_28 = arith.constant 0 : index
    %94 = vector.load %arg5[%c0_27, %c0_28] : memref<36x4xf32, #tpu.memory_space<vmem>>, vector<36x4xf32>
    %cst_29 = arith.constant dense<0.000000e+00> : vector<256x4xf32>
    %95 = tpu.matmul %93, %94, %cst_29 {dimension_numbers = #tpu.dot_dimension_numbers<[1], [0], [0], [1], [0, 0, 1, 1], [], []>} : vector<256x36xf32>, vector<36x4xf32>, vector<256x4xf32> -> vector<256x4xf32>
    %c0_30 = arith.constant 0 : index
    %c0_31 = arith.constant 0 : index
    %96 = vector.load %arg6[%c0_30, %c0_31] : memref<1x4xf32, #tpu.memory_space<vmem>>, vector<1x4xf32>
    %97 = vector.broadcast %96 : vector<1x4xf32> to vector<256x4xf32>
    %98 = arith.addf %95, %97 : vector<256x4xf32>
    %cst_32 = arith.constant 0.000000e+00 : f32
    %99 = vector.broadcast %cst_32 : f32 to vector<256x4xf32>
    %100 = arith.maximumf %98, %99 : vector<256x4xf32>
    %c0_33 = arith.constant 0 : index
    %c0_34 = arith.constant 0 : index
    %101 = vector.load %arg7[%c0_33, %c0_34] : memref<4x16xf32, #tpu.memory_space<vmem>>, vector<4x16xf32>
    %cst_35 = arith.constant dense<0.000000e+00> : vector<256x16xf32>
    %102 = tpu.matmul %100, %101, %cst_35 {dimension_numbers = #tpu.dot_dimension_numbers<[1], [0], [0], [1], [0, 0, 1, 1], [], []>} : vector<256x4xf32>, vector<4x16xf32>, vector<256x16xf32> -> vector<256x16xf32>
    %c0_36 = arith.constant 0 : index
    %c0_37 = arith.constant 0 : index
    %103 = vector.load %arg8[%c0_36, %c0_37] : memref<1x16xf32, #tpu.memory_space<vmem>>, vector<1x16xf32>
    %104 = vector.broadcast %103 : vector<1x16xf32> to vector<256x16xf32>
    %105 = arith.addf %102, %104 : vector<256x16xf32>
    %106 = arith.addf %105, %7 : vector<256x16xf32>
    %cst_38 = arith.constant 0.000000e+00 : f32
    %107 = vector.broadcast %cst_38 : f32 to vector<256x16xf32>
    %108 = arith.maximumf %106, %107 : vector<256x16xf32>
    %c0_39 = arith.constant 0 : index
    %c0_40 = arith.constant 0 : index
    %c0_41 = arith.constant 0 : index
    %109 = vector.load %arg9[%c0_39, %c0_40, %c0_41] : memref<1x256x16xf32, #tpu.memory_space<vmem>>, vector<1x256x16xf32>
    %110 = vector.shape_cast %109 : vector<1x256x16xf32> to vector<256x16xf32>
    %111 = vector.shape_cast %108 : vector<256x16xf32> to vector<1x256x16xf32>
    tpu.vector_store %arg9[%c0_39, %c0_40, %c0_41], %111 {strides = array<i32>} : memref<1x256x16xf32, #tpu.memory_space<vmem>>, vector<1x256x16xf32>,
    return
  }
  func.func @transform_0(%arg0: i32, %arg1: i32) -> (i32, i32, i32) {
    %c0_i32 = arith.constant 0 : i32
    %c0_i32_0 = arith.constant 0 : i32
    %c0_i32_1 = arith.constant 0 : i32
    return %arg0, %c0_i32, %c0_i32_0 : i32, i32, i32
  }
  func.func @transform_1(%arg0: i32, %arg1: i32) -> (i32, i32) {
    %c0_i32 = arith.constant 0 : i32
    %c0_i32_0 = arith.constant 0 : i32
    %c0_i32_1 = arith.constant 0 : i32
    return %c0_i32, %c0_i32_0 : i32, i32
  }
  func.func @transform_2(%arg0: i32, %arg1: i32) -> (i32, i32) {
    %c0_i32 = arith.constant 0 : i32
    %c0_i32_0 = arith.constant 0 : i32
    %c0_i32_1 = arith.constant 0 : i32
    return %c0_i32, %c0_i32_0 : i32, i32
  }
  func.func @transform_3(%arg0: i32, %arg1: i32) -> (i32, i32) {
    %c0_i32 = arith.constant 0 : i32
    %c0_i32_0 = arith.constant 0 : i32
    %c0_i32_1 = arith.constant 0 : i32
    return %c0_i32, %c0_i32_0 : i32, i32
  }
  func.func @transform_4(%arg0: i32, %arg1: i32) -> (i32, i32) {
    %c0_i32 = arith.constant 0 : i32
    %c0_i32_0 = arith.constant 0 : i32
    %c0_i32_1 = arith.constant 0 : i32
    return %c0_i32, %c0_i32_0 : i32, i32
  }
  func.func @transform_5(%arg0: i32, %arg1: i32) -> (i32, i32) {
    %c0_i32 = arith.constant 0 : i32
    %c0_i32_0 = arith.constant 0 : i32
    %c0_i32_1 = arith.constant 0 : i32
    return %c0_i32, %c0_i32_0 : i32, i32
  }
  func.func @transform_6(%arg0: i32, %arg1: i32) -> (i32, i32) {
    %c0_i32 = arith.constant 0 : i32
    %c0_i32_0 = arith.constant 0 : i32
    %c0_i32_1 = arith.constant 0 : i32
    return %c0_i32, %c0_i32_0 : i32, i32
  }
  func.func @transform_7(%arg0: i32, %arg1: i32) -> (i32, i32, i32) {
    %c0_i32 = arith.constant 0 : i32
    %c0_i32_0 = arith.constant 0 : i32
    return %arg0, %arg1, %c0_i32 : i32, i32, i32
  }
}

</mosaic_0001>

<llo_original>
// kernel: tpu_custom_call.1
$region0: #{tpu_custom_call.1}
  #allocation0 [shape = 'u32[]', space=smem, size = 0x4, offset = 0x4, fixed_abs, tag = 'smem constant byte address 0x4 - core index']
  #allocation1 [shape = 'u32[72,128]{1,0:T(1,128)}', space=vmem, size = 0x9000, scoped, tag = 'internal scratch']
  %s0 = inlined_call_operand.vmem [shape: f32[2,256,16], index: 0, kind: input, shape index: {}]
  %s1 = inlined_call_operand.vmem [shape: f32[16,4], index: 1, kind: input, shape index: {}]
  %s2 = inlined_call_operand.vmem [shape: f32[1,4], index: 2, kind: input, shape index: {}]
  %s3 = inlined_call_operand.vmem [shape: f32[36,4], index: 3, kind: input, shape index: {}]
  %s4 = inlined_call_operand.vmem [shape: f32[1,4], index: 4, kind: input, shape index: {}]
  %s5 = inlined_call_operand.vmem [shape: f32[4,16], index: 5, kind: input, shape index: {}]
  %s6 = inlined_call_operand.vmem [shape: f32[1,16], index: 6, kind: input, shape index: {}]
  %s7 = inlined_call_operand.vmem [shape: f32[2,256,16], index: 7, kind: output, shape index: {}]
  %s8 = sld [smem:[#allocation0]]
  $region61: #{tpu_custom_call.1} parent=0
    _
  %s10 = ssub.s32 1, %s8
  %s11 = scalar_select 0, %s10, %s8
  loop: start=0, step=1, limit=4
  $region2: #{tpu_custom_call.1} parent=0 // loop_pre_header
    _
  $region3: #{tpu_custom_call.1} parent=0 // loop_header
    %s13 = sphi 0, %s17
    %p14 = scmp.ge.s32.totalorder %s13, 4
    %s20 = sphi 0, %s32
    %s21 = sphi 0, %s28
    %s22 = sphi 0, %s20
    %s23 = sphi 0, %s21
    %s24 = sphi 0, %s22
    %s25 = sphi 0, %s23
    %s35 = sphi 0, %s37
    %s38 = sphi 0, %s35
    %s39 = sphi 0, %s38
    %s55 = sphi 0, %s39
    %s59 = sphi 0, %s59
    %s61 = sphi 0, %s59
    %s62 = sphi 0, %s61
    %s76 = sphi 0, %s62
    %s80 = sphi 0, %s80
    %s82 = sphi 0, %s80
    %s83 = sphi 0, %s82
    %s97 = sphi 0, %s83
    %s101 = sphi 0, %s101
    %s103 = sphi 0, %s101
    %s104 = sphi 0, %s103
    %s118 = sphi 0, %s104
    %s122 = sphi 0, %s122
    %s124 = sphi 0, %s122
    %s125 = sphi 0, %s124
    %s139 = sphi 0, %s125
    %s143 = sphi 0, %s143
    %s145 = sphi 0, %s143
    %s146 = sphi 0, %s145
    %s160 = sphi 0, %s146
    %s164 = sphi 0, %s164
    %s166 = sphi 0, %s164
    %s167 = sphi 0, %s166
    %s181 = sphi 0, %s167
    %s189 = sphi 0, %s191
    %s192 = sphi 0, %s189
    %s193 = sphi 0, %s192
    %s209 = sphi 0, %s193
  $region4: #{tpu_custom_call.1} parent=0 // loop_header_branch
    %16 = sbr.rel (%p14) target = $region8
  $region5: #{tpu_custom_call.1} parent=0 // loop_body
    %s18 = ssub.s32 %s13, 1
    %s19 = ssub.s32 %s13, 2
    %s26 = sadd.s32 1, %s21
    %p27 = scmp.ge.s32.totalorder %s26, 1
    %s28 = scalar_select %p27, 0, %s26
    %s29 = sadd.s32 1, %s20
    %s30 = scalar_select %p27, %s29, %s20
    %p31 = scmp.ge.s32.totalorder %s30, 2
    %s32 = scalar_select %p31, 0, %s30
    %s33 = ssub.s32 %s20, %s32
    %p34 = scmp.eq.s32.totalorder %s33, 0
    %s36 = sadd.s32 %s35, 1
    %s37 = scalar_select %p34, %s35, %s36
    %p40 = pneg %p34
    %p41 = scmp.eq.s32.totalorder %s13, 1
    %p42 = por %p40, %p41
    %p43 = scmp.ne.s32.totalorder %s35, %s38
    %p44 = scmp.eq.s32.totalorder %s13, 0
    %p45 = por %p43, %p44
    %p46 = scmp.ne.s32.totalorder %s35, %s38
    %p47 = scmp.eq.s32.totalorder %s18, 1
    %p48 = por %p46, %p47
    %p49 = scmp.ne.s32.totalorder %s38, %s39
    %p50 = scmp.eq.s32.totalorder %s18, 0
    %p51 = por %p49, %p50
    %p52 = scmp.ne.s32.totalorder %s38, %s39
    %p53 = scmp.eq.s32.totalorder %s19, 1
    %p54 = por %p52, %p53
    %p56 = scmp.ne.s32.totalorder %s39, %s55
    %p57 = scmp.eq.s32.totalorder %s19, 0
    %p58 = por %p56, %p57
    %s60 = sadd.s32 %s59, 1
    %p63 = scmp.eq.s32.totalorder %s13, 1
    %p64 = scmp.ne.s32.totalorder %s59, %s61
    %p65 = scmp.eq.s32.totalorder %s13, 0
    %p66 = por %p64, %p65
    %p67 = scmp.ne.s32.totalorder %s59, %s61
    %p68 = scmp.eq.s32.totalorder %s18, 1
    %p69 = por %p67, %p68
    %p70 = scmp.ne.s32.totalorder %s61, %s62
    %p71 = scmp.eq.s32.totalorder %s18, 0
    %p72 = por %p70, %p71
    %p73 = scmp.ne.s32.totalorder %s61, %s62
    %p74 = scmp.eq.s32.totalorder %s19, 1
    %p75 = por %p73, %p74
    %p77 = scmp.ne.s32.totalorder %s62, %s76
    %p78 = scmp.eq.s32.totalorder %s19, 0
    %p79 = por %p77, %p78
    %s81 = sadd.s32 %s80, 1
    %p84 = scmp.eq.s32.totalorder %s13, 1
    %p85 = scmp.ne.s32.totalorder %s80, %s82
    %p86 = scmp.eq.s32.totalorder %s13, 0
    %p87 = por %p85, %p86
    %p88 = scmp.ne.s32.totalorder %s80, %s82
    %p89 = scmp.eq.s32.totalorder %s18, 1
    %p90 = por %p88, %p89
    %p91 = scmp.ne.s32.totalorder %s82, %s83
    %p92 = scmp.eq.s32.totalorder %s18, 0
    %p93 = por %p91, %p92
    %p94 = scmp.ne.s32.totalorder %s82, %s83
    %p95 = scmp.eq.s32.totalorder %s19, 1
    %p96 = por %p94, %p95
    %p98 = scmp.ne.s32.totalorder %s83, %s97
    %p99 = scmp.eq.s32.totalorder %s19, 0
    %p100 = por %p98, %p99
    %s102 = sadd.s32 %s101, 1
    %p105 = scmp.eq.s32.totalorder %s13, 1
    %p106 = scmp.ne.s32.totalorder %s101, %s103
    %p107 = scmp.eq.s32.totalorder %s13, 0
    %p108 = por %p106, %p107
    %p109 = scmp.ne.s32.totalorder %s101, %s103
    %p110 = scmp.eq.s32.totalorder %s18, 1
    %p111 = por %p109, %p110
    %p112 = scmp.ne.s32.totalorder %s103, %s104
    %p113 = scmp.eq.s32.totalorder %s18, 0
    %p114 = por %p112, %p113
    %p115 = scmp.ne.s32.totalorder %s103, %s104
    %p116 = scmp.eq.s32.totalorder %s19, 1
    %p117 = por %p115, %p116
    %p119 = scmp.ne.s32.totalorder %s104, %s118
    %p120 = scmp.eq.s32.totalorder %s19, 0
    %p121 = por %p119, %p120
    %s123 = sadd.s32 %s122, 1
    %p126 = scmp.eq.s32.totalorder %s13, 1
    %p127 = scmp.ne.s32.totalorder %s122, %s124
    %p128 = scmp.eq.s32.totalorder %s13, 0
    %p129 = por %p127, %p128
    %p130 = scmp.ne.s32.totalorder %s122, %s124
    %p131 = scmp.eq.s32.totalorder %s18, 1
    %p132 = por %p130, %p131
    %p133 = scmp.ne.s32.totalorder %s124, %s125
    %p134 = scmp.eq.s32.totalorder %s18, 0
    %p135 = por %p133, %p134
    %p136 = scmp.ne.s32.totalorder %s124, %s125
    %p137 = scmp.eq.s32.totalorder %s19, 1
    %p138 = por %p136, %p137
    %p140 = scmp.ne.s32.totalorder %s125, %s139
    %p141 = scmp.eq.s32.totalorder %s19, 0
    %p142 = por %p140, %p141
    %s144 = sadd.s32 %s143, 1
    %p147 = scmp.eq.s32.totalorder %s13, 1
    %p148 = scmp.ne.s32.totalorder %s143, %s145
    %p149 = scmp.eq.s32.totalorder %s13, 0
    %p150 = por %p148, %p149
    %p151 = scmp.ne.s32.totalorder %s143, %s145
    %p152 = scmp.eq.s32.totalorder %s18, 1
    %p153 = por %p151, %p152
    %p154 = scmp.ne.s32.totalorder %s145, %s146
    %p155 = scmp.eq.s32.totalorder %s18, 0
    %p156 = por %p154, %p155
    %p157 = scmp.ne.s32.totalorder %s145, %s146
    %p158 = scmp.eq.s32.totalorder %s19, 1
    %p159 = por %p157, %p158
    %p161 = scmp.ne.s32.totalorder %s146, %s160
    %p162 = scmp.eq.s32.totalorder %s19, 0
    %p163 = por %p161, %p162
    %s165 = sadd.s32 %s164, 1
    %p168 = scmp.eq.s32.totalorder %s13, 1
    %p169 = scmp.ne.s32.totalorder %s164, %s166
    %p170 = scmp.eq.s32.totalorder %s13, 0
    %p171 = por %p169, %p170
    %p172 = scmp.ne.s32.totalorder %s164, %s166
    %p173 = scmp.eq.s32.totalorder %s18, 1
    %p174 = por %p172, %p173
    %p175 = scmp.ne.s32.totalorder %s166, %s167
    %p176 = scmp.eq.s32.totalorder %s18, 0
    %p177 = por %p175, %p176
    %p178 = scmp.ne.s32.totalorder %s166, %s167
    %p179 = scmp.eq.s32.totalorder %s19, 1
    %p180 = por %p178, %p179
    %p182 = scmp.ne.s32.totalorder %s167, %s181
    %p183 = scmp.eq.s32.totalorder %s19, 0
    %p184 = por %p182, %p183
    %s185 = ssub.s32 %s20, %s32
    %s186 = ssub.s32 %s21, %s28
    %s187 = sor.u32 %s185, %s186
    %p188 = scmp.eq.s32.totalorder %s187, 0
    %s190 = sadd.s32 %s189, 1
    %s191 = scalar_select %p188, %s189, %s190
    %p194 = pneg %p188
    %p195 = scmp.eq.s32.totalorder %s13, 1
    %p196 = por %p194, %p195
    %p197 = scmp.ne.s32.totalorder %s189, %s192
    %p198 = scmp.eq.s32.totalorder %s13, 0
    %p199 = por %p197, %p198
    %p200 = scmp.ne.s32.totalorder %s189, %s192
    %p201 = scmp.eq.s32.totalorder %s18, 1
    %p202 = por %p200, %p201
    %p203 = scmp.ne.s32.totalorder %s192, %s193
    %p204 = scmp.eq.s32.totalorder %s18, 0
    %p205 = por %p203, %p204
    %p206 = scmp.ne.s32.totalorder %s192, %s193
    %p207 = scmp.eq.s32.totalorder %s19, 1
    %p208 = por %p206, %p207
    %p210 = scmp.ne.s32.totalorder %s193, %s209
    %p211 = scmp.eq.s32.totalorder %s19, 0
    %p212 = por %p210, %p211
    %p213 = scmp.le.s32.totalorder 1, %s13
    %p214 = scmp.lt.s32.totalorder %s13, 3
    %p215 = pnand %p213, %p214
    %p216 = pneg %p215
    // Predicated region
    $region9: #{tpu_custom_call.1} parent=5 // pred_check
      _
    $region10: #{tpu_custom_call.1} parent=5 // pred_check_branch
      %218 = sbr.rel (%p215) target = $region12
    $region11: #{tpu_custom_call.1} parent=5 // pred_region
      %s219 = ssub.s32 %s13, 1
      // Predicated region
      $region13: #{tpu_custom_call.1} parent=11 // pred_check
        %p220 = pneg %p72
      $region14: #{tpu_custom_call.1} parent=11 // pred_check_branch
        %222 = sbr.rel (%p220) target = $region16
      $region15: #{tpu_custom_call.1} parent=11 // pred_region
        _
      $region16: #{tpu_custom_call.1} parent=11 // pred_fallthru
        _
      // Predicated region
      $region17: #{tpu_custom_call.1} parent=11 // pred_check
        %p223 = pneg %p93
      $region18: #{tpu_custom_call.1} parent=11 // pred_check_branch
        %225 = sbr.rel (%p223) target = $region20
      $region19: #{tpu_custom_call.1} parent=11 // pred_region
        _
      $region20: #{tpu_custom_call.1} parent=11 // pred_fallthru
        _
      // Predicated region
      $region21: #{tpu_custom_call.1} parent=11 // pred_check
        %p226 = pneg %p114
      $region22: #{tpu_custom_call.1} parent=11 // pred_check_branch
        %228 = sbr.rel (%p226) target = $region24
      $region23: #{tpu_custom_call.1} parent=11 // pred_region
        _
      $region24: #{tpu_custom_call.1} parent=11 // pred_fallthru
        _
      // Predicated region
      $region25: #{tpu_custom_call.1} parent=11 // pred_check
        %p229 = pneg %p135
      $region26: #{tpu_custom_call.1} parent=11 // pred_check_branch
        %231 = sbr.rel (%p229) target = $region28
      $region27: #{tpu_custom_call.1} parent=11 // pred_region
        _
      $region28: #{tpu_custom_call.1} parent=11 // pred_fallthru
        _
      // Predicated region
      $region29: #{tpu_custom_call.1} parent=11 // pred_check
        %p232 = pneg %p156
      $region30: #{tpu_custom_call.1} parent=11 // pred_check_branch
        %234 = sbr.rel (%p232) target = $region32
      $region31: #{tpu_custom_call.1} parent=11 // pred_region
        _
      $region32: #{tpu_custom_call.1} parent=11 // pred_fallthru
        _
      // Predicated region
      $region33: #{tpu_custom_call.1} parent=11 // pred_check
        %p235 = pneg %p177
      $region34: #{tpu_custom_call.1} parent=11 // pred_check_branch
        %237 = sbr.rel (%p235) target = $region36
      $region35: #{tpu_custom_call.1} parent=11 // pred_region
        _
      $region36: #{tpu_custom_call.1} parent=11 // pred_fallthru
        _
    $region12: #{tpu_custom_call.1} parent=5 // pred_fallthru
      _
    %p238 = scmp.lt.s32.totalorder %s13, 2
    // Predicated region
    $region37: #{tpu_custom_call.1} parent=5 // pred_check
      %p239 = pneg %p238
    $region38: #{tpu_custom_call.1} parent=5 // pred_check_branch
      %241 = sbr.rel (%p239) target = $region40
    $region39: #{tpu_custom_call.1} parent=5 // pred_region
      // Predicated region
      $region41: #{tpu_custom_call.1} parent=39 // pred_check
        %p242 = pneg %p45
      $region42: #{tpu_custom_call.1} parent=39 // pred_check_branch
        %244 = sbr.rel (%p242) target = $region44
      $region43: #{tpu_custom_call.1} parent=39 // pred_region
        %p245 = scmp.lt.s32.totalorder %s20, 1
        %s246 = scalar_select %p245, %s20, 1
        %s247 = smul.addr %s246, 32
        %s248 = smul.addr %s247, 8
        %s249 = scalar_lea.vmem %s0, %s248
      $region44: #{tpu_custom_call.1} parent=39 // pred_fallthru
        _
    $region40: #{tpu_custom_call.1} parent=5 // pred_fallthru
      _
    %p250 = scmp.le.s32.totalorder 1, %s13
    %p251 = scmp.lt.s32.totalorder %s13, 3
    %p252 = pnand %p250, %p251
    %p253 = pneg %p252
    // Predicated region
    $region45: #{tpu_custom_call.1} parent=5 // pred_check
      _
    $region46: #{tpu_custom_call.1} parent=5 // pred_check_branch
      %255 = sbr.rel (%p252) target = $region48
    $region47: #{tpu_custom_call.1} parent=5 // pred_region
      %s256 = ssub.s32 %s13, 1
      %p257 = scmp.lt.s32.totalorder %s22, 1
      %s258 = scalar_select %p257, %s22, 1
      %s259 = smul.addr %s258, 32
      %s260 = smul.addr %s259, 8
      %s261 = scalar_lea.vmem %s0, %s260
      %p262 = pneg %p51
      %p263 = pneg %p48
      %p264 = pneg %p72
      %p265 = pneg %p69
      %p266 = pneg %p93
      %p267 = pneg %p90
      %p268 = pneg %p114
      %p269 = pneg %p111
      %p270 = pneg %p135
      %p271 = pneg %p132
      %p272 = pneg %p156
      %p273 = pneg %p153
      %p274 = pneg %p177
      %p275 = pneg %p174
      %p276 = pneg %p205
      %p277 = pneg %p202
      %s278 = smul.u32 32, %s23
      %p279 = scmp.lt.s32.totalorder %s22, 1
      %s280 = scalar_select %p279, %s22, 1
      %p281 = scmp.lt.s32.totalorder %s278, 31
      %s282 = scalar_select %p281, %s278, 31
      %s283 = smul.addr %s280, 32
      %s284 = sadd.s32 %s282, %s283
      %s285 = smul.addr %s284, 8
      %s286 = scalar_lea.vmem %s7, %s285
      %p287 = scmp.lt.s32.totalorder %s22, 1
      %s288 = scalar_select %p287, %s22, 1
      %s289 = smul.addr %s288, 32
      %s290 = smul.addr %s289, 8
      %s291 = scalar_lea.vmem %s0, %s290
      %s292 = smul.u32 32, %s23
      %p293 = scmp.lt.s32.totalorder %s22, 1
      %s294 = scalar_select %p293, %s22, 1
      %p295 = scmp.lt.s32.totalorder %s292, 31
      %s296 = scalar_select %p295, %s292, 31
      %s297 = smul.addr %s294, 32
      %s298 = sadd.s32 %s296, %s297
      %s299 = smul.addr %s298, 8
      %s300 = scalar_lea.vmem %s7, %s299
      %s301 = smul.u32 32, %s23
      %s302 = smul.u32 %s23, 16
      %v303 = vld [vmem:[%s1] sm:$0xff]
      %v304 = vld [vmem:[%s1 + $0x8] sm:$0xff]
      %v305 = vld [vmem:[%s2] sm:$0x1]
      %s306 = smul.u32 %s23, 256
      %s307 = scalar_lea.vmem %s291, %s306
      %v308 = vld [vmem:[%s307] sm:$0xff]
      %v309 = vld [vmem:[%s307 + $0x8] sm:$0xff]
      %v310 = vld [vmem:[%s307 + $0x10] sm:$0xff]
      %v311 = vld [vmem:[%s307 + $0x18] sm:$0xff]
      %v312 = vld [vmem:[%s307 + $0x20] sm:$0xff]
      %v313 = vld [vmem:[%s307 + $0x28] sm:$0xff]
      %v314 = vld [vmem:[%s307 + $0x30] sm:$0xff]
      %v315 = vld [vmem:[%s307 + $0x38] sm:$0xff]
      %v316 = vld [vmem:[%s307 + $0x40] sm:$0xff]
      %v317 = vld [vmem:[%s307 + $0x48] sm:$0xff]
      %v318 = vld [vmem:[%s307 + $0x50] sm:$0xff]
      %v319 = vld [vmem:[%s307 + $0x58] sm:$0xff]
      %v320 = vld [vmem:[%s307 + $0x60] sm:$0xff]
      %v321 = vld [vmem:[%s307 + $0x68] sm:$0xff]
      %v322 = vld [vmem:[%s307 + $0x70] sm:$0xff]
      %v323 = vld [vmem:[%s307 + $0x78] sm:$0xff]
      %v324 = vld [vmem:[%s307 + $0x80] sm:$0xff]
      %v325 = vld [vmem:[%s307 + $0x88] sm:$0xff]
      %v326 = vld [vmem:[%s307 + $0x90] sm:$0xff]
      %v327 = vld [vmem:[%s307 + $0x98] sm:$0xff]
      %v328 = vld [vmem:[%s307 + $0xa0] sm:$0xff]
      %v329 = vld [vmem:[%s307 + $0xa8] sm:$0xff]
      %v330 = vld [vmem:[%s307 + $0xb0] sm:$0xff]
      %v331 = vld [vmem:[%s307 + $0xb8] sm:$0xff]
      %v332 = vld [vmem:[%s307 + $0xc0] sm:$0xff]
      %v333 = vld [vmem:[%s307 + $0xc8] sm:$0xff]
      %v334 = vld [vmem:[%s307 + $0xd0] sm:$0xff]
      %v335 = vld [vmem:[%s307 + $0xd8] sm:$0xff]
      %v336 = vld [vmem:[%s307 + $0xe0] sm:$0xff]
      %v337 = vld [vmem:[%s307 + $0xe8] sm:$0xff]
      %v338 = vld [vmem:[%s307 + $0xf0] sm:$0xff]
      %v339 = vld [vmem:[%s307 + $0xf8] sm:$0xff]
      %v341 = vperm.slane %v305, 0
      %vm343 = vcmask 130048
      %v345 = vsel %vm343, %v308, 0
      %v348 = vsel %vm343, %v309, 0
      %v351 = vsel %vm343, %v310, 0
      %v354 = vsel %vm343, %v311, 0
      %v357 = vsel %vm343, %v312, 0
      %v360 = vsel %vm343, %v313, 0
      %v363 = vsel %vm343, %v314, 0
      %v366 = vsel %vm343, %v315, 0
      %v369 = vsel %vm343, %v316, 0
      %v372 = vsel %vm343, %v317, 0
      %v375 = vsel %vm343, %v318, 0
      %v378 = vsel %vm343, %v319, 0
      %v381 = vsel %vm343, %v320, 0
      %v384 = vsel %vm343, %v321, 0
      %v387 = vsel %vm343, %v322, 0
      %v390 = vsel %vm343, %v323, 0
      %v393 = vsel %vm343, %v324, 0
      %v396 = vsel %vm343, %v325, 0
      %v399 = vsel %vm343, %v326, 0
      %v402 = vsel %vm343, %v327, 0
      %v405 = vsel %vm343, %v328, 0
      %v408 = vsel %vm343, %v329, 0
      %v411 = vsel %vm343, %v330, 0
      %v414 = vsel %vm343, %v331, 0
      %v417 = vsel %vm343, %v332, 0
      %v420 = vsel %vm343, %v333, 0
      %v423 = vsel %vm343, %v334, 0
      %v426 = vsel %vm343, %v335, 0
      %v429 = vsel %vm343, %v336, 0
      %v432 = vsel %vm343, %v337, 0
      %v435 = vsel %vm343, %v338, 0
      %v438 = vsel %vm343, %v339, 0
      %440 = vmatpush.msra.mxu0 0.0
      %441 = vmatpush.msra.mxu0 0.0
      %442 = vmatpush.msra.mxu0 0.0
      %443 = vmatpush.msra.mxu0 0.0
      %444 = vmatpush.msra.mxu0 0.0
      %445 = vmatpush.msra.mxu0 0.0
      %446 = vmatpush.msra.mxu0 0.0
      %447 = vmatpush.msra.mxu0 0.0
      %448 = vmatpush.msra.mxu0 0.0
      %449 = vmatpush.msra.mxu0 0.0
      %450 = vmatpush.msra.mxu0 0.0
      %451 = vmatpush.msra.mxu0 0.0
      %452 = vmatpush.msra.mxu0 0.0
      %453 = vmatpush.msra.mxu0 0.0
      %454 = vmatpush.msra.mxu0 %v304
      %455 = vmatpush.msra.mxu0 %v303
      %456 = vmatmul.f32.gmra.mxu0 %v345
      %v457 = vpop.f32.mrf.mxu0
      %v458 = vadd.f32 %v341, %v457
      %459 = vmatmul.f32.gmra.mxu0 %v348
      %v460 = vpop.f32.mrf.mxu0
      %v461 = vadd.f32 %v341, %v460
      %462 = vmatmul.f32.gmra.mxu0 %v351
      %v463 = vpop.f32.mrf.mxu0
      %v464 = vadd.f32 %v341, %v463
      %465 = vmatmul.f32.gmra.mxu0 %v354
      %v466 = vpop.f32.mrf.mxu0
      %v467 = vadd.f32 %v341, %v466
      %468 = vmatmul.f32.gmra.mxu0 %v357
      %v469 = vpop.f32.mrf.mxu0
      %v470 = vadd.f32 %v341, %v469
      %471 = vmatmul.f32.gmra.mxu0 %v360
      %v472 = vpop.f32.mrf.mxu0
      %v473 = vadd.f32 %v341, %v472
      %474 = vmatmul.f32.gmra.mxu0 %v363
      %v475 = vpop.f32.mrf.mxu0
      %v476 = vadd.f32 %v341, %v475
      %477 = vmatmul.f32.gmra.mxu0 %v366
      %v478 = vpop.f32.mrf.mxu0
      %v479 = vadd.f32 %v341, %v478
      %480 = vmatmul.f32.gmra.mxu0 %v369
      %v481 = vpop.f32.mrf.mxu0
      %v482 = vadd.f32 %v341, %v481
      %483 = vmatmul.f32.gmra.mxu0 %v372
      %v484 = vpop.f32.mrf.mxu0
      %v485 = vadd.f32 %v341, %v484
      %486 = vmatmul.f32.gmra.mxu0 %v375
      %v487 = vpop.f32.mrf.mxu0
      %v488 = vadd.f32 %v341, %v487
      %489 = vmatmul.f32.gmra.mxu0 %v378
      %v490 = vpop.f32.mrf.mxu0
      %v491 = vadd.f32 %v341, %v490
      %492 = vmatmul.f32.gmra.mxu0 %v381
      %v493 = vpop.f32.mrf.mxu0
      %v494 = vadd.f32 %v341, %v493
      %495 = vmatmul.f32.gmra.mxu0 %v384
      %v496 = vpop.f32.mrf.mxu0
      %v497 = vadd.f32 %v341, %v496
      %498 = vmatmul.f32.gmra.mxu0 %v387
      %v499 = vpop.f32.mrf.mxu0
      %v500 = vadd.f32 %v341, %v499
      %501 = vmatmul.f32.gmra.mxu0 %v390
      %v502 = vpop.f32.mrf.mxu0
      %v503 = vadd.f32 %v341, %v502
      %504 = vmatmul.f32.gmra.mxu0 %v393
      %v505 = vpop.f32.mrf.mxu0
      %v506 = vadd.f32 %v341, %v505
      %507 = vmatmul.f32.gmra.mxu0 %v396
      %v508 = vpop.f32.mrf.mxu0
      %v509 = vadd.f32 %v341, %v508
      %510 = vmatmul.f32.gmra.mxu0 %v399
      %v511 = vpop.f32.mrf.mxu0
      %v512 = vadd.f32 %v341, %v511
      %513 = vmatmul.f32.gmra.mxu0 %v402
      %v514 = vpop.f32.mrf.mxu0
      %v515 = vadd.f32 %v341, %v514
      %516 = vmatmul.f32.gmra.mxu0 %v405
      %v517 = vpop.f32.mrf.mxu0
      %v518 = vadd.f32 %v341, %v517
      %519 = vmatmul.f32.gmra.mxu0 %v408
      %v520 = vpop.f32.mrf.mxu0
      %v521 = vadd.f32 %v341, %v520
      %522 = vmatmul.f32.gmra.mxu0 %v411
      %v523 = vpop.f32.mrf.mxu0
      %v524 = vadd.f32 %v341, %v523
      %525 = vmatmul.f32.gmra.mxu0 %v414
      %v526 = vpop.f32.mrf.mxu0
      %v527 = vadd.f32 %v341, %v526
      %528 = vmatmul.f32.gmra.mxu0 %v417
      %v529 = vpop.f32.mrf.mxu0
      %v530 = vadd.f32 %v341, %v529
      %531 = vmatmul.f32.gmra.mxu0 %v420
      %v532 = vpop.f32.mrf.mxu0
      %v533 = vadd.f32 %v341, %v532
      %534 = vmatmul.f32.gmra.mxu0 %v423
      %v535 = vpop.f32.mrf.mxu0
      %v536 = vadd.f32 %v341, %v535
      %537 = vmatmul.f32.gmra.mxu0 %v426
      %v538 = vpop.f32.mrf.mxu0
      %v539 = vadd.f32 %v341, %v538
      %540 = vmatmul.f32.gmra.mxu0 %v429
      %v541 = vpop.f32.mrf.mxu0
      %v542 = vadd.f32 %v341, %v541
      %543 = vmatmul.f32.gmra.mxu0 %v432
      %v544 = vpop.f32.mrf.mxu0
      %v545 = vadd.f32 %v341, %v544
      %546 = vmatmul.f32.gmra.mxu0 %v435
      %v547 = vpop.f32.mrf.mxu0
      %v548 = vadd.f32 %v341, %v547
      %549 = vmatmul.f32.gmra.mxu0 %v438
      %v550 = vpop.f32.mrf.mxu0
      %v551 = vadd.f32 %v341, %v550
      %552 = vdwg.mxu0
      %v553 = vmax.f32 %v458, 0.0
      %v554 = vmax.f32 %v461, 0.0
      %v555 = vmax.f32 %v464, 0.0
      %v556 = vmax.f32 %v467, 0.0
      %v557 = vmax.f32 %v470, 0.0
      %v558 = vmax.f32 %v473, 0.0
      %v559 = vmax.f32 %v476, 0.0
      %v560 = vmax.f32 %v479, 0.0
      %v561 = vmax.f32 %v482, 0.0
      %v562 = vmax.f32 %v485, 0.0
      %v563 = vmax.f32 %v488, 0.0
      %v564 = vmax.f32 %v491, 0.0
      %v565 = vmax.f32 %v494, 0.0
      %v566 = vmax.f32 %v497, 0.0
      %v567 = vmax.f32 %v500, 0.0
      %v568 = vmax.f32 %v503, 0.0
      %v569 = vmax.f32 %v506, 0.0
      %v570 = vmax.f32 %v509, 0.0
      %v571 = vmax.f32 %v512, 0.0
      %v572 = vmax.f32 %v515, 0.0
      %v573 = vmax.f32 %v518, 0.0
      %v574 = vmax.f32 %v521, 0.0
      %v575 = vmax.f32 %v524, 0.0
      %v576 = vmax.f32 %v527, 0.0
      %v577 = vmax.f32 %v530, 0.0
      %v578 = vmax.f32 %v533, 0.0
      %v579 = vmax.f32 %v536, 0.0
      %v580 = vmax.f32 %v539, 0.0
      %v581 = vmax.f32 %v542, 0.0
      %v582 = vmax.f32 %v545, 0.0
      %v583 = vmax.f32 %v548, 0.0
      %v584 = vmax.f32 %v551, 0.0
      %s585 = ssub.s32 %s302, 1
      %p586 = scmp.gt.s32.totalorder %s585, 0
      %s587 = scalar_select %p586, %s585, 0
      %s588 = smul.u32 %s587, 16
      %s589 = scalar_lea.vmem %s291, %s588
      %v590 = vld [vmem:[%s589] sm:$0xff]
      %v591 = vld [vmem:[%s589 + $0x8] sm:$0xff]
      %v593 = vsel %vm343, %v590, 0
      %v596 = vsel %vm343, %v591, 0
      %598 = vmatpush.msra.mxu0 0.0
      %599 = vmatpush.msra.mxu0 0.0
      %600 = vmatpush.msra.mxu0 0.0
      %601 = vmatpush.msra.mxu0 0.0
      %602 = vmatpush.msra.mxu0 0.0
      %603 = vmatpush.msra.mxu0 0.0
      %604 = vmatpush.msra.mxu0 0.0
      %605 = vmatpush.msra.mxu0 0.0
      %606 = vmatpush.msra.mxu0 0.0
      %607 = vmatpush.msra.mxu0 0.0
      %608 = vmatpush.msra.mxu0 0.0
      %609 = vmatpush.msra.mxu0 0.0
      %610 = vmatpush.msra.mxu0 0.0
      %611 = vmatpush.msra.mxu0 0.0
      %612 = vmatpush.msra.mxu0 %v304
      %613 = vmatpush.msra.mxu0 %v303
      %614 = vmatmul.f32.gmra.mxu0 %v593
      %v615 = vpop.f32.mrf.mxu0
      %v616 = vadd.f32 %v341, %v615
      %617 = vmatmul.f32.gmra.mxu0 %v596
      %v618 = vpop.f32.mrf.mxu0
      %v619 = vadd.f32 %v341, %v618
      %620 = vdwg.mxu0
      %v621 = vmax.f32 %v616, 0.0
      %v622 = vmax.f32 %v619, 0.0
      %p623 = scmp.gt.s32.totalorder %s23, 0
      %s624 = scalar_select %p623, 1, 0
      %s625 = scvt.s32.f32 %s624
      %v626 = vstv %s625
      %v627 = vmul.f32 %v621, %v626
      %v628 = vmul.f32 %v622, %v626
      %s629 = sadd.s32 %s302, 16
      %p630 = scmp.lt.s32.totalorder %s629, 15
      %s631 = scalar_select %p630, %s629, 15
      %s632 = smul.u32 %s631, 16
      %s633 = scalar_lea.vmem %s291, %s632
      %v634 = vld [vmem:[%s633] sm:$0xff]
      %v635 = vld [vmem:[%s633 + $0x8] sm:$0xff]
      %v637 = vsel %vm343, %v634, 0
      %v640 = vsel %vm343, %v635, 0
      %642 = vmatpush.msra.mxu0 0.0
      %643 = vmatpush.msra.mxu0 0.0
      %644 = vmatpush.msra.mxu0 0.0
      %645 = vmatpush.msra.mxu0 0.0
      %646 = vmatpush.msra.mxu0 0.0
      %647 = vmatpush.msra.mxu0 0.0
      %648 = vmatpush.msra.mxu0 0.0
      %649 = vmatpush.msra.mxu0 0.0
      %650 = vmatpush.msra.mxu0 0.0
      %651 = vmatpush.msra.mxu0 0.0
      %652 = vmatpush.msra.mxu0 0.0
      %653 = vmatpush.msra.mxu0 0.0
      %654 = vmatpush.msra.mxu0 0.0
      %655 = vmatpush.msra.mxu0 0.0
      %656 = vmatpush.msra.mxu0 %v304
      %657 = vmatpush.msra.mxu0 %v303
      %658 = vmatmul.f32.gmra.mxu0 %v637
      %v659 = vpop.f32.mrf.mxu0
      %v660 = vadd.f32 %v341, %v659
      %661 = vmatmul.f32.gmra.mxu0 %v640
      %v662 = vpop.f32.mrf.mxu0
      %v663 = vadd.f32 %v341, %v662
      %664 = vdwg.mxu0
      %v665 = vmax.f32 %v660, 0.0
      %v666 = vmax.f32 %v663, 0.0
      %p667 = scmp.lt.s32.totalorder %s23, 0
      %s668 = scalar_select %p667, 1, 0
      %s669 = scvt.s32.f32 %s668
      %v670 = vstv %s669
      %v671 = vmul.f32 %v665, %v670
      %v672 = vmul.f32 %v666, %v670
      %v673 = vlaneseq
      %v674 = vshrl.u32 %v673, 7
      %v675 = vadd.s32 %v674, 8
      %v676 = vadd.s32 %v674, 16
      %v677 = vadd.s32 %v674, 24
      %v678 = vadd.s32 %v674, 32
      %v679 = vadd.s32 %v674, 40
      %v680 = vadd.s32 %v674, 48
      %v681 = vadd.s32 %v674, 56
      %v682 = vadd.s32 %v674, 64
      %v683 = vadd.s32 %v674, 72
      %v684 = vadd.s32 %v674, 80
      %v685 = vadd.s32 %v674, 88
      %v686 = vadd.s32 %v674, 96
      %v687 = vadd.s32 %v674, 104
      %v688 = vadd.s32 %v674, 112
      %v689 = vadd.s32 %v674, 120
      %v690 = vadd.s32 %v674, 128
      %v691 = vadd.s32 %v674, 136
      %v692 = vadd.s32 %v674, 144
      %v693 = vadd.s32 %v674, 152
      %v694 = vadd.s32 %v674, 160
      %v695 = vadd.s32 %v674, 168
      %v696 = vadd.s32 %v674, 176
      %v697 = vadd.s32 %v674, 184
      %v698 = vadd.s32 %v674, 192
      %v699 = vadd.s32 %v674, 200
      %v700 = vadd.s32 %v674, 208
      %v701 = vadd.s32 %v674, 216
      %v702 = vadd.s32 %v674, 224
      %v703 = vadd.s32 %v674, 232
      %v704 = vadd.s32 %v674, 240
      %v705 = vadd.s32 %v674, 248
      %vm706 = vcmp.lt.s32.totalorder %v674, 0
      %v707 = vsub.s32 0, %v674
      %v708 = vsel %vm706, %v707, %v674
      %v709 = vshrl.u32 %v708, 4
      %v710 = vand.u32 %v708, 15
      %v711 = vsub.s32 0, %v710
      %v712 = vsel %vm706, %v711, %v710
      %vm713 = vcmp.lt.s32.totalorder %v675, 0
      %v714 = vsub.s32 0, %v675
      %v715 = vsel %vm713, %v714, %v675
      %v716 = vshrl.u32 %v715, 4
      %v717 = vand.u32 %v715, 15
      %v718 = vsub.s32 0, %v717
      %v719 = vsel %vm713, %v718, %v717
      %vm720 = vcmp.lt.s32.totalorder %v676, 0
      %v721 = vsub.s32 0, %v676
      %v722 = vsel %vm720, %v721, %v676
      %v723 = vshrl.u32 %v722, 4
      %v724 = vand.u32 %v722, 15
      %v725 = vsub.s32 0, %v724
      %v726 = vsel %vm720, %v725, %v724
      %vm727 = vcmp.lt.s32.totalorder %v677, 0
      %v728 = vsub.s32 0, %v677
      %v729 = vsel %vm727, %v728, %v677
      %v730 = vshrl.u32 %v729, 4
      %v731 = vand.u32 %v729, 15
      %v732 = vsub.s32 0, %v731
      %v733 = vsel %vm727, %v732, %v731
      %vm734 = vcmp.lt.s32.totalorder %v678, 0
      %v735 = vsub.s32 0, %v678
      %v736 = vsel %vm734, %v735, %v678
      %v737 = vshrl.u32 %v736, 4
      %v738 = vand.u32 %v736, 15
      %v739 = vsub.s32 0, %v738
      %v740 = vsel %vm734, %v739, %v738
      %vm741 = vcmp.lt.s32.totalorder %v679, 0
      %v742 = vsub.s32 0, %v679
      %v743 = vsel %vm741, %v742, %v679
      %v744 = vshrl.u32 %v743, 4
      %v745 = vand.u32 %v743, 15
      %v746 = vsub.s32 0, %v745
      %v747 = vsel %vm741, %v746, %v745
      %vm748 = vcmp.lt.s32.totalorder %v680, 0
      %v749 = vsub.s32 0, %v680
      %v750 = vsel %vm748, %v749, %v680
      %v751 = vshrl.u32 %v750, 4
      %v752 = vand.u32 %v750, 15
      %v753 = vsub.s32 0, %v752
      %v754 = vsel %vm748, %v753, %v752
      %vm755 = vcmp.lt.s32.totalorder %v681, 0
      %v756 = vsub.s32 0, %v681
      %v757 = vsel %vm755, %v756, %v681
      %v758 = vshrl.u32 %v757, 4
      %v759 = vand.u32 %v757, 15
      %v760 = vsub.s32 0, %v759
      %v761 = vsel %vm755, %v760, %v759
      %vm762 = vcmp.lt.s32.totalorder %v682, 0
      %v763 = vsub.s32 0, %v682
      %v764 = vsel %vm762, %v763, %v682
      %v765 = vshrl.u32 %v764, 4
      %v766 = vand.u32 %v764, 15
      %v767 = vsub.s32 0, %v766
      %v768 = vsel %vm762, %v767, %v766
      %vm769 = vcmp.lt.s32.totalorder %v683, 0
      %v770 = vsub.s32 0, %v683
      %v771 = vsel %vm769, %v770, %v683
      %v772 = vshrl.u32 %v771, 4
      %v773 = vand.u32 %v771, 15
      %v774 = vsub.s32 0, %v773
      %v775 = vsel %vm769, %v774, %v773
      %vm776 = vcmp.lt.s32.totalorder %v684, 0
      %v777 = vsub.s32 0, %v684
      %v778 = vsel %vm776, %v777, %v684
      %v779 = vshrl.u32 %v778, 4
      %v780 = vand.u32 %v778, 15
      %v781 = vsub.s32 0, %v780
      %v782 = vsel %vm776, %v781, %v780
      %vm783 = vcmp.lt.s32.totalorder %v685, 0
      %v784 = vsub.s32 0, %v685
      %v785 = vsel %vm783, %v784, %v685
      %v786 = vshrl.u32 %v785, 4
      %v787 = vand.u32 %v785, 15
      %v788 = vsub.s32 0, %v787
      %v789 = vsel %vm783, %v788, %v787
      %vm790 = vcmp.lt.s32.totalorder %v686, 0
      %v791 = vsub.s32 0, %v686
      %v792 = vsel %vm790, %v791, %v686
      %v793 = vshrl.u32 %v792, 4
      %v794 = vand.u32 %v792, 15
      %v795 = vsub.s32 0, %v794
      %v796 = vsel %vm790, %v795, %v794
      %vm797 = vcmp.lt.s32.totalorder %v687, 0
      %v798 = vsub.s32 0, %v687
      %v799 = vsel %vm797, %v798, %v687
      %v800 = vshrl.u32 %v799, 4
      %v801 = vand.u32 %v799, 15
      %v802 = vsub.s32 0, %v801
      %v803 = vsel %vm797, %v802, %v801
      %vm804 = vcmp.lt.s32.totalorder %v688, 0
      %v805 = vsub.s32 0, %v688
      %v806 = vsel %vm804, %v805, %v688
      %v807 = vshrl.u32 %v806, 4
      %v808 = vand.u32 %v806, 15
      %v809 = vsub.s32 0, %v808
      %v810 = vsel %vm804, %v809, %v808
      %vm811 = vcmp.lt.s32.totalorder %v689, 0
      %v812 = vsub.s32 0, %v689
      %v813 = vsel %vm811, %v812, %v689
      %v814 = vshrl.u32 %v813, 4
      %v815 = vand.u32 %v813, 15
      %v816 = vsub.s32 0, %v815
      %v817 = vsel %vm811, %v816, %v815
      %vm818 = vcmp.lt.s32.totalorder %v690, 0
      %v819 = vsub.s32 0, %v690
      %v820 = vsel %vm818, %v819, %v690
      %v821 = vshrl.u32 %v820, 4
      %v822 = vand.u32 %v820, 15
      %v823 = vsub.s32 0, %v822
      %v824 = vsel %vm818, %v823, %v822
      %vm825 = vcmp.lt.s32.totalorder %v691, 0
      %v826 = vsub.s32 0, %v691
      %v827 = vsel %vm825, %v826, %v691
      %v828 = vshrl.u32 %v827, 4
      %v829 = vand.u32 %v827, 15
      %v830 = vsub.s32 0, %v829
      %v831 = vsel %vm825, %v830, %v829
      %vm832 = vcmp.lt.s32.totalorder %v692, 0
      %v833 = vsub.s32 0, %v692
      %v834 = vsel %vm832, %v833, %v692
      %v835 = vshrl.u32 %v834, 4
      %v836 = vand.u32 %v834, 15
      %v837 = vsub.s32 0, %v836
      %v838 = vsel %vm832, %v837, %v836
      %vm839 = vcmp.lt.s32.totalorder %v693, 0
      %v840 = vsub.s32 0, %v693
      %v841 = vsel %vm839, %v840, %v693
      %v842 = vshrl.u32 %v841, 4
      %v843 = vand.u32 %v841, 15
      %v844 = vsub.s32 0, %v843
      %v845 = vsel %vm839, %v844, %v843
      %vm846 = vcmp.lt.s32.totalorder %v694, 0
      %v847 = vsub.s32 0, %v694
      %v848 = vsel %vm846, %v847, %v694
      %v849 = vshrl.u32 %v848, 4
      %v850 = vand.u32 %v848, 15
      %v851 = vsub.s32 0, %v850
      %v852 = vsel %vm846, %v851, %v850
      %vm853 = vcmp.lt.s32.totalorder %v695, 0
      %v854 = vsub.s32 0, %v695
      %v855 = vsel %vm853, %v854, %v695
      %v856 = vshrl.u32 %v855, 4
      %v857 = vand.u32 %v855, 15
      %v858 = vsub.s32 0, %v857
      %v859 = vsel %vm853, %v858, %v857
      %vm860 = vcmp.lt.s32.totalorder %v696, 0
      %v861 = vsub.s32 0, %v696
      %v862 = vsel %vm860, %v861, %v696
      %v863 = vshrl.u32 %v862, 4
      %v864 = vand.u32 %v862, 15
      %v865 = vsub.s32 0, %v864
      %v866 = vsel %vm860, %v865, %v864
      %vm867 = vcmp.lt.s32.totalorder %v697, 0
      %v868 = vsub.s32 0, %v697
      %v869 = vsel %vm867, %v868, %v697
      %v870 = vshrl.u32 %v869, 4
      %v871 = vand.u32 %v869, 15
      %v872 = vsub.s32 0, %v871
      %v873 = vsel %vm867, %v872, %v871
      %vm874 = vcmp.lt.s32.totalorder %v698, 0
      %v875 = vsub.s32 0, %v698
      %v876 = vsel %vm874, %v875, %v698
      %v877 = vshrl.u32 %v876, 4
      %v878 = vand.u32 %v876, 15
      %v879 = vsub.s32 0, %v878
      %v880 = vsel %vm874, %v879, %v878
      %vm881 = vcmp.lt.s32.totalorder %v699, 0
      %v882 = vsub.s32 0, %v699
      %v883 = vsel %vm881, %v882, %v699
      %v884 = vshrl.u32 %v883, 4
      %v885 = vand.u32 %v883, 15
      %v886 = vsub.s32 0, %v885
      %v887 = vsel %vm881, %v886, %v885
      %vm888 = vcmp.lt.s32.totalorder %v700, 0
      %v889 = vsub.s32 0, %v700
      %v890 = vsel %vm888, %v889, %v700
      %v891 = vshrl.u32 %v890, 4
      %v892 = vand.u32 %v890, 15
      %v893 = vsub.s32 0, %v892
      %v894 = vsel %vm888, %v893, %v892
      %vm895 = vcmp.lt.s32.totalorder %v701, 0
      %v896 = vsub.s32 0, %v701
      %v897 = vsel %vm895, %v896, %v701
      %v898 = vshrl.u32 %v897, 4
      %v899 = vand.u32 %v897, 15
      %v900 = vsub.s32 0, %v899
      %v901 = vsel %vm895, %v900, %v899
      %vm902 = vcmp.lt.s32.totalorder %v702, 0
      %v903 = vsub.s32 0, %v702
      %v904 = vsel %vm902, %v903, %v702
      %v905 = vshrl.u32 %v904, 4
      %v906 = vand.u32 %v904, 15
      %v907 = vsub.s32 0, %v906
      %v908 = vsel %vm902, %v907, %v906
      %vm909 = vcmp.lt.s32.totalorder %v703, 0
      %v910 = vsub.s32 0, %v703
      %v911 = vsel %vm909, %v910, %v703
      %v912 = vshrl.u32 %v911, 4
      %v913 = vand.u32 %v911, 15
      %v914 = vsub.s32 0, %v913
      %v915 = vsel %vm909, %v914, %v913
      %vm916 = vcmp.lt.s32.totalorder %v704, 0
      %v917 = vsub.s32 0, %v704
      %v918 = vsel %vm916, %v917, %v704
      %v919 = vshrl.u32 %v918, 4
      %v920 = vand.u32 %v918, 15
      %v921 = vsub.s32 0, %v920
      %v922 = vsel %vm916, %v921, %v920
      %vm923 = vcmp.lt.s32.totalorder %v705, 0
      %v924 = vsub.s32 0, %v705
      %v925 = vsel %vm923, %v924, %v705
      %v926 = vshrl.u32 %v925, 4
      %v927 = vand.u32 %v925, 15
      %v928 = vsub.s32 0, %v927
      %v929 = vsel %vm923, %v928, %v927
      %vm930 = vcmp.ne.s32.totalorder %v712, 0
      %vm931 = vcmp.ne.s32.totalorder %v719, 0
      %vm932 = vcmp.ne.s32.totalorder %v726, 0
      %vm933 = vcmp.ne.s32.totalorder %v733, 0
      %vm934 = vcmp.ne.s32.totalorder %v740, 0
      %vm935 = vcmp.ne.s32.totalorder %v747, 0
      %vm936 = vcmp.ne.s32.totalorder %v754, 0
      %vm937 = vcmp.ne.s32.totalorder %v761, 0
      %vm938 = vcmp.ne.s32.totalorder %v768, 0
      %vm939 = vcmp.ne.s32.totalorder %v775, 0
      %vm940 = vcmp.ne.s32.totalorder %v782, 0
      %vm941 = vcmp.ne.s32.totalorder %v789, 0
      %vm942 = vcmp.ne.s32.totalorder %v796, 0
      %vm943 = vcmp.ne.s32.totalorder %v803, 0
      %vm944 = vcmp.ne.s32.totalorder %v810, 0
      %vm945 = vcmp.ne.s32.totalorder %v817, 0
      %vm946 = vcmp.ne.s32.totalorder %v824, 0
      %vm947 = vcmp.ne.s32.totalorder %v831, 0
      %vm948 = vcmp.ne.s32.totalorder %v838, 0
      %vm949 = vcmp.ne.s32.totalorder %v845, 0
      %vm950 = vcmp.ne.s32.totalorder %v852, 0
      %vm951 = vcmp.ne.s32.totalorder %v859, 0
      %vm952 = vcmp.ne.s32.totalorder %v866, 0
      %vm953 = vcmp.ne.s32.totalorder %v873, 0
      %vm954 = vcmp.ne.s32.totalorder %v880, 0
      %vm955 = vcmp.ne.s32.totalorder %v887, 0
      %vm956 = vcmp.ne.s32.totalorder %v894, 0
      %vm957 = vcmp.ne.s32.totalorder %v901, 0
      %vm958 = vcmp.ne.s32.totalorder %v908, 0
      %vm959 = vcmp.ne.s32.totalorder %v915, 0
      %vm960 = vcmp.ne.s32.totalorder %v922, 0
      %vm961 = vcmp.ne.s32.totalorder %v929, 0
      %vm962 = vcmp.lt.s32.totalorder %v712, 0
      %vm963 = vcmp.lt.s32.totalorder %v719, 0
      %vm964 = vcmp.lt.s32.totalorder %v726, 0
      %vm965 = vcmp.lt.s32.totalorder %v733, 0
      %vm966 = vcmp.lt.s32.totalorder %v740, 0
      %vm967 = vcmp.lt.s32.totalorder %v747, 0
      %vm968 = vcmp.lt.s32.totalorder %v754, 0
      %vm969 = vcmp.lt.s32.totalorder %v761, 0
      %vm970 = vcmp.lt.s32.totalorder %v768, 0
      %vm971 = vcmp.lt.s32.totalorder %v775, 0
      %vm972 = vcmp.lt.s32.totalorder %v782, 0
      %vm973 = vcmp.lt.s32.totalorder %v789, 0
      %vm974 = vcmp.lt.s32.totalorder %v796, 0
      %vm975 = vcmp.lt.s32.totalorder %v803, 0
      %vm976 = vcmp.lt.s32.totalorder %v810, 0
      %vm977 = vcmp.lt.s32.totalorder %v817, 0
      %vm978 = vcmp.lt.s32.totalorder %v824, 0
      %vm979 = vcmp.lt.s32.totalorder %v831, 0
      %vm980 = vcmp.lt.s32.totalorder %v838, 0
      %vm981 = vcmp.lt.s32.totalorder %v845, 0
      %vm982 = vcmp.lt.s32.totalorder %v852, 0
      %vm983 = vcmp.lt.s32.totalorder %v859, 0
      %vm984 = vcmp.lt.s32.totalorder %v866, 0
      %vm985 = vcmp.lt.s32.totalorder %v873, 0
      %vm986 = vcmp.lt.s32.totalorder %v880, 0
      %vm987 = vcmp.lt.s32.totalorder %v887, 0
      %vm988 = vcmp.lt.s32.totalorder %v894, 0
      %vm989 = vcmp.lt.s32.totalorder %v901, 0
      %vm990 = vcmp.lt.s32.totalorder %v908, 0
      %vm991 = vcmp.lt.s32.totalorder %v915, 0
      %vm992 = vcmp.lt.s32.totalorder %v922, 0
      %vm993 = vcmp.lt.s32.totalorder %v929, 0
      %vm994 = vmand %vm962, %vm930
      %vm995 = vmand %vm963, %vm931
      %vm996 = vmand %vm964, %vm932
      %vm997 = vmand %vm965, %vm933
      %vm998 = vmand %vm966, %vm934
      %vm999 = vmand %vm967, %vm935
      %vm1000 = vmand %vm968, %vm936
      %vm1001 = vmand %vm969, %vm937
      %vm1002 = vmand %vm970, %vm938
      %vm1003 = vmand %vm971, %vm939
      %vm1004 = vmand %vm972, %vm940
      %vm1005 = vmand %vm973, %vm941
      %vm1006 = vmand %vm974, %vm942
      %vm1007 = vmand %vm975, %vm943
      %vm1008 = vmand %vm976, %vm944
      %vm1009 = vmand %vm977, %vm945
      %vm1010 = vmand %vm978, %vm946
      %vm1011 = vmand %vm979, %vm947
      %vm1012 = vmand %vm980, %vm948
      %vm1013 = vmand %vm981, %vm949
      %vm1014 = vmand %vm982, %vm950
      %vm1015 = vmand %vm983, %vm951
      %vm1016 = vmand %vm984, %vm952
      %vm1017 = vmand %vm985, %vm953
      %vm1018 = vmand %vm986, %vm954
      %vm1019 = vmand %vm987, %vm955
      %vm1020 = vmand %vm988, %vm956
      %vm1021 = vmand %vm989, %vm957
      %vm1022 = vmand %vm990, %vm958
      %vm1023 = vmand %vm991, %vm959
      %vm1024 = vmand %vm992, %vm960
      %vm1025 = vmand %vm993, %vm961
      %v1026 = vadd.s32 %v712, 16
      %v1027 = vadd.s32 %v719, 16
      %v1028 = vadd.s32 %v726, 16
      %v1029 = vadd.s32 %v733, 16
      %v1030 = vadd.s32 %v740, 16
      %v1031 = vadd.s32 %v747, 16
      %v1032 = vadd.s32 %v754, 16
      %v1033 = vadd.s32 %v761, 16
      %v1034 = vadd.s32 %v768, 16
      %v1035 = vadd.s32 %v775, 16
      %v1036 = vadd.s32 %v782, 16
      %v1037 = vadd.s32 %v789, 16
      %v1038 = vadd.s32 %v796, 16
      %v1039 = vadd.s32 %v803, 16
      %v1040 = vadd.s32 %v810, 16
      %v1041 = vadd.s32 %v817, 16
      %v1042 = vadd.s32 %v824, 16
      %v1043 = vadd.s32 %v831, 16
      %v1044 = vadd.s32 %v838, 16
      %v1045 = vadd.s32 %v845, 16
      %v1046 = vadd.s32 %v852, 16
      %v1047 = vadd.s32 %v859, 16
      %v1048 = vadd.s32 %v866, 16
      %v1049 = vadd.s32 %v873, 16
      %v1050 = vadd.s32 %v880, 16
      %v1051 = vadd.s32 %v887, 16
      %v1052 = vadd.s32 %v894, 16
      %v1053 = vadd.s32 %v901, 16
      %v1054 = vadd.s32 %v908, 16
      %v1055 = vadd.s32 %v915, 16
      %v1056 = vadd.s32 %v922, 16
      %v1057 = vadd.s32 %v929, 16
      %v1058 = vsel %vm994, %v1026, %v712
      %v1059 = vsel %vm995, %v1027, %v719
      %v1060 = vsel %vm996, %v1028, %v726
      %v1061 = vsel %vm997, %v1029, %v733
      %v1062 = vsel %vm998, %v1030, %v740
      %v1063 = vsel %vm999, %v1031, %v747
      %v1064 = vsel %vm1000, %v1032, %v754
      %v1065 = vsel %vm1001, %v1033, %v761
      %v1066 = vsel %vm1002, %v1034, %v768
      %v1067 = vsel %vm1003, %v1035, %v775
      %v1068 = vsel %vm1004, %v1036, %v782
      %v1069 = vsel %vm1005, %v1037, %v789
      %v1070 = vsel %vm1006, %v1038, %v796
      %v1071 = vsel %vm1007, %v1039, %v803
      %v1072 = vsel %vm1008, %v1040, %v810
      %v1073 = vsel %vm1009, %v1041, %v817
      %v1074 = vsel %vm1010, %v1042, %v824
      %v1075 = vsel %vm1011, %v1043, %v831
      %v1076 = vsel %vm1012, %v1044, %v838
      %v1077 = vsel %vm1013, %v1045, %v845
      %v1078 = vsel %vm1014, %v1046, %v852
      %v1079 = vsel %vm1015, %v1047, %v859
      %v1080 = vsel %vm1016, %v1048, %v866
      %v1081 = vsel %vm1017, %v1049, %v873
      %v1082 = vsel %vm1018, %v1050, %v880
      %v1083 = vsel %vm1019, %v1051, %v887
      %v1084 = vsel %vm1020, %v1052, %v894
      %v1085 = vsel %vm1021, %v1053, %v901
      %v1086 = vsel %vm1022, %v1054, %v908
      %v1087 = vsel %vm1023, %v1055, %v915
      %v1088 = vsel %vm1024, %v1056, %v922
      %v1089 = vsel %vm1025, %v1057, %v929
      %vm1090 = vcmp.ge.s32.totalorder %v1058, 1
      %vm1091 = vcmp.ge.s32.totalorder %v1059, 1
      %vm1092 = vcmp.ge.s32.totalorder %v1060, 1
      %vm1093 = vcmp.ge.s32.totalorder %v1061, 1
      %vm1094 = vcmp.ge.s32.totalorder %v1062, 1
      %vm1095 = vcmp.ge.s32.totalorder %v1063, 1
      %vm1096 = vcmp.ge.s32.totalorder %v1064, 1
      %vm1097 = vcmp.ge.s32.totalorder %v1065, 1
      %vm1098 = vcmp.ge.s32.totalorder %v1066, 1
      %vm1099 = vcmp.ge.s32.totalorder %v1067, 1
      %vm1100 = vcmp.ge.s32.totalorder %v1068, 1
      %vm1101 = vcmp.ge.s32.totalorder %v1069, 1
      %vm1102 = vcmp.ge.s32.totalorder %v1070, 1
      %vm1103 = vcmp.ge.s32.totalorder %v1071, 1
      %vm1104 = vcmp.ge.s32.totalorder %v1072, 1
      %vm1105 = vcmp.ge.s32.totalorder %v1073, 1
      %vm1106 = vcmp.ge.s32.totalorder %v1074, 1
      %vm1107 = vcmp.ge.s32.totalorder %v1075, 1
      %vm1108 = vcmp.ge.s32.totalorder %v1076, 1
      %vm1109 = vcmp.ge.s32.totalorder %v1077, 1
      %vm1110 = vcmp.ge.s32.totalorder %v1078, 1
      %vm1111 = vcmp.ge.s32.totalorder %v1079, 1
      %vm1112 = vcmp.ge.s32.totalorder %v1080, 1
      %vm1113 = vcmp.ge.s32.totalorder %v1081, 1
      %vm1114 = vcmp.ge.s32.totalorder %v1082, 1
      %vm1115 = vcmp.ge.s32.totalorder %v1083, 1
      %vm1116 = vcmp.ge.s32.totalorder %v1084, 1
      %vm1117 = vcmp.ge.s32.totalorder %v1085, 1
      %vm1118 = vcmp.ge.s32.totalorder %v1086, 1
      %vm1119 = vcmp.ge.s32.totalorder %v1087, 1
      %vm1120 = vcmp.ge.s32.totalorder %v1088, 1
      %vm1121 = vcmp.ge.s32.totalorder %v1089, 1
      %v1122 = vsel %vm1090, 1, 0
      %v1123 = vsel %vm1091, 1, 0
      %v1124 = vsel %vm1092, 1, 0
      %v1125 = vsel %vm1093, 1, 0
      %v1126 = vsel %vm1094, 1, 0
      %v1127 = vsel %vm1095, 1, 0
      %v1128 = vsel %vm1096, 1, 0
      %v1129 = vsel %vm1097, 1, 0
      %v1130 = vsel %vm1098, 1, 0
      %v1131 = vsel %vm1099, 1, 0
      %v1132 = vsel %vm1100, 1, 0
      %v1133 = vsel %vm1101, 1, 0
      %v1134 = vsel %vm1102, 1, 0
      %v1135 = vsel %vm1103, 1, 0
      %v1136 = vsel %vm1104, 1, 0
      %v1137 = vsel %vm1105, 1, 0
      %v1138 = vsel %vm1106, 1, 0
      %v1139 = vsel %vm1107, 1, 0
      %v1140 = vsel %vm1108, 1, 0
      %v1141 = vsel %vm1109, 1, 0
      %v1142 = vsel %vm1110, 1, 0
      %v1143 = vsel %vm1111, 1, 0
      %v1144 = vsel %vm1112, 1, 0
      %v1145 = vsel %vm1113, 1, 0
      %v1146 = vsel %vm1114, 1, 0
      %v1147 = vsel %vm1115, 1, 0
      %v1148 = vsel %vm1116, 1, 0
      %v1149 = vsel %vm1117, 1, 0
      %v1150 = vsel %vm1118, 1, 0
      %v1151 = vsel %vm1119, 1, 0
      %v1152 = vsel %vm1120, 1, 0
      %v1153 = vsel %vm1121, 1, 0
      %v1154 = vcvt.s32.f32 %v1122
      %v1155 = vcvt.s32.f32 %v1123
      %v1156 = vcvt.s32.f32 %v1124
      %v1157 = vcvt.s32.f32 %v1125
      %v1158 = vcvt.s32.f32 %v1126
      %v1159 = vcvt.s32.f32 %v1127
      %v1160 = vcvt.s32.f32 %v1128
      %v1161 = vcvt.s32.f32 %v1129
      %v1162 = vcvt.s32.f32 %v1130
      %v1163 = vcvt.s32.f32 %v1131
      %v1164 = vcvt.s32.f32 %v1132
      %v1165 = vcvt.s32.f32 %v1133
      %v1166 = vcvt.s32.f32 %v1134
      %v1167 = vcvt.s32.f32 %v1135
      %v1168 = vcvt.s32.f32 %v1136
      %v1169 = vcvt.s32.f32 %v1137
      %v1170 = vcvt.s32.f32 %v1138
      %v1171 = vcvt.s32.f32 %v1139
      %v1172 = vcvt.s32.f32 %v1140
      %v1173 = vcvt.s32.f32 %v1141
      %v1174 = vcvt.s32.f32 %v1142
      %v1175 = vcvt.s32.f32 %v1143
      %v1176 = vcvt.s32.f32 %v1144
      %v1177 = vcvt.s32.f32 %v1145
      %v1178 = vcvt.s32.f32 %v1146
      %v1179 = vcvt.s32.f32 %v1147
      %v1180 = vcvt.s32.f32 %v1148
      %v1181 = vcvt.s32.f32 %v1149
      %v1182 = vcvt.s32.f32 %v1150
      %v1183 = vcvt.s32.f32 %v1151
      %v1184 = vcvt.s32.f32 %v1152
      %v1185 = vcvt.s32.f32 %v1153
      %vm1186 = vcmp.le.s32.totalorder %v1058, 14
      %vm1187 = vcmp.le.s32.totalorder %v1059, 14
      %vm1188 = vcmp.le.s32.totalorder %v1060, 14
      %vm1189 = vcmp.le.s32.totalorder %v1061, 14
      %vm1190 = vcmp.le.s32.totalorder %v1062, 14
      %vm1191 = vcmp.le.s32.totalorder %v1063, 14
      %vm1192 = vcmp.le.s32.totalorder %v1064, 14
      %vm1193 = vcmp.le.s32.totalorder %v1065, 14
      %vm1194 = vcmp.le.s32.totalorder %v1066, 14
      %vm1195 = vcmp.le.s32.totalorder %v1067, 14
      %vm1196 = vcmp.le.s32.totalorder %v1068, 14
      %vm1197 = vcmp.le.s32.totalorder %v1069, 14
      %vm1198 = vcmp.le.s32.totalorder %v1070, 14
      %vm1199 = vcmp.le.s32.totalorder %v1071, 14
      %vm1200 = vcmp.le.s32.totalorder %v1072, 14
      %vm1201 = vcmp.le.s32.totalorder %v1073, 14
      %vm1202 = vcmp.le.s32.totalorder %v1074, 14
      %vm1203 = vcmp.le.s32.totalorder %v1075, 14
      %vm1204 = vcmp.le.s32.totalorder %v1076, 14
      %vm1205 = vcmp.le.s32.totalorder %v1077, 14
      %vm1206 = vcmp.le.s32.totalorder %v1078, 14
      %vm1207 = vcmp.le.s32.totalorder %v1079, 14
      %vm1208 = vcmp.le.s32.totalorder %v1080, 14
      %vm1209 = vcmp.le.s32.totalorder %v1081, 14
      %vm1210 = vcmp.le.s32.totalorder %v1082, 14
      %vm1211 = vcmp.le.s32.totalorder %v1083, 14
      %vm1212 = vcmp.le.s32.totalorder %v1084, 14
      %vm1213 = vcmp.le.s32.totalorder %v1085, 14
      %vm1214 = vcmp.le.s32.totalorder %v1086, 14
      %vm1215 = vcmp.le.s32.totalorder %v1087, 14
      %vm1216 = vcmp.le.s32.totalorder %v1088, 14
      %vm1217 = vcmp.le.s32.totalorder %v1089, 14
      %v1218 = vsel %vm1186, 1, 0
      %v1219 = vsel %vm1187, 1, 0
      %v1220 = vsel %vm1188, 1, 0
      %v1221 = vsel %vm1189, 1, 0
      %v1222 = vsel %vm1190, 1, 0
      %v1223 = vsel %vm1191, 1, 0
      %v1224 = vsel %vm1192, 1, 0
      %v1225 = vsel %vm1193, 1, 0
      %v1226 = vsel %vm1194, 1, 0
      %v1227 = vsel %vm1195, 1, 0
      %v1228 = vsel %vm1196, 1, 0
      %v1229 = vsel %vm1197, 1, 0
      %v1230 = vsel %vm1198, 1, 0
      %v1231 = vsel %vm1199, 1, 0
      %v1232 = vsel %vm1200, 1, 0
      %v1233 = vsel %vm1201, 1, 0
      %v1234 = vsel %vm1202, 1, 0
      %v1235 = vsel %vm1203, 1, 0
      %v1236 = vsel %vm1204, 1, 0
      %v1237 = vsel %vm1205, 1, 0
      %v1238 = vsel %vm1206, 1, 0
      %v1239 = vsel %vm1207, 1, 0
      %v1240 = vsel %vm1208, 1, 0
      %v1241 = vsel %vm1209, 1, 0
      %v1242 = vsel %vm1210, 1, 0
      %v1243 = vsel %vm1211, 1, 0
      %v1244 = vsel %vm1212, 1, 0
      %v1245 = vsel %vm1213, 1, 0
      %v1246 = vsel %vm1214, 1, 0
      %v1247 = vsel %vm1215, 1, 0
      %v1248 = vsel %vm1216, 1, 0
      %v1249 = vsel %vm1217, 1, 0
      %v1250 = vcvt.s32.f32 %v1218
      %v1251 = vcvt.s32.f32 %v1219
      %v1252 = vcvt.s32.f32 %v1220
      %v1253 = vcvt.s32.f32 %v1221
      %v1254 = vcvt.s32.f32 %v1222
      %v1255 = vcvt.s32.f32 %v1223
      %v1256 = vcvt.s32.f32 %v1224
      %v1257 = vcvt.s32.f32 %v1225
      %v1258 = vcvt.s32.f32 %v1226
      %v1259 = vcvt.s32.f32 %v1227
      %v1260 = vcvt.s32.f32 %v1228
      %v1261 = vcvt.s32.f32 %v1229
      %v1262 = vcvt.s32.f32 %v1230
      %v1263 = vcvt.s32.f32 %v1231
      %v1264 = vcvt.s32.f32 %v1232
      %v1265 = vcvt.s32.f32 %v1233
      %v1266 = vcvt.s32.f32 %v1234
      %v1267 = vcvt.s32.f32 %v1235
      %v1268 = vcvt.s32.f32 %v1236
      %v1269 = vcvt.s32.f32 %v1237
      %v1270 = vcvt.s32.f32 %v1238
      %v1271 = vcvt.s32.f32 %v1239
      %v1272 = vcvt.s32.f32 %v1240
      %v1273 = vcvt.s32.f32 %v1241
      %v1274 = vcvt.s32.f32 %v1242
      %v1275 = vcvt.s32.f32 %v1243
      %v1276 = vcvt.s32.f32 %v1244
      %v1277 = vcvt.s32.f32 %v1245
      %v1278 = vcvt.s32.f32 %v1246
      %v1279 = vcvt.s32.f32 %v1247
      %v1280 = vcvt.s32.f32 %v1248
      %v1281 = vcvt.s32.f32 %v1249
      %vm1314 = vcmask 1046528
      %v1315 = vrot.slane %v1154, 1
      %v1316 = vrot.slane %v1155, 1
      %v1317 = vsel %vm1314, %v1315, %v1316
      %v1318 = vrot.slane %v1156, 1
      %v1319 = vsel %vm1314, %v1316, %v1318
      %v1320 = vrot.slane %v1157, 1
      %v1321 = vsel %vm1314, %v1318, %v1320
      %v1322 = vrot.slane %v1158, 1
      %v1323 = vsel %vm1314, %v1320, %v1322
      %v1324 = vrot.slane %v1159, 1
      %v1325 = vsel %vm1314, %v1322, %v1324
      %v1326 = vrot.slane %v1160, 1
      %v1327 = vsel %vm1314, %v1324, %v1326
      %v1328 = vrot.slane %v1161, 1
      %v1329 = vsel %vm1314, %v1326, %v1328
      %v1330 = vrot.slane %v1162, 1
      %v1331 = vsel %vm1314, %v1328, %v1330
      %v1332 = vrot.slane %v1163, 1
      %v1333 = vsel %vm1314, %v1330, %v1332
      %v1334 = vrot.slane %v1164, 1
      %v1335 = vsel %vm1314, %v1332, %v1334
      %v1336 = vrot.slane %v1165, 1
      %v1337 = vsel %vm1314, %v1334, %v1336
      %v1338 = vrot.slane %v1166, 1
      %v1339 = vsel %vm1314, %v1336, %v1338
      %v1340 = vrot.slane %v1167, 1
      %v1341 = vsel %vm1314, %v1338, %v1340
      %v1342 = vrot.slane %v1168, 1
      %v1343 = vsel %vm1314, %v1340, %v1342
      %v1344 = vrot.slane %v1169, 1
      %v1345 = vsel %vm1314, %v1342, %v1344
      %v1346 = vrot.slane %v1170, 1
      %v1347 = vsel %vm1314, %v1344, %v1346
      %v1348 = vrot.slane %v1171, 1
      %v1349 = vsel %vm1314, %v1346, %v1348
      %v1350 = vrot.slane %v1172, 1
      %v1351 = vsel %vm1314, %v1348, %v1350
      %v1352 = vrot.slane %v1173, 1
      %v1353 = vsel %vm1314, %v1350, %v1352
      %v1354 = vrot.slane %v1174, 1
      %v1355 = vsel %vm1314, %v1352, %v1354
      %v1356 = vrot.slane %v1175, 1
      %v1357 = vsel %vm1314, %v1354, %v1356
      %v1358 = vrot.slane %v1176, 1
      %v1359 = vsel %vm1314, %v1356, %v1358
      %v1360 = vrot.slane %v1177, 1
      %v1361 = vsel %vm1314, %v1358, %v1360
      %v1362 = vrot.slane %v1178, 1
      %v1363 = vsel %vm1314, %v1360, %v1362
      %v1364 = vrot.slane %v1179, 1
      %v1365 = vsel %vm1314, %v1362, %v1364
      %v1366 = vrot.slane %v1180, 1
      %v1367 = vsel %vm1314, %v1364, %v1366
      %v1368 = vrot.slane %v1181, 1
      %v1369 = vsel %vm1314, %v1366, %v1368
      %v1370 = vrot.slane %v1182, 1
      %v1371 = vsel %vm1314, %v1368, %v1370
      %v1372 = vrot.slane %v1183, 1
      %v1373 = vsel %vm1314, %v1370, %v1372
      %v1374 = vrot.slane %v1184, 1
      %v1375 = vsel %vm1314, %v1372, %v1374
      %v1376 = vrot.slane %v1185, 1
      %v1377 = vsel %vm1314, %v1374, %v1376
      %v1411 = vmul.f32 %v1315, 0.0
      %v1412 = vmul.f32 %v627, %v1317
      %v1413 = vmul.f32 %v628, %v1319
      %v1414 = vmul.f32 %v553, %v1321
      %v1415 = vmul.f32 %v554, %v1323
      %v1416 = vmul.f32 %v555, %v1325
      %v1417 = vmul.f32 %v556, %v1327
      %v1418 = vmul.f32 %v557, %v1329
      %v1419 = vmul.f32 %v558, %v1331
      %v1420 = vmul.f32 %v559, %v1333
      %v1421 = vmul.f32 %v560, %v1335
      %v1422 = vmul.f32 %v561, %v1337
      %v1423 = vmul.f32 %v562, %v1339
      %v1424 = vmul.f32 %v563, %v1341
      %v1425 = vmul.f32 %v564, %v1343
      %v1426 = vmul.f32 %v565, %v1345
      %v1427 = vmul.f32 %v566, %v1347
      %v1428 = vmul.f32 %v567, %v1349
      %v1429 = vmul.f32 %v568, %v1351
      %v1430 = vmul.f32 %v569, %v1353
      %v1431 = vmul.f32 %v570, %v1355
      %v1432 = vmul.f32 %v571, %v1357
      %v1433 = vmul.f32 %v572, %v1359
      %v1434 = vmul.f32 %v573, %v1361
      %v1435 = vmul.f32 %v574, %v1363
      %v1436 = vmul.f32 %v575, %v1365
      %v1437 = vmul.f32 %v576, %v1367
      %v1438 = vmul.f32 %v577, %v1369
      %v1439 = vmul.f32 %v578, %v1371
      %v1440 = vmul.f32 %v579, %v1373
      %v1441 = vmul.f32 %v580, %v1375
      %v1442 = vmul.f32 %v581, %v1377
      %v1443 = vmul.f32 %v582, %v1376
      %vm1476 = vcmask 1040384
      %v1477 = vrot.slane %v1250, 7
      %v1478 = vrot.slane %v1251, 7
      %v1479 = vsel %vm1476, %v1477, %v1478
      %v1480 = vrot.slane %v1252, 7
      %v1481 = vsel %vm1476, %v1478, %v1480
      %v1482 = vrot.slane %v1253, 7
      %v1483 = vsel %vm1476, %v1480, %v1482
      %v1484 = vrot.slane %v1254, 7
      %v1485 = vsel %vm1476, %v1482, %v1484
      %v1486 = vrot.slane %v1255, 7
      %v1487 = vsel %vm1476, %v1484, %v1486
      %v1488 = vrot.slane %v1256, 7
      %v1489 = vsel %vm1476, %v1486, %v1488
      %v1490 = vrot.slane %v1257, 7
      %v1491 = vsel %vm1476, %v1488, %v1490
      %v1492 = vrot.slane %v1258, 7
      %v1493 = vsel %vm1476, %v1490, %v1492
      %v1494 = vrot.slane %v1259, 7
      %v1495 = vsel %vm1476, %v1492, %v1494
      %v1496 = vrot.slane %v1260, 7
      %v1497 = vsel %vm1476, %v1494, %v1496
      %v1498 = vrot.slane %v1261, 7
      %v1499 = vsel %vm1476, %v1496, %v1498
      %v1500 = vrot.slane %v1262, 7
      %v1501 = vsel %vm1476, %v1498, %v1500
      %v1502 = vrot.slane %v1263, 7
      %v1503 = vsel %vm1476, %v1500, %v1502
      %v1504 = vrot.slane %v1264, 7
      %v1505 = vsel %vm1476, %v1502, %v1504
      %v1506 = vrot.slane %v1265, 7
      %v1507 = vsel %vm1476, %v1504, %v1506
      %v1508 = vrot.slane %v1266, 7
      %v1509 = vsel %vm1476, %v1506, %v1508
      %v1510 = vrot.slane %v1267, 7
      %v1511 = vsel %vm1476, %v1508, %v1510
      %v1512 = vrot.slane %v1268, 7
      %v1513 = vsel %vm1476, %v1510, %v1512
      %v1514 = vrot.slane %v1269, 7
      %v1515 = vsel %vm1476, %v1512, %v1514
      %v1516 = vrot.slane %v1270, 7
      %v1517 = vsel %vm1476, %v1514, %v1516
      %v1518 = vrot.slane %v1271, 7
      %v1519 = vsel %vm1476, %v1516, %v1518
      %v1520 = vrot.slane %v1272, 7
      %v1521 = vsel %vm1476, %v1518, %v1520
      %v1522 = vrot.slane %v1273, 7
      %v1523 = vsel %vm1476, %v1520, %v1522
      %v1524 = vrot.slane %v1274, 7
      %v1525 = vsel %vm1476, %v1522, %v1524
      %v1526 = vrot.slane %v1275, 7
      %v1527 = vsel %vm1476, %v1524, %v1526
      %v1528 = vrot.slane %v1276, 7
      %v1529 = vsel %vm1476, %v1526, %v1528
      %v1530 = vrot.slane %v1277, 7
      %v1531 = vsel %vm1476, %v1528, %v1530
      %v1532 = vrot.slane %v1278, 7
      %v1533 = vsel %vm1476, %v1530, %v1532
      %v1534 = vrot.slane %v1279, 7
      %v1535 = vsel %vm1476, %v1532, %v1534
      %v1536 = vrot.slane %v1280, 7
      %v1537 = vsel %vm1476, %v1534, %v1536
      %v1538 = vrot.slane %v1281, 7
      %v1539 = vsel %vm1476, %v1536, %v1538
      %v1573 = vmul.f32 %v627, %v1477
      %v1574 = vmul.f32 %v628, %v1479
      %v1575 = vmul.f32 %v553, %v1481
      %v1576 = vmul.f32 %v554, %v1483
      %v1577 = vmul.f32 %v555, %v1485
      %v1578 = vmul.f32 %v556, %v1487
      %v1579 = vmul.f32 %v557, %v1489
      %v1580 = vmul.f32 %v558, %v1491
      %v1581 = vmul.f32 %v559, %v1493
      %v1582 = vmul.f32 %v560, %v1495
      %v1583 = vmul.f32 %v561, %v1497
      %v1584 = vmul.f32 %v562, %v1499
      %v1585 = vmul.f32 %v563, %v1501
      %v1586 = vmul.f32 %v564, %v1503
      %v1587 = vmul.f32 %v565, %v1505
      %v1588 = vmul.f32 %v566, %v1507
      %v1589 = vmul.f32 %v567, %v1509
      %v1590 = vmul.f32 %v568, %v1511
      %v1591 = vmul.f32 %v569, %v1513
      %v1592 = vmul.f32 %v570, %v1515
      %v1593 = vmul.f32 %v571, %v1517
      %v1594 = vmul.f32 %v572, %v1519
      %v1595 = vmul.f32 %v573, %v1521
      %v1596 = vmul.f32 %v574, %v1523
      %v1597 = vmul.f32 %v575, %v1525
      %v1598 = vmul.f32 %v576, %v1527
      %v1599 = vmul.f32 %v577, %v1529
      %v1600 = vmul.f32 %v578, %v1531
      %v1601 = vmul.f32 %v579, %v1533
      %v1602 = vmul.f32 %v580, %v1535
      %v1603 = vmul.f32 %v581, %v1537
      %v1604 = vmul.f32 %v582, %v1539
      %v1605 = vmul.f32 %v583, %v1538
      %v1606 = vmul.f32 %v628, %v1315
      %v1607 = vmul.f32 %v553, %v1317
      %v1608 = vmul.f32 %v554, %v1319
      %v1609 = vmul.f32 %v555, %v1321
      %v1610 = vmul.f32 %v556, %v1323
      %v1611 = vmul.f32 %v557, %v1325
      %v1612 = vmul.f32 %v558, %v1327
      %v1613 = vmul.f32 %v559, %v1329
      %v1614 = vmul.f32 %v560, %v1331
      %v1615 = vmul.f32 %v561, %v1333
      %v1616 = vmul.f32 %v562, %v1335
      %v1617 = vmul.f32 %v563, %v1337
      %v1618 = vmul.f32 %v564, %v1339
      %v1619 = vmul.f32 %v565, %v1341
      %v1620 = vmul.f32 %v566, %v1343
      %v1621 = vmul.f32 %v567, %v1345
      %v1622 = vmul.f32 %v568, %v1347
      %v1623 = vmul.f32 %v569, %v1349
      %v1624 = vmul.f32 %v570, %v1351
      %v1625 = vmul.f32 %v571, %v1353
      %v1626 = vmul.f32 %v572, %v1355
      %v1627 = vmul.f32 %v573, %v1357
      %v1628 = vmul.f32 %v574, %v1359
      %v1629 = vmul.f32 %v575, %v1361
      %v1630 = vmul.f32 %v576, %v1363
      %v1631 = vmul.f32 %v577, %v1365
      %v1632 = vmul.f32 %v578, %v1367
      %v1633 = vmul.f32 %v579, %v1369
      %v1634 = vmul.f32 %v580, %v1371
      %v1635 = vmul.f32 %v581, %v1373
      %v1636 = vmul.f32 %v582, %v1375
      %v1637 = vmul.f32 %v583, %v1377
      %v1638 = vmul.f32 %v584, %v1376
      %v1639 = vmul.f32 %v553, %v1477
      %v1640 = vmul.f32 %v554, %v1479
      %v1641 = vmul.f32 %v555, %v1481
      %v1642 = vmul.f32 %v556, %v1483
      %v1643 = vmul.f32 %v557, %v1485
      %v1644 = vmul.f32 %v558, %v1487
      %v1645 = vmul.f32 %v559, %v1489
      %v1646 = vmul.f32 %v560, %v1491
      %v1647 = vmul.f32 %v561, %v1493
      %v1648 = vmul.f32 %v562, %v1495
      %v1649 = vmul.f32 %v563, %v1497
      %v1650 = vmul.f32 %v564, %v1499
      %v1651 = vmul.f32 %v565, %v1501
      %v1652 = vmul.f32 %v566, %v1503
      %v1653 = vmul.f32 %v567, %v1505
      %v1654 = vmul.f32 %v568, %v1507
      %v1655 = vmul.f32 %v569, %v1509
      %v1656 = vmul.f32 %v570, %v1511
      %v1657 = vmul.f32 %v571, %v1513
      %v1658 = vmul.f32 %v572, %v1515
      %v1659 = vmul.f32 %v573, %v1517
      %v1660 = vmul.f32 %v574, %v1519
      %v1661 = vmul.f32 %v575, %v1521
      %v1662 = vmul.f32 %v576, %v1523
      %v1663 = vmul.f32 %v577, %v1525
      %v1664 = vmul.f32 %v578, %v1527
      %v1665 = vmul.f32 %v579, %v1529
      %v1666 = vmul.f32 %v580, %v1531
      %v1667 = vmul.f32 %v581, %v1533
      %v1668 = vmul.f32 %v582, %v1535
      %v1669 = vmul.f32 %v583, %v1537
      %v1670 = vmul.f32 %v584, %v1539
      %v1671 = vmul.f32 %v671, %v1538
      %v1672 = vmul.f32 %v554, %v1315
      %v1673 = vmul.f32 %v555, %v1317
      %v1674 = vmul.f32 %v556, %v1319
      %v1675 = vmul.f32 %v557, %v1321
      %v1676 = vmul.f32 %v558, %v1323
      %v1677 = vmul.f32 %v559, %v1325
      %v1678 = vmul.f32 %v560, %v1327
      %v1679 = vmul.f32 %v561, %v1329
      %v1680 = vmul.f32 %v562, %v1331
      %v1681 = vmul.f32 %v563, %v1333
      %v1682 = vmul.f32 %v564, %v1335
      %v1683 = vmul.f32 %v565, %v1337
      %v1684 = vmul.f32 %v566, %v1339
      %v1685 = vmul.f32 %v567, %v1341
      %v1686 = vmul.f32 %v568, %v1343
      %v1687 = vmul.f32 %v569, %v1345
      %v1688 = vmul.f32 %v570, %v1347
      %v1689 = vmul.f32 %v571, %v1349
      %v1690 = vmul.f32 %v572, %v1351
      %v1691 = vmul.f32 %v573, %v1353
      %v1692 = vmul.f32 %v574, %v1355
      %v1693 = vmul.f32 %v575, %v1357
      %v1694 = vmul.f32 %v576, %v1359
      %v1695 = vmul.f32 %v577, %v1361
      %v1696 = vmul.f32 %v578, %v1363
      %v1697 = vmul.f32 %v579, %v1365
      %v1698 = vmul.f32 %v580, %v1367
      %v1699 = vmul.f32 %v581, %v1369
      %v1700 = vmul.f32 %v582, %v1371
      %v1701 = vmul.f32 %v583, %v1373
      %v1702 = vmul.f32 %v584, %v1375
      %v1703 = vmul.f32 %v671, %v1377
      %v1704 = vmul.f32 %v672, %v1376
      %v1705 = vmul.f32 %v555, %v1477
      %v1706 = vmul.f32 %v556, %v1479
      %v1707 = vmul.f32 %v557, %v1481
      %v1708 = vmul.f32 %v558, %v1483
      %v1709 = vmul.f32 %v559, %v1485
      %v1710 = vmul.f32 %v560, %v1487
      %v1711 = vmul.f32 %v561, %v1489
      %v1712 = vmul.f32 %v562, %v1491
      %v1713 = vmul.f32 %v563, %v1493
      %v1714 = vmul.f32 %v564, %v1495
      %v1715 = vmul.f32 %v565, %v1497
      %v1716 = vmul.f32 %v566, %v1499
      %v1717 = vmul.f32 %v567, %v1501
      %v1718 = vmul.f32 %v568, %v1503
      %v1719 = vmul.f32 %v569, %v1505
      %v1720 = vmul.f32 %v570, %v1507
      %v1721 = vmul.f32 %v571, %v1509
      %v1722 = vmul.f32 %v572, %v1511
      %v1723 = vmul.f32 %v573, %v1513
      %v1724 = vmul.f32 %v574, %v1515
      %v1725 = vmul.f32 %v575, %v1517
      %v1726 = vmul.f32 %v576, %v1519
      %v1727 = vmul.f32 %v577, %v1521
      %v1728 = vmul.f32 %v578, %v1523
      %v1729 = vmul.f32 %v579, %v1525
      %v1730 = vmul.f32 %v580, %v1527
      %v1731 = vmul.f32 %v581, %v1529
      %v1732 = vmul.f32 %v582, %v1531
      %v1733 = vmul.f32 %v583, %v1533
      %v1734 = vmul.f32 %v584, %v1535
      %v1735 = vmul.f32 %v671, %v1537
      %v1736 = vmul.f32 %v672, %v1539
      %v1737 = vmul.f32 %v1538, 0.0
      %v1770 = vrot.slane %v627, 1
      %v1771 = vrot.slane %v628, 1
      %v1772 = vsel %vm1314, %v1770, %v1771
      %v1773 = vrot.slane %v553, 1
      %v1774 = vsel %vm1314, %v1771, %v1773
      %v1775 = vrot.slane %v554, 1
      %v1776 = vsel %vm1314, %v1773, %v1775
      %v1777 = vrot.slane %v555, 1
      %v1778 = vsel %vm1314, %v1775, %v1777
      %v1779 = vrot.slane %v556, 1
      %v1780 = vsel %vm1314, %v1777, %v1779
      %v1781 = vrot.slane %v557, 1
      %v1782 = vsel %vm1314, %v1779, %v1781
      %v1783 = vrot.slane %v558, 1
      %v1784 = vsel %vm1314, %v1781, %v1783
      %v1785 = vrot.slane %v559, 1
      %v1786 = vsel %vm1314, %v1783, %v1785
      %v1787 = vrot.slane %v560, 1
      %v1788 = vsel %vm1314, %v1785, %v1787
      %v1789 = vrot.slane %v561, 1
      %v1790 = vsel %vm1314, %v1787, %v1789
      %v1791 = vrot.slane %v562, 1
      %v1792 = vsel %vm1314, %v1789, %v1791
      %v1793 = vrot.slane %v563, 1
      %v1794 = vsel %vm1314, %v1791, %v1793
      %v1795 = vrot.slane %v564, 1
      %v1796 = vsel %vm1314, %v1793, %v1795
      %v1797 = vrot.slane %v565, 1
      %v1798 = vsel %vm1314, %v1795, %v1797
      %v1799 = vrot.slane %v566, 1
      %v1800 = vsel %vm1314, %v1797, %v1799
      %v1801 = vrot.slane %v567, 1
      %v1802 = vsel %vm1314, %v1799, %v1801
      %v1803 = vrot.slane %v568, 1
      %v1804 = vsel %vm1314, %v1801, %v1803
      %v1805 = vrot.slane %v569, 1
      %v1806 = vsel %vm1314, %v1803, %v1805
      %v1807 = vrot.slane %v570, 1
      %v1808 = vsel %vm1314, %v1805, %v1807
      %v1809 = vrot.slane %v571, 1
      %v1810 = vsel %vm1314, %v1807, %v1809
      %v1811 = vrot.slane %v572, 1
      %v1812 = vsel %vm1314, %v1809, %v1811
      %v1813 = vrot.slane %v573, 1
      %v1814 = vsel %vm1314, %v1811, %v1813
      %v1815 = vrot.slane %v574, 1
      %v1816 = vsel %vm1314, %v1813, %v1815
      %v1817 = vrot.slane %v575, 1
      %v1818 = vsel %vm1314, %v1815, %v1817
      %v1819 = vrot.slane %v576, 1
      %v1820 = vsel %vm1314, %v1817, %v1819
      %v1821 = vrot.slane %v577, 1
      %v1822 = vsel %vm1314, %v1819, %v1821
      %v1823 = vrot.slane %v578, 1
      %v1824 = vsel %vm1314, %v1821, %v1823
      %v1825 = vrot.slane %v579, 1
      %v1826 = vsel %vm1314, %v1823, %v1825
      %v1827 = vrot.slane %v580, 1
      %v1828 = vsel %vm1314, %v1825, %v1827
      %v1829 = vrot.slane %v581, 1
      %v1830 = vsel %vm1314, %v1827, %v1829
      %v1831 = vrot.slane %v582, 1
      %v1832 = vsel %vm1314, %v1829, %v1831
      %1833 = vrot.lane.b32.xlu0 %v1770, 4
      %v1834 = vpop.permute.xlu0 %1833
      %1835 = vrot.lane.b32.xlu0 %v1772, 4
      %v1836 = vpop.permute.xlu0 %1835
      %1837 = vrot.lane.b32.xlu0 %v1774, 4
      %v1838 = vpop.permute.xlu0 %1837
      %1839 = vrot.lane.b32.xlu0 %v1776, 4
      %v1840 = vpop.permute.xlu0 %1839
      %1841 = vrot.lane.b32.xlu0 %v1778, 4
      %v1842 = vpop.permute.xlu0 %1841
      %1843 = vrot.lane.b32.xlu0 %v1780, 4
      %v1844 = vpop.permute.xlu0 %1843
      %1845 = vrot.lane.b32.xlu0 %v1782, 4
      %v1846 = vpop.permute.xlu0 %1845
      %1847 = vrot.lane.b32.xlu0 %v1784, 4
      %v1848 = vpop.permute.xlu0 %1847
      %1849 = vrot.lane.b32.xlu0 %v1786, 4
      %v1850 = vpop.permute.xlu0 %1849
      %1851 = vrot.lane.b32.xlu0 %v1788, 4
      %v1852 = vpop.permute.xlu0 %1851
      %1853 = vrot.lane.b32.xlu0 %v1790, 4
      %v1854 = vpop.permute.xlu0 %1853
      %1855 = vrot.lane.b32.xlu0 %v1792, 4
      %v1856 = vpop.permute.xlu0 %1855
      %1857 = vrot.lane.b32.xlu0 %v1794, 4
      %v1858 = vpop.permute.xlu0 %1857
      %1859 = vrot.lane.b32.xlu0 %v1796, 4
      %v1860 = vpop.permute.xlu0 %1859
      %1861 = vrot.lane.b32.xlu0 %v1798, 4
      %v1862 = vpop.permute.xlu0 %1861
      %1863 = vrot.lane.b32.xlu0 %v1800, 4
      %v1864 = vpop.permute.xlu0 %1863
      %1865 = vrot.lane.b32.xlu0 %v1802, 4
      %v1866 = vpop.permute.xlu0 %1865
      %1867 = vrot.lane.b32.xlu0 %v1804, 4
      %v1868 = vpop.permute.xlu0 %1867
      %1869 = vrot.lane.b32.xlu0 %v1806, 4
      %v1870 = vpop.permute.xlu0 %1869
      %1871 = vrot.lane.b32.xlu0 %v1808, 4
      %v1872 = vpop.permute.xlu0 %1871
      %1873 = vrot.lane.b32.xlu0 %v1810, 4
      %v1874 = vpop.permute.xlu0 %1873
      %1875 = vrot.lane.b32.xlu0 %v1812, 4
      %v1876 = vpop.permute.xlu0 %1875
      %1877 = vrot.lane.b32.xlu0 %v1814, 4
      %v1878 = vpop.permute.xlu0 %1877
      %1879 = vrot.lane.b32.xlu0 %v1816, 4
      %v1880 = vpop.permute.xlu0 %1879
      %1881 = vrot.lane.b32.xlu0 %v1818, 4
      %v1882 = vpop.permute.xlu0 %1881
      %1883 = vrot.lane.b32.xlu0 %v1820, 4
      %v1884 = vpop.permute.xlu0 %1883
      %1885 = vrot.lane.b32.xlu0 %v1822, 4
      %v1886 = vpop.permute.xlu0 %1885
      %1887 = vrot.lane.b32.xlu0 %v1824, 4
      %v1888 = vpop.permute.xlu0 %1887
      %1889 = vrot.lane.b32.xlu0 %v1826, 4
      %v1890 = vpop.permute.xlu0 %1889
      %1891 = vrot.lane.b32.xlu0 %v1828, 4
      %v1892 = vpop.permute.xlu0 %1891
      %1893 = vrot.lane.b32.xlu0 %v1830, 4
      %v1894 = vpop.permute.xlu0 %1893
      %1895 = vrot.lane.b32.xlu0 %v1832, 4
      %v1896 = vpop.permute.xlu0 %1895
      %1897 = vrot.lane.b32.xlu0 %v1831, 4
      %v1898 = vpop.permute.xlu0 %1897
      %vm1965 = vcmask 1045504
      %v1966 = vrot.slane %v1573, 2
      %v1967 = vrot.slane %v1574, 2
      %v1968 = vsel %vm1965, %v1966, %v1967
      %v1969 = vrot.slane %v1575, 2
      %v1970 = vsel %vm1965, %v1967, %v1969
      %v1971 = vrot.slane %v1576, 2
      %v1972 = vsel %vm1965, %v1969, %v1971
      %v1973 = vrot.slane %v1577, 2
      %v1974 = vsel %vm1965, %v1971, %v1973
      %v1975 = vrot.slane %v1578, 2
      %v1976 = vsel %vm1965, %v1973, %v1975
      %v1977 = vrot.slane %v1579, 2
      %v1978 = vsel %vm1965, %v1975, %v1977
      %v1979 = vrot.slane %v1580, 2
      %v1980 = vsel %vm1965, %v1977, %v1979
      %v1981 = vrot.slane %v1581, 2
      %v1982 = vsel %vm1965, %v1979, %v1981
      %v1983 = vrot.slane %v1582, 2
      %v1984 = vsel %vm1965, %v1981, %v1983
      %v1985 = vrot.slane %v1583, 2
      %v1986 = vsel %vm1965, %v1983, %v1985
      %v1987 = vrot.slane %v1584, 2
      %v1988 = vsel %vm1965, %v1985, %v1987
      %v1989 = vrot.slane %v1585, 2
      %v1990 = vsel %vm1965, %v1987, %v1989
      %v1991 = vrot.slane %v1586, 2
      %v1992 = vsel %vm1965, %v1989, %v1991
      %v1993 = vrot.slane %v1587, 2
      %v1994 = vsel %vm1965, %v1991, %v1993
      %v1995 = vrot.slane %v1588, 2
      %v1996 = vsel %vm1965, %v1993, %v1995
      %v1997 = vrot.slane %v1589, 2
      %v1998 = vsel %vm1965, %v1995, %v1997
      %v1999 = vrot.slane %v1590, 2
      %v2000 = vsel %vm1965, %v1997, %v1999
      %v2001 = vrot.slane %v1591, 2
      %v2002 = vsel %vm1965, %v1999, %v2001
      %v2003 = vrot.slane %v1592, 2
      %v2004 = vsel %vm1965, %v2001, %v2003
      %v2005 = vrot.slane %v1593, 2
      %v2006 = vsel %vm1965, %v2003, %v2005
      %v2007 = vrot.slane %v1594, 2
      %v2008 = vsel %vm1965, %v2005, %v2007
      %v2009 = vrot.slane %v1595, 2
      %v2010 = vsel %vm1965, %v2007, %v2009
      %v2011 = vrot.slane %v1596, 2
      %v2012 = vsel %vm1965, %v2009, %v2011
      %v2013 = vrot.slane %v1597, 2
      %v2014 = vsel %vm1965, %v2011, %v2013
      %v2015 = vrot.slane %v1598, 2
      %v2016 = vsel %vm1965, %v2013, %v2015
      %v2017 = vrot.slane %v1599, 2
      %v2018 = vsel %vm1965, %v2015, %v2017
      %v2019 = vrot.slane %v1600, 2
      %v2020 = vsel %vm1965, %v2017, %v2019
      %v2021 = vrot.slane %v1601, 2
      %v2022 = vsel %vm1965, %v2019, %v2021
      %v2023 = vrot.slane %v1602, 2
      %v2024 = vsel %vm1965, %v2021, %v2023
      %v2025 = vrot.slane %v1603, 2
      %v2026 = vsel %vm1965, %v2023, %v2025
      %v2027 = vrot.slane %v1604, 2
      %v2028 = vsel %vm1965, %v2025, %v2027
      %v2029 = vrot.slane %v1605, 2
      %v2030 = vsel %vm1965, %v2027, %v2029
      %2031 = vrot.lane.b32.xlu0 %v1966, 8
      %v2032 = vpop.permute.xlu0 %2031
      %2033 = vrot.lane.b32.xlu0 %v1968, 8
      %v2034 = vpop.permute.xlu0 %2033
      %2035 = vrot.lane.b32.xlu0 %v1970, 8
      %v2036 = vpop.permute.xlu0 %2035
      %2037 = vrot.lane.b32.xlu0 %v1972, 8
      %v2038 = vpop.permute.xlu0 %2037
      %2039 = vrot.lane.b32.xlu0 %v1974, 8
      %v2040 = vpop.permute.xlu0 %2039
      %2041 = vrot.lane.b32.xlu0 %v1976, 8
      %v2042 = vpop.permute.xlu0 %2041
      %2043 = vrot.lane.b32.xlu0 %v1978, 8
      %v2044 = vpop.permute.xlu0 %2043
      %2045 = vrot.lane.b32.xlu0 %v1980, 8
      %v2046 = vpop.permute.xlu0 %2045
      %2047 = vrot.lane.b32.xlu0 %v1982, 8
      %v2048 = vpop.permute.xlu0 %2047
      %2049 = vrot.lane.b32.xlu0 %v1984, 8
      %v2050 = vpop.permute.xlu0 %2049
      %2051 = vrot.lane.b32.xlu0 %v1986, 8
      %v2052 = vpop.permute.xlu0 %2051
      %2053 = vrot.lane.b32.xlu0 %v1988, 8
      %v2054 = vpop.permute.xlu0 %2053
      %2055 = vrot.lane.b32.xlu0 %v1990, 8
      %v2056 = vpop.permute.xlu0 %2055
      %2057 = vrot.lane.b32.xlu0 %v1992, 8
      %v2058 = vpop.permute.xlu0 %2057
      %2059 = vrot.lane.b32.xlu0 %v1994, 8
      %v2060 = vpop.permute.xlu0 %2059
      %2061 = vrot.lane.b32.xlu0 %v1996, 8
      %v2062 = vpop.permute.xlu0 %2061
      %2063 = vrot.lane.b32.xlu0 %v1998, 8
      %v2064 = vpop.permute.xlu0 %2063
      %2065 = vrot.lane.b32.xlu0 %v2000, 8
      %v2066 = vpop.permute.xlu0 %2065
      %2067 = vrot.lane.b32.xlu0 %v2002, 8
      %v2068 = vpop.permute.xlu0 %2067
      %2069 = vrot.lane.b32.xlu0 %v2004, 8
      %v2070 = vpop.permute.xlu0 %2069
      %2071 = vrot.lane.b32.xlu0 %v2006, 8
      %v2072 = vpop.permute.xlu0 %2071
      %2073 = vrot.lane.b32.xlu0 %v2008, 8
      %v2074 = vpop.permute.xlu0 %2073
      %2075 = vrot.lane.b32.xlu0 %v2010, 8
      %v2076 = vpop.permute.xlu0 %2075
      %2077 = vrot.lane.b32.xlu0 %v2012, 8
      %v2078 = vpop.permute.xlu0 %2077
      %2079 = vrot.lane.b32.xlu0 %v2014, 8
      %v2080 = vpop.permute.xlu0 %2079
      %2081 = vrot.lane.b32.xlu0 %v2016, 8
      %v2082 = vpop.permute.xlu0 %2081
      %2083 = vrot.lane.b32.xlu0 %v2018, 8
      %v2084 = vpop.permute.xlu0 %2083
      %2085 = vrot.lane.b32.xlu0 %v2020, 8
      %v2086 = vpop.permute.xlu0 %2085
      %2087 = vrot.lane.b32.xlu0 %v2022, 8
      %v2088 = vpop.permute.xlu0 %2087
      %2089 = vrot.lane.b32.xlu0 %v2024, 8
      %v2090 = vpop.permute.xlu0 %2089
      %2091 = vrot.lane.b32.xlu0 %v2026, 8
      %v2092 = vpop.permute.xlu0 %2091
      %2093 = vrot.lane.b32.xlu0 %v2028, 8
      %v2094 = vpop.permute.xlu0 %2093
      %2095 = vrot.lane.b32.xlu0 %v2030, 8
      %v2096 = vpop.permute.xlu0 %2095
      %2163 = vrot.lane.b32.xlu0 %v1606, 12
      %v2164 = vpop.permute.xlu0 %2163
      %2165 = vrot.lane.b32.xlu0 %v1607, 12
      %v2166 = vpop.permute.xlu0 %2165
      %2167 = vrot.lane.b32.xlu0 %v1608, 12
      %v2168 = vpop.permute.xlu0 %2167
      %2169 = vrot.lane.b32.xlu0 %v1609, 12
      %v2170 = vpop.permute.xlu0 %2169
      %2171 = vrot.lane.b32.xlu0 %v1610, 12
      %v2172 = vpop.permute.xlu0 %2171
      %2173 = vrot.lane.b32.xlu0 %v1611, 12
      %v2174 = vpop.permute.xlu0 %2173
      %2175 = vrot.lane.b32.xlu0 %v1612, 12
      %v2176 = vpop.permute.xlu0 %2175
      %2177 = vrot.lane.b32.xlu0 %v1613, 12
      %v2178 = vpop.permute.xlu0 %2177
      %2179 = vrot.lane.b32.xlu0 %v1614, 12
      %v2180 = vpop.permute.xlu0 %2179
      %2181 = vrot.lane.b32.xlu0 %v1615, 12
      %v2182 = vpop.permute.xlu0 %2181
      %2183 = vrot.lane.b32.xlu0 %v1616, 12
      %v2184 = vpop.permute.xlu0 %2183
      %2185 = vrot.lane.b32.xlu0 %v1617, 12
      %v2186 = vpop.permute.xlu0 %2185
      %2187 = vrot.lane.b32.xlu0 %v1618, 12
      %v2188 = vpop.permute.xlu0 %2187
      %2189 = vrot.lane.b32.xlu0 %v1619, 12
      %v2190 = vpop.permute.xlu0 %2189
      %2191 = vrot.lane.b32.xlu0 %v1620, 12
      %v2192 = vpop.permute.xlu0 %2191
      %2193 = vrot.lane.b32.xlu0 %v1621, 12
      %v2194 = vpop.permute.xlu0 %2193
      %2195 = vrot.lane.b32.xlu0 %v1622, 12
      %v2196 = vpop.permute.xlu0 %2195
      %2197 = vrot.lane.b32.xlu0 %v1623, 12
      %v2198 = vpop.permute.xlu0 %2197
      %2199 = vrot.lane.b32.xlu0 %v1624, 12
      %v2200 = vpop.permute.xlu0 %2199
      %2201 = vrot.lane.b32.xlu0 %v1625, 12
      %v2202 = vpop.permute.xlu0 %2201
      %2203 = vrot.lane.b32.xlu0 %v1626, 12
      %v2204 = vpop.permute.xlu0 %2203
      %2205 = vrot.lane.b32.xlu0 %v1627, 12
      %v2206 = vpop.permute.xlu0 %2205
      %2207 = vrot.lane.b32.xlu0 %v1628, 12
      %v2208 = vpop.permute.xlu0 %2207
      %2209 = vrot.lane.b32.xlu0 %v1629, 12
      %v2210 = vpop.permute.xlu0 %2209
      %2211 = vrot.lane.b32.xlu0 %v1630, 12
      %v2212 = vpop.permute.xlu0 %2211
      %2213 = vrot.lane.b32.xlu0 %v1631, 12
      %v2214 = vpop.permute.xlu0 %2213
      %2215 = vrot.lane.b32.xlu0 %v1632, 12
      %v2216 = vpop.permute.xlu0 %2215
      %2217 = vrot.lane.b32.xlu0 %v1633, 12
      %v2218 = vpop.permute.xlu0 %2217
      %2219 = vrot.lane.b32.xlu0 %v1634, 12
      %v2220 = vpop.permute.xlu0 %2219
      %2221 = vrot.lane.b32.xlu0 %v1635, 12
      %v2222 = vpop.permute.xlu0 %2221
      %2223 = vrot.lane.b32.xlu0 %v1636, 12
      %v2224 = vpop.permute.xlu0 %2223
      %2225 = vrot.lane.b32.xlu0 %v1637, 12
      %v2226 = vpop.permute.xlu0 %2225
      %2227 = vrot.lane.b32.xlu0 %v1638, 12
      %v2228 = vpop.permute.xlu0 %2227
      %v2264 = vrot.slane %v583, 1
      %v2265 = vsel %vm1314, %v1831, %v2264
      %v2266 = vrot.slane %v584, 1
      %v2267 = vsel %vm1314, %v2264, %v2266
      %2268 = vrot.lane.b32.xlu0 %v1773, 16
      %v2269 = vpop.permute.xlu0 %2268
      %2270 = vrot.lane.b32.xlu0 %v1776, 16
      %v2271 = vpop.permute.xlu0 %2270
      %2272 = vrot.lane.b32.xlu0 %v1778, 16
      %v2273 = vpop.permute.xlu0 %2272
      %2274 = vrot.lane.b32.xlu0 %v1780, 16
      %v2275 = vpop.permute.xlu0 %2274
      %2276 = vrot.lane.b32.xlu0 %v1782, 16
      %v2277 = vpop.permute.xlu0 %2276
      %2278 = vrot.lane.b32.xlu0 %v1784, 16
      %v2279 = vpop.permute.xlu0 %2278
      %2280 = vrot.lane.b32.xlu0 %v1786, 16
      %v2281 = vpop.permute.xlu0 %2280
      %2282 = vrot.lane.b32.xlu0 %v1788, 16
      %v2283 = vpop.permute.xlu0 %2282
      %2284 = vrot.lane.b32.xlu0 %v1790, 16
      %v2285 = vpop.permute.xlu0 %2284
      %2286 = vrot.lane.b32.xlu0 %v1792, 16
      %v2287 = vpop.permute.xlu0 %2286
      %2288 = vrot.lane.b32.xlu0 %v1794, 16
      %v2289 = vpop.permute.xlu0 %2288
      %2290 = vrot.lane.b32.xlu0 %v1796, 16
      %v2291 = vpop.permute.xlu0 %2290
      %2292 = vrot.lane.b32.xlu0 %v1798, 16
      %v2293 = vpop.permute.xlu0 %2292
      %2294 = vrot.lane.b32.xlu0 %v1800, 16
      %v2295 = vpop.permute.xlu0 %2294
      %2296 = vrot.lane.b32.xlu0 %v1802, 16
      %v2297 = vpop.permute.xlu0 %2296
      %2298 = vrot.lane.b32.xlu0 %v1804, 16
      %v2299 = vpop.permute.xlu0 %2298
      %2300 = vrot.lane.b32.xlu0 %v1806, 16
      %v2301 = vpop.permute.xlu0 %2300
      %2302 = vrot.lane.b32.xlu0 %v1808, 16
      %v2303 = vpop.permute.xlu0 %2302
      %2304 = vrot.lane.b32.xlu0 %v1810, 16
      %v2305 = vpop.permute.xlu0 %2304
      %2306 = vrot.lane.b32.xlu0 %v1812, 16
      %v2307 = vpop.permute.xlu0 %2306
      %2308 = vrot.lane.b32.xlu0 %v1814, 16
      %v2309 = vpop.permute.xlu0 %2308
      %2310 = vrot.lane.b32.xlu0 %v1816, 16
      %v2311 = vpop.permute.xlu0 %2310
      %2312 = vrot.lane.b32.xlu0 %v1818, 16
      %v2313 = vpop.permute.xlu0 %2312
      %2314 = vrot.lane.b32.xlu0 %v1820, 16
      %v2315 = vpop.permute.xlu0 %2314
      %2316 = vrot.lane.b32.xlu0 %v1822, 16
      %v2317 = vpop.permute.xlu0 %2316
      %2318 = vrot.lane.b32.xlu0 %v1824, 16
      %v2319 = vpop.permute.xlu0 %2318
      %2320 = vrot.lane.b32.xlu0 %v1826, 16
      %v2321 = vpop.permute.xlu0 %2320
      %2322 = vrot.lane.b32.xlu0 %v1828, 16
      %v2323 = vpop.permute.xlu0 %2322
      %2324 = vrot.lane.b32.xlu0 %v1830, 16
      %v2325 = vpop.permute.xlu0 %2324
      %2326 = vrot.lane.b32.xlu0 %v1832, 16
      %v2327 = vpop.permute.xlu0 %2326
      %2328 = vrot.lane.b32.xlu0 %v2265, 16
      %v2329 = vpop.permute.xlu0 %2328
      %2330 = vrot.lane.b32.xlu0 %v2267, 16
      %v2331 = vpop.permute.xlu0 %2330
      %2332 = vrot.lane.b32.xlu0 %v2266, 16
      %v2333 = vpop.permute.xlu0 %2332
      %v2400 = vrot.slane %v1639, 2
      %v2401 = vrot.slane %v1640, 2
      %v2402 = vsel %vm1965, %v2400, %v2401
      %v2403 = vrot.slane %v1641, 2
      %v2404 = vsel %vm1965, %v2401, %v2403
      %v2405 = vrot.slane %v1642, 2
      %v2406 = vsel %vm1965, %v2403, %v2405
      %v2407 = vrot.slane %v1643, 2
      %v2408 = vsel %vm1965, %v2405, %v2407
      %v2409 = vrot.slane %v1644, 2
      %v2410 = vsel %vm1965, %v2407, %v2409
      %v2411 = vrot.slane %v1645, 2
      %v2412 = vsel %vm1965, %v2409, %v2411
      %v2413 = vrot.slane %v1646, 2
      %v2414 = vsel %vm1965, %v2411, %v2413
      %v2415 = vrot.slane %v1647, 2
      %v2416 = vsel %vm1965, %v2413, %v2415
      %v2417 = vrot.slane %v1648, 2
      %v2418 = vsel %vm1965, %v2415, %v2417
      %v2419 = vrot.slane %v1649, 2
      %v2420 = vsel %vm1965, %v2417, %v2419
      %v2421 = vrot.slane %v1650, 2
      %v2422 = vsel %vm1965, %v2419, %v2421
      %v2423 = vrot.slane %v1651, 2
      %v2424 = vsel %vm1965, %v2421, %v2423
      %v2425 = vrot.slane %v1652, 2
      %v2426 = vsel %vm1965, %v2423, %v2425
      %v2427 = vrot.slane %v1653, 2
      %v2428 = vsel %vm1965, %v2425, %v2427
      %v2429 = vrot.slane %v1654, 2
      %v2430 = vsel %vm1965, %v2427, %v2429
      %v2431 = vrot.slane %v1655, 2
      %v2432 = vsel %vm1965, %v2429, %v2431
      %v2433 = vrot.slane %v1656, 2
      %v2434 = vsel %vm1965, %v2431, %v2433
      %v2435 = vrot.slane %v1657, 2
      %v2436 = vsel %vm1965, %v2433, %v2435
      %v2437 = vrot.slane %v1658, 2
      %v2438 = vsel %vm1965, %v2435, %v2437
      %v2439 = vrot.slane %v1659, 2
      %v2440 = vsel %vm1965, %v2437, %v2439
      %v2441 = vrot.slane %v1660, 2
      %v2442 = vsel %vm1965, %v2439, %v2441
      %v2443 = vrot.slane %v1661, 2
      %v2444 = vsel %vm1965, %v2441, %v2443
      %v2445 = vrot.slane %v1662, 2
      %v2446 = vsel %vm1965, %v2443, %v2445
      %v2447 = vrot.slane %v1663, 2
      %v2448 = vsel %vm1965, %v2445, %v2447
      %v2449 = vrot.slane %v1664, 2
      %v2450 = vsel %vm1965, %v2447, %v2449
      %v2451 = vrot.slane %v1665, 2
      %v2452 = vsel %vm1965, %v2449, %v2451
      %v2453 = vrot.slane %v1666, 2
      %v2454 = vsel %vm1965, %v2451, %v2453
      %v2455 = vrot.slane %v1667, 2
      %v2456 = vsel %vm1965, %v2453, %v2455
      %v2457 = vrot.slane %v1668, 2
      %v2458 = vsel %vm1965, %v2455, %v2457
      %v2459 = vrot.slane %v1669, 2
      %v2460 = vsel %vm1965, %v2457, %v2459
      %v2461 = vrot.slane %v1670, 2
      %v2462 = vsel %vm1965, %v2459, %v2461
      %v2463 = vrot.slane %v1671, 2
      %v2464 = vsel %vm1965, %v2461, %v2463
      %2465 = vrot.lane.b32.xlu0 %v2400, 20
      %v2466 = vpop.permute.xlu0 %2465
      %2467 = vrot.lane.b32.xlu0 %v2402, 20
      %v2468 = vpop.permute.xlu0 %2467
      %2469 = vrot.lane.b32.xlu0 %v2404, 20
      %v2470 = vpop.permute.xlu0 %2469
      %2471 = vrot.lane.b32.xlu0 %v2406, 20
      %v2472 = vpop.permute.xlu0 %2471
      %2473 = vrot.lane.b32.xlu0 %v2408, 20
      %v2474 = vpop.permute.xlu0 %2473
      %2475 = vrot.lane.b32.xlu0 %v2410, 20
      %v2476 = vpop.permute.xlu0 %2475
      %2477 = vrot.lane.b32.xlu0 %v2412, 20
      %v2478 = vpop.permute.xlu0 %2477
      %2479 = vrot.lane.b32.xlu0 %v2414, 20
      %v2480 = vpop.permute.xlu0 %2479
      %2481 = vrot.lane.b32.xlu0 %v2416, 20
      %v2482 = vpop.permute.xlu0 %2481
      %2483 = vrot.lane.b32.xlu0 %v2418, 20
      %v2484 = vpop.permute.xlu0 %2483
      %2485 = vrot.lane.b32.xlu0 %v2420, 20
      %v2486 = vpop.permute.xlu0 %2485
      %2487 = vrot.lane.b32.xlu0 %v2422, 20
      %v2488 = vpop.permute.xlu0 %2487
      %2489 = vrot.lane.b32.xlu0 %v2424, 20
      %v2490 = vpop.permute.xlu0 %2489
      %2491 = vrot.lane.b32.xlu0 %v2426, 20
      %v2492 = vpop.permute.xlu0 %2491
      %2493 = vrot.lane.b32.xlu0 %v2428, 20
      %v2494 = vpop.permute.xlu0 %2493
      %2495 = vrot.lane.b32.xlu0 %v2430, 20
      %v2496 = vpop.permute.xlu0 %2495
      %2497 = vrot.lane.b32.xlu0 %v2432, 20
      %v2498 = vpop.permute.xlu0 %2497
      %2499 = vrot.lane.b32.xlu0 %v2434, 20
      %v2500 = vpop.permute.xlu0 %2499
      %2501 = vrot.lane.b32.xlu0 %v2436, 20
      %v2502 = vpop.permute.xlu0 %2501
      %2503 = vrot.lane.b32.xlu0 %v2438, 20
      %v2504 = vpop.permute.xlu0 %2503
      %2505 = vrot.lane.b32.xlu0 %v2440, 20
      %v2506 = vpop.permute.xlu0 %2505
      %2507 = vrot.lane.b32.xlu0 %v2442, 20
      %v2508 = vpop.permute.xlu0 %2507
      %2509 = vrot.lane.b32.xlu0 %v2444, 20
      %v2510 = vpop.permute.xlu0 %2509
      %2511 = vrot.lane.b32.xlu0 %v2446, 20
      %v2512 = vpop.permute.xlu0 %2511
      %2513 = vrot.lane.b32.xlu0 %v2448, 20
      %v2514 = vpop.permute.xlu0 %2513
      %2515 = vrot.lane.b32.xlu0 %v2450, 20
      %v2516 = vpop.permute.xlu0 %2515
      %2517 = vrot.lane.b32.xlu0 %v2452, 20
      %v2518 = vpop.permute.xlu0 %2517
      %2519 = vrot.lane.b32.xlu0 %v2454, 20
      %v2520 = vpop.permute.xlu0 %2519
      %2521 = vrot.lane.b32.xlu0 %v2456, 20
      %v2522 = vpop.permute.xlu0 %2521
      %2523 = vrot.lane.b32.xlu0 %v2458, 20
      %v2524 = vpop.permute.xlu0 %2523
      %2525 = vrot.lane.b32.xlu0 %v2460, 20
      %v2526 = vpop.permute.xlu0 %2525
      %2527 = vrot.lane.b32.xlu0 %v2462, 20
      %v2528 = vpop.permute.xlu0 %2527
      %2529 = vrot.lane.b32.xlu0 %v2464, 20
      %v2530 = vpop.permute.xlu0 %2529
      %2597 = vrot.lane.b32.xlu0 %v1672, 24
      %v2598 = vpop.permute.xlu0 %2597
      %2599 = vrot.lane.b32.xlu0 %v1673, 24
      %v2600 = vpop.permute.xlu0 %2599
      %2601 = vrot.lane.b32.xlu0 %v1674, 24
      %v2602 = vpop.permute.xlu0 %2601
      %2603 = vrot.lane.b32.xlu0 %v1675, 24
      %v2604 = vpop.permute.xlu0 %2603
      %2605 = vrot.lane.b32.xlu0 %v1676, 24
      %v2606 = vpop.permute.xlu0 %2605
      %2607 = vrot.lane.b32.xlu0 %v1677, 24
      %v2608 = vpop.permute.xlu0 %2607
      %2609 = vrot.lane.b32.xlu0 %v1678, 24
      %v2610 = vpop.permute.xlu0 %2609
      %2611 = vrot.lane.b32.xlu0 %v1679, 24
      %v2612 = vpop.permute.xlu0 %2611
      %2613 = vrot.lane.b32.xlu0 %v1680, 24
      %v2614 = vpop.permute.xlu0 %2613
      %2615 = vrot.lane.b32.xlu0 %v1681, 24
      %v2616 = vpop.permute.xlu0 %2615
      %2617 = vrot.lane.b32.xlu0 %v1682, 24
      %v2618 = vpop.permute.xlu0 %2617
      %2619 = vrot.lane.b32.xlu0 %v1683, 24
      %v2620 = vpop.permute.xlu0 %2619
      %2621 = vrot.lane.b32.xlu0 %v1684, 24
      %v2622 = vpop.permute.xlu0 %2621
      %2623 = vrot.lane.b32.xlu0 %v1685, 24
      %v2624 = vpop.permute.xlu0 %2623
      %2625 = vrot.lane.b32.xlu0 %v1686, 24
      %v2626 = vpop.permute.xlu0 %2625
      %2627 = vrot.lane.b32.xlu0 %v1687, 24
      %v2628 = vpop.permute.xlu0 %2627
      %2629 = vrot.lane.b32.xlu0 %v1688, 24
      %v2630 = vpop.permute.xlu0 %2629
      %2631 = vrot.lane.b32.xlu0 %v1689, 24
      %v2632 = vpop.permute.xlu0 %2631
      %2633 = vrot.lane.b32.xlu0 %v1690, 24
      %v2634 = vpop.permute.xlu0 %2633
      %2635 = vrot.lane.b32.xlu0 %v1691, 24
      %v2636 = vpop.permute.xlu0 %2635
      %2637 = vrot.lane.b32.xlu0 %v1692, 24
      %v2638 = vpop.permute.xlu0 %2637
      %2639 = vrot.lane.b32.xlu0 %v1693, 24
      %v2640 = vpop.permute.xlu0 %2639
      %2641 = vrot.lane.b32.xlu0 %v1694, 24
      %v2642 = vpop.permute.xlu0 %2641
      %2643 = vrot.lane.b32.xlu0 %v1695, 24
      %v2644 = vpop.permute.xlu0 %2643
      %2645 = vrot.lane.b32.xlu0 %v1696, 24
      %v2646 = vpop.permute.xlu0 %2645
      %2647 = vrot.lane.b32.xlu0 %v1697, 24
      %v2648 = vpop.permute.xlu0 %2647
      %2649 = vrot.lane.b32.xlu0 %v1698, 24
      %v2650 = vpop.permute.xlu0 %2649
      %2651 = vrot.lane.b32.xlu0 %v1699, 24
      %v2652 = vpop.permute.xlu0 %2651
      %2653 = vrot.lane.b32.xlu0 %v1700, 24
      %v2654 = vpop.permute.xlu0 %2653
      %2655 = vrot.lane.b32.xlu0 %v1701, 24
      %v2656 = vpop.permute.xlu0 %2655
      %2657 = vrot.lane.b32.xlu0 %v1702, 24
      %v2658 = vpop.permute.xlu0 %2657
      %2659 = vrot.lane.b32.xlu0 %v1703, 24
      %v2660 = vpop.permute.xlu0 %2659
      %2661 = vrot.lane.b32.xlu0 %v1704, 24
      %v2662 = vpop.permute.xlu0 %2661
      %v2698 = vrot.slane %v671, 1
      %v2699 = vsel %vm1314, %v2266, %v2698
      %v2700 = vrot.slane %v672, 1
      %v2701 = vsel %vm1314, %v2698, %v2700
      %2702 = vrot.lane.b32.xlu0 %v1777, 28
      %v2703 = vpop.permute.xlu0 %2702
      %2704 = vrot.lane.b32.xlu0 %v1780, 28
      %v2705 = vpop.permute.xlu0 %2704
      %2706 = vrot.lane.b32.xlu0 %v1782, 28
      %v2707 = vpop.permute.xlu0 %2706
      %2708 = vrot.lane.b32.xlu0 %v1784, 28
      %v2709 = vpop.permute.xlu0 %2708
      %2710 = vrot.lane.b32.xlu0 %v1786, 28
      %v2711 = vpop.permute.xlu0 %2710
      %2712 = vrot.lane.b32.xlu0 %v1788, 28
      %v2713 = vpop.permute.xlu0 %2712
      %2714 = vrot.lane.b32.xlu0 %v1790, 28
      %v2715 = vpop.permute.xlu0 %2714
      %2716 = vrot.lane.b32.xlu0 %v1792, 28
      %v2717 = vpop.permute.xlu0 %2716
      %2718 = vrot.lane.b32.xlu0 %v1794, 28
      %v2719 = vpop.permute.xlu0 %2718
      %2720 = vrot.lane.b32.xlu0 %v1796, 28
      %v2721 = vpop.permute.xlu0 %2720
      %2722 = vrot.lane.b32.xlu0 %v1798, 28
      %v2723 = vpop.permute.xlu0 %2722
      %2724 = vrot.lane.b32.xlu0 %v1800, 28
      %v2725 = vpop.permute.xlu0 %2724
      %2726 = vrot.lane.b32.xlu0 %v1802, 28
      %v2727 = vpop.permute.xlu0 %2726
      %2728 = vrot.lane.b32.xlu0 %v1804, 28
      %v2729 = vpop.permute.xlu0 %2728
      %2730 = vrot.lane.b32.xlu0 %v1806, 28
      %v2731 = vpop.permute.xlu0 %2730
      %2732 = vrot.lane.b32.xlu0 %v1808, 28
      %v2733 = vpop.permute.xlu0 %2732
      %2734 = vrot.lane.b32.xlu0 %v1810, 28
      %v2735 = vpop.permute.xlu0 %2734
      %2736 = vrot.lane.b32.xlu0 %v1812, 28
      %v2737 = vpop.permute.xlu0 %2736
      %2738 = vrot.lane.b32.xlu0 %v1814, 28
      %v2739 = vpop.permute.xlu0 %2738
      %2740 = vrot.lane.b32.xlu0 %v1816, 28
      %v2741 = vpop.permute.xlu0 %2740
      %2742 = vrot.lane.b32.xlu0 %v1818, 28
      %v2743 = vpop.permute.xlu0 %2742
      %2744 = vrot.lane.b32.xlu0 %v1820, 28
      %v2745 = vpop.permute.xlu0 %2744
      %2746 = vrot.lane.b32.xlu0 %v1822, 28
      %v2747 = vpop.permute.xlu0 %2746
      %2748 = vrot.lane.b32.xlu0 %v1824, 28
      %v2749 = vpop.permute.xlu0 %2748
      %2750 = vrot.lane.b32.xlu0 %v1826, 28
      %v2751 = vpop.permute.xlu0 %2750
      %2752 = vrot.lane.b32.xlu0 %v1828, 28
      %v2753 = vpop.permute.xlu0 %2752
      %2754 = vrot.lane.b32.xlu0 %v1830, 28
      %v2755 = vpop.permute.xlu0 %2754
      %2756 = vrot.lane.b32.xlu0 %v1832, 28
      %v2757 = vpop.permute.xlu0 %2756
      %2758 = vrot.lane.b32.xlu0 %v2265, 28
      %v2759 = vpop.permute.xlu0 %2758
      %2760 = vrot.lane.b32.xlu0 %v2267, 28
      %v2761 = vpop.permute.xlu0 %2760
      %2762 = vrot.lane.b32.xlu0 %v2699, 28
      %v2763 = vpop.permute.xlu0 %2762
      %2764 = vrot.lane.b32.xlu0 %v2701, 28
      %v2765 = vpop.permute.xlu0 %2764
      %2766 = vrot.lane.b32.xlu0 %v2700, 28
      %v2767 = vpop.permute.xlu0 %2766
      %v2834 = vrot.slane %v1705, 2
      %v2835 = vrot.slane %v1706, 2
      %v2836 = vsel %vm1965, %v2834, %v2835
      %v2837 = vrot.slane %v1707, 2
      %v2838 = vsel %vm1965, %v2835, %v2837
      %v2839 = vrot.slane %v1708, 2
      %v2840 = vsel %vm1965, %v2837, %v2839
      %v2841 = vrot.slane %v1709, 2
      %v2842 = vsel %vm1965, %v2839, %v2841
      %v2843 = vrot.slane %v1710, 2
      %v2844 = vsel %vm1965, %v2841, %v2843
      %v2845 = vrot.slane %v1711, 2
      %v2846 = vsel %vm1965, %v2843, %v2845
      %v2847 = vrot.slane %v1712, 2
      %v2848 = vsel %vm1965, %v2845, %v2847
      %v2849 = vrot.slane %v1713, 2
      %v2850 = vsel %vm1965, %v2847, %v2849
      %v2851 = vrot.slane %v1714, 2
      %v2852 = vsel %vm1965, %v2849, %v2851
      %v2853 = vrot.slane %v1715, 2
      %v2854 = vsel %vm1965, %v2851, %v2853
      %v2855 = vrot.slane %v1716, 2
      %v2856 = vsel %vm1965, %v2853, %v2855
      %v2857 = vrot.slane %v1717, 2
      %v2858 = vsel %vm1965, %v2855, %v2857
      %v2859 = vrot.slane %v1718, 2
      %v2860 = vsel %vm1965, %v2857, %v2859
      %v2861 = vrot.slane %v1719, 2
      %v2862 = vsel %vm1965, %v2859, %v2861
      %v2863 = vrot.slane %v1720, 2
      %v2864 = vsel %vm1965, %v2861, %v2863
      %v2865 = vrot.slane %v1721, 2
      %v2866 = vsel %vm1965, %v2863, %v2865
      %v2867 = vrot.slane %v1722, 2
      %v2868 = vsel %vm1965, %v2865, %v2867
      %v2869 = vrot.slane %v1723, 2
      %v2870 = vsel %vm1965, %v2867, %v2869
      %v2871 = vrot.slane %v1724, 2
      %v2872 = vsel %vm1965, %v2869, %v2871
      %v2873 = vrot.slane %v1725, 2
      %v2874 = vsel %vm1965, %v2871, %v2873
      %v2875 = vrot.slane %v1726, 2
      %v2876 = vsel %vm1965, %v2873, %v2875
      %v2877 = vrot.slane %v1727, 2
      %v2878 = vsel %vm1965, %v2875, %v2877
      %v2879 = vrot.slane %v1728, 2
      %v2880 = vsel %vm1965, %v2877, %v2879
      %v2881 = vrot.slane %v1729, 2
      %v2882 = vsel %vm1965, %v2879, %v2881
      %v2883 = vrot.slane %v1730, 2
      %v2884 = vsel %vm1965, %v2881, %v2883
      %v2885 = vrot.slane %v1731, 2
      %v2886 = vsel %vm1965, %v2883, %v2885
      %v2887 = vrot.slane %v1732, 2
      %v2888 = vsel %vm1965, %v2885, %v2887
      %v2889 = vrot.slane %v1733, 2
      %v2890 = vsel %vm1965, %v2887, %v2889
      %v2891 = vrot.slane %v1734, 2
      %v2892 = vsel %vm1965, %v2889, %v2891
      %v2893 = vrot.slane %v1735, 2
      %v2894 = vsel %vm1965, %v2891, %v2893
      %v2895 = vrot.slane %v1736, 2
      %v2896 = vsel %vm1965, %v2893, %v2895
      %v2897 = vrot.slane %v1737, 2
      %v2898 = vsel %vm1965, %v2895, %v2897
      %2899 = vrot.lane.b32.xlu0 %v2834, 32
      %v2900 = vpop.permute.xlu0 %2899
      %2901 = vrot.lane.b32.xlu0 %v2836, 32
      %v2902 = vpop.permute.xlu0 %2901
      %2903 = vrot.lane.b32.xlu0 %v2838, 32
      %v2904 = vpop.permute.xlu0 %2903
      %2905 = vrot.lane.b32.xlu0 %v2840, 32
      %v2906 = vpop.permute.xlu0 %2905
      %2907 = vrot.lane.b32.xlu0 %v2842, 32
      %v2908 = vpop.permute.xlu0 %2907
      %2909 = vrot.lane.b32.xlu0 %v2844, 32
      %v2910 = vpop.permute.xlu0 %2909
      %2911 = vrot.lane.b32.xlu0 %v2846, 32
      %v2912 = vpop.permute.xlu0 %2911
      %2913 = vrot.lane.b32.xlu0 %v2848, 32
      %v2914 = vpop.permute.xlu0 %2913
      %2915 = vrot.lane.b32.xlu0 %v2850, 32
      %v2916 = vpop.permute.xlu0 %2915
      %2917 = vrot.lane.b32.xlu0 %v2852, 32
      %v2918 = vpop.permute.xlu0 %2917
      %2919 = vrot.lane.b32.xlu0 %v2854, 32
      %v2920 = vpop.permute.xlu0 %2919
      %2921 = vrot.lane.b32.xlu0 %v2856, 32
      %v2922 = vpop.permute.xlu0 %2921
      %2923 = vrot.lane.b32.xlu0 %v2858, 32
      %v2924 = vpop.permute.xlu0 %2923
      %2925 = vrot.lane.b32.xlu0 %v2860, 32
      %v2926 = vpop.permute.xlu0 %2925
      %2927 = vrot.lane.b32.xlu0 %v2862, 32
      %v2928 = vpop.permute.xlu0 %2927
      %2929 = vrot.lane.b32.xlu0 %v2864, 32
      %v2930 = vpop.permute.xlu0 %2929
      %2931 = vrot.lane.b32.xlu0 %v2866, 32
      %v2932 = vpop.permute.xlu0 %2931
      %2933 = vrot.lane.b32.xlu0 %v2868, 32
      %v2934 = vpop.permute.xlu0 %2933
      %2935 = vrot.lane.b32.xlu0 %v2870, 32
      %v2936 = vpop.permute.xlu0 %2935
      %2937 = vrot.lane.b32.xlu0 %v2872, 32
      %v2938 = vpop.permute.xlu0 %2937
      %2939 = vrot.lane.b32.xlu0 %v2874, 32
      %v2940 = vpop.permute.xlu0 %2939
      %2941 = vrot.lane.b32.xlu0 %v2876, 32
      %v2942 = vpop.permute.xlu0 %2941
      %2943 = vrot.lane.b32.xlu0 %v2878, 32
      %v2944 = vpop.permute.xlu0 %2943
      %2945 = vrot.lane.b32.xlu0 %v2880, 32
      %v2946 = vpop.permute.xlu0 %2945
      %2947 = vrot.lane.b32.xlu0 %v2882, 32
      %v2948 = vpop.permute.xlu0 %2947
      %2949 = vrot.lane.b32.xlu0 %v2884, 32
      %v2950 = vpop.permute.xlu0 %2949
      %2951 = vrot.lane.b32.xlu0 %v2886, 32
      %v2952 = vpop.permute.xlu0 %2951
      %2953 = vrot.lane.b32.xlu0 %v2888, 32
      %v2954 = vpop.permute.xlu0 %2953
      %2955 = vrot.lane.b32.xlu0 %v2890, 32
      %v2956 = vpop.permute.xlu0 %2955
      %2957 = vrot.lane.b32.xlu0 %v2892, 32
      %v2958 = vpop.permute.xlu0 %2957
      %2959 = vrot.lane.b32.xlu0 %v2894, 32
      %v2960 = vpop.permute.xlu0 %2959
      %2961 = vrot.lane.b32.xlu0 %v2896, 32
      %v2962 = vpop.permute.xlu0 %2961
      %2963 = vrot.lane.b32.xlu0 %v2898, 32
      %v2964 = vpop.permute.xlu0 %2963
      %vm2998 = vcmask 31744
      %v2999 = vsel %vm2998, %v1411, %v1834
      %v3000 = vsel %vm2998, %v1412, %v1836
      %v3001 = vsel %vm2998, %v1413, %v1838
      %v3002 = vsel %vm2998, %v1414, %v1840
      %v3003 = vsel %vm2998, %v1415, %v1842
      %v3004 = vsel %vm2998, %v1416, %v1844
      %v3005 = vsel %vm2998, %v1417, %v1846
      %v3006 = vsel %vm2998, %v1418, %v1848
      %v3007 = vsel %vm2998, %v1419, %v1850
      %v3008 = vsel %vm2998, %v1420, %v1852
      %v3009 = vsel %vm2998, %v1421, %v1854
      %v3010 = vsel %vm2998, %v1422, %v1856
      %v3011 = vsel %vm2998, %v1423, %v1858
      %v3012 = vsel %vm2998, %v1424, %v1860
      %v3013 = vsel %vm2998, %v1425, %v1862
      %v3014 = vsel %vm2998, %v1426, %v1864
      %v3015 = vsel %vm2998, %v1427, %v1866
      %v3016 = vsel %vm2998, %v1428, %v1868
      %v3017 = vsel %vm2998, %v1429, %v1870
      %v3018 = vsel %vm2998, %v1430, %v1872
      %v3019 = vsel %vm2998, %v1431, %v1874
      %v3020 = vsel %vm2998, %v1432, %v1876
      %v3021 = vsel %vm2998, %v1433, %v1878
      %v3022 = vsel %vm2998, %v1434, %v1880
      %v3023 = vsel %vm2998, %v1435, %v1882
      %v3024 = vsel %vm2998, %v1436, %v1884
      %v3025 = vsel %vm2998, %v1437, %v1886
      %v3026 = vsel %vm2998, %v1438, %v1888
      %v3027 = vsel %vm2998, %v1439, %v1890
      %v3028 = vsel %vm2998, %v1440, %v1892
      %v3029 = vsel %vm2998, %v1441, %v1894
      %v3030 = vsel %vm2998, %v1442, %v1896
      %v3031 = vsel %vm2998, %v1443, %v1898
      %vm3032 = vcmask 64512
      %v3033 = vsel %vm3032, %v2999, %v2032
      %v3034 = vsel %vm3032, %v3000, %v2034
      %v3035 = vsel %vm3032, %v3001, %v2036
      %v3036 = vsel %vm3032, %v3002, %v2038
      %v3037 = vsel %vm3032, %v3003, %v2040
      %v3038 = vsel %vm3032, %v3004, %v2042
      %v3039 = vsel %vm3032, %v3005, %v2044
      %v3040 = vsel %vm3032, %v3006, %v2046
      %v3041 = vsel %vm3032, %v3007, %v2048
      %v3042 = vsel %vm3032, %v3008, %v2050
      %v3043 = vsel %vm3032, %v3009, %v2052
      %v3044 = vsel %vm3032, %v3010, %v2054
      %v3045 = vsel %vm3032, %v3011, %v2056
      %v3046 = vsel %vm3032, %v3012, %v2058
      %v3047 = vsel %vm3032, %v3013, %v2060
      %v3048 = vsel %vm3032, %v3014, %v2062
      %v3049 = vsel %vm3032, %v3015, %v2064
      %v3050 = vsel %vm3032, %v3016, %v2066
      %v3051 = vsel %vm3032, %v3017, %v2068
      %v3052 = vsel %vm3032, %v3018, %v2070
      %v3053 = vsel %vm3032, %v3019, %v2072
      %v3054 = vsel %vm3032, %v3020, %v2074
      %v3055 = vsel %vm3032, %v3021, %v2076
      %v3056 = vsel %vm3032, %v3022, %v2078
      %v3057 = vsel %vm3032, %v3023, %v2080
      %v3058 = vsel %vm3032, %v3024, %v2082
      %v3059 = vsel %vm3032, %v3025, %v2084
      %v3060 = vsel %vm3032, %v3026, %v2086
      %v3061 = vsel %vm3032, %v3027, %v2088
      %v3062 = vsel %vm3032, %v3028, %v2090
      %v3063 = vsel %vm3032, %v3029, %v2092
      %v3064 = vsel %vm3032, %v3030, %v2094
      %v3065 = vsel %vm3032, %v3031, %v2096
      %vm3066 = vcmask 97280
      %v3067 = vsel %vm3066, %v3033, %v2164
      %v3068 = vsel %vm3066, %v3034, %v2166
      %v3069 = vsel %vm3066, %v3035, %v2168
      %v3070 = vsel %vm3066, %v3036, %v2170
      %v3071 = vsel %vm3066, %v3037, %v2172
      %v3072 = vsel %vm3066, %v3038, %v2174
      %v3073 = vsel %vm3066, %v3039, %v2176
      %v3074 = vsel %vm3066, %v3040, %v2178
      %v3075 = vsel %vm3066, %v3041, %v2180
      %v3076 = vsel %vm3066, %v3042, %v2182
      %v3077 = vsel %vm3066, %v3043, %v2184
      %v3078 = vsel %vm3066, %v3044, %v2186
      %v3079 = vsel %vm3066, %v3045, %v2188
      %v3080 = vsel %vm3066, %v3046, %v2190
      %v3081 = vsel %vm3066, %v3047, %v2192
      %v3082 = vsel %vm3066, %v3048, %v2194
      %v3083 = vsel %vm3066, %v3049, %v2196
      %v3084 = vsel %vm3066, %v3050, %v2198
      %v3085 = vsel %vm3066, %v3051, %v2200
      %v3086 = vsel %vm3066, %v3052, %v2202
      %v3087 = vsel %vm3066, %v3053, %v2204
      %v3088 = vsel %vm3066, %v3054, %v2206
      %v3089 = vsel %vm3066, %v3055, %v2208
      %v3090 = vsel %vm3066, %v3056, %v2210
      %v3091 = vsel %vm3066, %v3057, %v2212
      %v3092 = vsel %vm3066, %v3058, %v2214
      %v3093 = vsel %vm3066, %v3059, %v2216
      %v3094 = vsel %vm3066, %v3060, %v2218
      %v3095 = vsel %vm3066, %v3061, %v2220
      %v3096 = vsel %vm3066, %v3062, %v2222
      %v3097 = vsel %vm3066, %v3063, %v2224
      %v3098 = vsel %vm3066, %v3064, %v2226
      %v3099 = vsel %vm3066, %v3065, %v2228
      %v3100 = vsel %vm343, %v3067, %v2269
      %v3101 = vsel %vm343, %v3068, %v2271
      %v3102 = vsel %vm343, %v3069, %v2273
      %v3103 = vsel %vm343, %v3070, %v2275
      %v3104 = vsel %vm343, %v3071, %v2277
      %v3105 = vsel %vm343, %v3072, %v2279
      %v3106 = vsel %vm343, %v3073, %v2281
      %v3107 = vsel %vm343, %v3074, %v2283
      %v3108 = vsel %vm343, %v3075, %v2285
      %v3109 = vsel %vm343, %v3076, %v2287
      %v3110 = vsel %vm343, %v3077, %v2289
      %v3111 = vsel %vm343, %v3078, %v2291
      %v3112 = vsel %vm343, %v3079, %v2293
      %v3113 = vsel %vm343, %v3080, %v2295
      %v3114 = vsel %vm343, %v3081, %v2297
      %v3115 = vsel %vm343, %v3082, %v2299
      %v3116 = vsel %vm343, %v3083, %v2301
      %v3117 = vsel %vm343, %v3084, %v2303
      %v3118 = vsel %vm343, %v3085, %v2305
      %v3119 = vsel %vm343, %v3086, %v2307
      %v3120 = vsel %vm343, %v3087, %v2309
      %v3121 = vsel %vm343, %v3088, %v2311
      %v3122 = vsel %vm343, %v3089, %v2313
      %v3123 = vsel %vm343, %v3090, %v2315
      %v3124 = vsel %vm343, %v3091, %v2317
      %v3125 = vsel %vm343, %v3092, %v2319
      %v3126 = vsel %vm343, %v3093, %v2321
      %v3127 = vsel %vm343, %v3094, %v2323
      %v3128 = vsel %vm343, %v3095, %v2325
      %v3129 = vsel %vm343, %v3096, %v2327
      %v3130 = vsel %vm343, %v3097, %v2329
      %v3131 = vsel %vm343, %v3098, %v2331
      %v3132 = vsel %vm343, %v3099, %v2333
      %vm3133 = vcmask 162816
      %v3134 = vsel %vm3133, %v3100, %v2466
      %v3135 = vsel %vm3133, %v3101, %v2468
      %v3136 = vsel %vm3133, %v3102, %v2470
      %v3137 = vsel %vm3133, %v3103, %v2472
      %v3138 = vsel %vm3133, %v3104, %v2474
      %v3139 = vsel %vm3133, %v3105, %v2476
      %v3140 = vsel %vm3133, %v3106, %v2478
      %v3141 = vsel %vm3133, %v3107, %v2480
      %v3142 = vsel %vm3133, %v3108, %v2482
      %v3143 = vsel %vm3133, %v3109, %v2484
      %v3144 = vsel %vm3133, %v3110, %v2486
      %v3145 = vsel %vm3133, %v3111, %v2488
      %v3146 = vsel %vm3133, %v3112, %v2490
      %v3147 = vsel %vm3133, %v3113, %v2492
      %v3148 = vsel %vm3133, %v3114, %v2494
      %v3149 = vsel %vm3133, %v3115, %v2496
      %v3150 = vsel %vm3133, %v3116, %v2498
      %v3151 = vsel %vm3133, %v3117, %v2500
      %v3152 = vsel %vm3133, %v3118, %v2502
      %v3153 = vsel %vm3133, %v3119, %v2504
      %v3154 = vsel %vm3133, %v3120, %v2506
      %v3155 = vsel %vm3133, %v3121, %v2508
      %v3156 = vsel %vm3133, %v3122, %v2510
      %v3157 = vsel %vm3133, %v3123, %v2512
      %v3158 = vsel %vm3133, %v3124, %v2514
      %v3159 = vsel %vm3133, %v3125, %v2516
      %v3160 = vsel %vm3133, %v3126, %v2518
      %v3161 = vsel %vm3133, %v3127, %v2520
      %v3162 = vsel %vm3133, %v3128, %v2522
      %v3163 = vsel %vm3133, %v3129, %v2524
      %v3164 = vsel %vm3133, %v3130, %v2526
      %v3165 = vsel %vm3133, %v3131, %v2528
      %v3166 = vsel %vm3133, %v3132, %v2530
      %vm3167 = vcmask 195584
      %v3168 = vsel %vm3167, %v3134, %v2598
      %v3169 = vsel %vm3167, %v3135, %v2600
      %v3170 = vsel %vm3167, %v3136, %v2602
      %v3171 = vsel %vm3167, %v3137, %v2604
      %v3172 = vsel %vm3167, %v3138, %v2606
      %v3173 = vsel %vm3167, %v3139, %v2608
      %v3174 = vsel %vm3167, %v3140, %v2610
      %v3175 = vsel %vm3167, %v3141, %v2612
      %v3176 = vsel %vm3167, %v3142, %v2614
      %v3177 = vsel %vm3167, %v3143, %v2616
      %v3178 = vsel %vm3167, %v3144, %v2618
      %v3179 = vsel %vm3167, %v3145, %v2620
      %v3180 = vsel %vm3167, %v3146, %v2622
      %v3181 = vsel %vm3167, %v3147, %v2624
      %v3182 = vsel %vm3167, %v3148, %v2626
      %v3183 = vsel %vm3167, %v3149, %v2628
      %v3184 = vsel %vm3167, %v3150, %v2630
      %v3185 = vsel %vm3167, %v3151, %v2632
      %v3186 = vsel %vm3167, %v3152, %v2634
      %v3187 = vsel %vm3167, %v3153, %v2636
      %v3188 = vsel %vm3167, %v3154, %v2638
      %v3189 = vsel %vm3167, %v3155, %v2640
      %v3190 = vsel %vm3167, %v3156, %v2642
      %v3191 = vsel %vm3167, %v3157, %v2644
      %v3192 = vsel %vm3167, %v3158, %v2646
      %v3193 = vsel %vm3167, %v3159, %v2648
      %v3194 = vsel %vm3167, %v3160, %v2650
      %v3195 = vsel %vm3167, %v3161, %v2652
      %v3196 = vsel %vm3167, %v3162, %v2654
      %v3197 = vsel %vm3167, %v3163, %v2656
      %v3198 = vsel %vm3167, %v3164, %v2658
      %v3199 = vsel %vm3167, %v3165, %v2660
      %v3200 = vsel %vm3167, %v3166, %v2662
      %vm3201 = vcmask 228352
      %v3202 = vsel %vm3201, %v3168, %v2703
      %v3203 = vsel %vm3201, %v3169, %v2705
      %v3204 = vsel %vm3201, %v3170, %v2707
      %v3205 = vsel %vm3201, %v3171, %v2709
      %v3206 = vsel %vm3201, %v3172, %v2711
      %v3207 = vsel %vm3201, %v3173, %v2713
      %v3208 = vsel %vm3201, %v3174, %v2715
      %v3209 = vsel %vm3201, %v3175, %v2717
      %v3210 = vsel %vm3201, %v3176, %v2719
      %v3211 = vsel %vm3201, %v3177, %v2721
      %v3212 = vsel %vm3201, %v3178, %v2723
      %v3213 = vsel %vm3201, %v3179, %v2725
      %v3214 = vsel %vm3201, %v3180, %v2727
      %v3215 = vsel %vm3201, %v3181, %v2729
      %v3216 = vsel %vm3201, %v3182, %v2731
      %v3217 = vsel %vm3201, %v3183, %v2733
      %v3218 = vsel %vm3201, %v3184, %v2735
      %v3219 = vsel %vm3201, %v3185, %v2737
      %v3220 = vsel %vm3201, %v3186, %v2739
      %v3221 = vsel %vm3201, %v3187, %v2741
      %v3222 = vsel %vm3201, %v3188, %v2743
      %v3223 = vsel %vm3201, %v3189, %v2745
      %v3224 = vsel %vm3201, %v3190, %v2747
      %v3225 = vsel %vm3201, %v3191, %v2749
      %v3226 = vsel %vm3201, %v3192, %v2751
      %v3227 = vsel %vm3201, %v3193, %v2753
      %v3228 = vsel %vm3201, %v3194, %v2755
      %v3229 = vsel %vm3201, %v3195, %v2757
      %v3230 = vsel %vm3201, %v3196, %v2759
      %v3231 = vsel %vm3201, %v3197, %v2761
      %v3232 = vsel %vm3201, %v3198, %v2763
      %v3233 = vsel %vm3201, %v3199, %v2765
      %v3234 = vsel %vm3201, %v3200, %v2767
      %vm3235 = vcmask 261120
      %v3236 = vsel %vm3235, %v3202, %v2900
      %v3237 = vsel %vm3235, %v3203, %v2902
      %v3238 = vsel %vm3235, %v3204, %v2904
      %v3239 = vsel %vm3235, %v3205, %v2906
      %v3240 = vsel %vm3235, %v3206, %v2908
      %v3241 = vsel %vm3235, %v3207, %v2910
      %v3242 = vsel %vm3235, %v3208, %v2912
      %v3243 = vsel %vm3235, %v3209, %v2914
      %v3244 = vsel %vm3235, %v3210, %v2916
      %v3245 = vsel %vm3235, %v3211, %v2918
      %v3246 = vsel %vm3235, %v3212, %v2920
      %v3247 = vsel %vm3235, %v3213, %v2922
      %v3248 = vsel %vm3235, %v3214, %v2924
      %v3249 = vsel %vm3235, %v3215, %v2926
      %v3250 = vsel %vm3235, %v3216, %v2928
      %v3251 = vsel %vm3235, %v3217, %v2930
      %v3252 = vsel %vm3235, %v3218, %v2932
      %v3253 = vsel %vm3235, %v3219, %v2934
      %v3254 = vsel %vm3235, %v3220, %v2936
      %v3255 = vsel %vm3235, %v3221, %v2938
      %v3256 = vsel %vm3235, %v3222, %v2940
      %v3257 = vsel %vm3235, %v3223, %v2942
      %v3258 = vsel %vm3235, %v3224, %v2944
      %v3259 = vsel %vm3235, %v3225, %v2946
      %v3260 = vsel %vm3235, %v3226, %v2948
      %v3261 = vsel %vm3235, %v3227, %v2950
      %v3262 = vsel %vm3235, %v3228, %v2952
      %v3263 = vsel %vm3235, %v3229, %v2954
      %v3264 = vsel %vm3235, %v3230, %v2956
      %v3265 = vsel %vm3235, %v3231, %v2958
      %v3266 = vsel %vm3235, %v3232, %v2960
      %v3267 = vsel %vm3235, %v3233, %v2962
      %v3268 = vsel %vm3235, %v3234, %v2964
      %v3269 = vld [vmem:[%s3] sm:$0xff]
      %v3270 = vld [vmem:[%s3 + $0x8] sm:$0xff]
      %v3271 = vld [vmem:[%s3 + $0x10] sm:$0xff]
      %v3272 = vld [vmem:[%s3 + $0x18] sm:$0xff]
      %v3273 = vld [vmem:[%s3 + $0x20] sm:$0xf]
      %v3274 = vld [vmem:[%s4] sm:$0x1]
      %v3276 = vperm.slane %v3274, 0
      %v3311 = vrot.slane %v3236, 7
      %v3312 = vrot.slane %v3237, 7
      %v3313 = vsel %vm1476, %v3311, %v3312
      %v3314 = vrot.slane %v3238, 7
      %v3315 = vsel %vm1476, %v3312, %v3314
      %v3316 = vrot.slane %v3239, 7
      %v3317 = vsel %vm1476, %v3314, %v3316
      %v3318 = vrot.slane %v3240, 7
      %v3319 = vsel %vm1476, %v3316, %v3318
      %v3320 = vrot.slane %v3241, 7
      %v3321 = vsel %vm1476, %v3318, %v3320
      %v3322 = vrot.slane %v3242, 7
      %v3323 = vsel %vm1476, %v3320, %v3322
      %v3324 = vrot.slane %v3243, 7
      %v3325 = vsel %vm1476, %v3322, %v3324
      %v3326 = vrot.slane %v3244, 7
      %v3327 = vsel %vm1476, %v3324, %v3326
      %v3328 = vrot.slane %v3245, 7
      %v3329 = vsel %vm1476, %v3326, %v3328
      %v3330 = vrot.slane %v3246, 7
      %v3331 = vsel %vm1476, %v3328, %v3330
      %v3332 = vrot.slane %v3247, 7
      %v3333 = vsel %vm1476, %v3330, %v3332
      %v3334 = vrot.slane %v3248, 7
      %v3335 = vsel %vm1476, %v3332, %v3334
      %v3336 = vrot.slane %v3249, 7
      %v3337 = vsel %vm1476, %v3334, %v3336
      %v3338 = vrot.slane %v3250, 7
      %v3339 = vsel %vm1476, %v3336, %v3338
      %v3340 = vrot.slane %v3251, 7
      %v3341 = vsel %vm1476, %v3338, %v3340
      %v3342 = vrot.slane %v3252, 7
      %v3343 = vsel %vm1476, %v3340, %v3342
      %v3344 = vrot.slane %v3253, 7
      %v3345 = vsel %vm1476, %v3342, %v3344
      %v3346 = vrot.slane %v3254, 7
      %v3347 = vsel %vm1476, %v3344, %v3346
      %v3348 = vrot.slane %v3255, 7
      %v3349 = vsel %vm1476, %v3346, %v3348
      %v3350 = vrot.slane %v3256, 7
      %v3351 = vsel %vm1476, %v3348, %v3350
      %v3352 = vrot.slane %v3257, 7
      %v3353 = vsel %vm1476, %v3350, %v3352
      %v3354 = vrot.slane %v3258, 7
      %v3355 = vsel %vm1476, %v3352, %v3354
      %v3356 = vrot.slane %v3259, 7
      %v3357 = vsel %vm1476, %v3354, %v3356
      %v3358 = vrot.slane %v3260, 7
      %v3359 = vsel %vm1476, %v3356, %v3358
      %v3360 = vrot.slane %v3261, 7
      %v3361 = vsel %vm1476, %v3358, %v3360
      %v3362 = vrot.slane %v3262, 7
      %v3363 = vsel %vm1476, %v3360, %v3362
      %v3364 = vrot.slane %v3263, 7
      %v3365 = vsel %vm1476, %v3362, %v3364
      %v3366 = vrot.slane %v3264, 7
      %v3367 = vsel %vm1476, %v3364, %v3366
      %v3368 = vrot.slane %v3265, 7
      %v3369 = vsel %vm1476, %v3366, %v3368
      %v3370 = vrot.slane %v3266, 7
      %v3371 = vsel %vm1476, %v3368, %v3370
      %v3372 = vrot.slane %v3267, 7
      %v3373 = vsel %vm1476, %v3370, %v3372
      %v3374 = vrot.slane %v3268, 7
      %v3375 = vsel %vm1476, %v3372, %v3374
      %vm3376 = vcmask 293888
      %v3377 = vsel %vm3376, %v3313, 0
      %v3379 = vsel %vm3376, %v3315, 0
      %v3381 = vsel %vm3376, %v3317, 0
      %v3383 = vsel %vm3376, %v3319, 0
      %v3385 = vsel %vm3376, %v3321, 0
      %v3387 = vsel %vm3376, %v3323, 0
      %v3389 = vsel %vm3376, %v3325, 0
      %v3391 = vsel %vm3376, %v3327, 0
      %v3393 = vsel %vm3376, %v3329, 0
      %v3395 = vsel %vm3376, %v3331, 0
      %v3397 = vsel %vm3376, %v3333, 0
      %v3399 = vsel %vm3376, %v3335, 0
      %v3401 = vsel %vm3376, %v3337, 0
      %v3403 = vsel %vm3376, %v3339, 0
      %v3405 = vsel %vm3376, %v3341, 0
      %v3407 = vsel %vm3376, %v3343, 0
      %v3409 = vsel %vm3376, %v3345, 0
      %v3411 = vsel %vm3376, %v3347, 0
      %v3413 = vsel %vm3376, %v3349, 0
      %v3415 = vsel %vm3376, %v3351, 0
      %v3417 = vsel %vm3376, %v3353, 0
      %v3419 = vsel %vm3376, %v3355, 0
      %v3421 = vsel %vm3376, %v3357, 0
      %v3423 = vsel %vm3376, %v3359, 0
      %v3425 = vsel %vm3376, %v3361, 0
      %v3427 = vsel %vm3376, %v3363, 0
      %v3429 = vsel %vm3376, %v3365, 0
      %v3431 = vsel %vm3376, %v3367, 0
      %v3433 = vsel %vm3376, %v3369, 0
      %v3435 = vsel %vm3376, %v3371, 0
      %v3437 = vsel %vm3376, %v3373, 0
      %v3439 = vsel %vm3376, %v3375, 0
      %vm3441 = vcmask 1043456
      %v3443 = vsel %vm3441, %v3273, 0
      %3445 = vmatpush.msra.mxu0 0.0
      %3446 = vmatpush.msra.mxu0 0.0
      %3447 = vmatpush.msra.mxu0 0.0
      %3448 = vmatpush.msra.mxu0 0.0
      %3449 = vmatpush.msra.mxu0 0.0
      %3450 = vmatpush.msra.mxu0 0.0
      %3451 = vmatpush.msra.mxu0 0.0
      %3452 = vmatpush.msra.mxu0 0.0
      %3453 = vmatpush.msra.mxu0 0.0
      %3454 = vmatpush.msra.mxu0 0.0
      %3455 = vmatpush.msra.mxu0 0.0
      %3456 = vmatpush.msra.mxu0 %v3443
      %3457 = vmatpush.msra.mxu0 %v3272
      %3458 = vmatpush.msra.mxu0 %v3271
      %3459 = vmatpush.msra.mxu0 %v3270
      %3460 = vmatpush.msra.mxu0 %v3269
      %3461 = vmatmul.f32.gmra.mxu0 %v3377
      %v3462 = vpop.f32.mrf.mxu0
      %v3463 = vadd.f32 %v3276, %v3462
      %3464 = vmatmul.f32.gmra.mxu0 %v3379
      %v3465 = vpop.f32.mrf.mxu0
      %v3466 = vadd.f32 %v3276, %v3465
      %3467 = vmatmul.f32.gmra.mxu0 %v3381
      %v3468 = vpop.f32.mrf.mxu0
      %v3469 = vadd.f32 %v3276, %v3468
      %3470 = vmatmul.f32.gmra.mxu0 %v3383
      %v3471 = vpop.f32.mrf.mxu0
      %v3472 = vadd.f32 %v3276, %v3471
      %3473 = vmatmul.f32.gmra.mxu0 %v3385
      %v3474 = vpop.f32.mrf.mxu0
      %v3475 = vadd.f32 %v3276, %v3474
      %3476 = vmatmul.f32.gmra.mxu0 %v3387
      %v3477 = vpop.f32.mrf.mxu0
      %v3478 = vadd.f32 %v3276, %v3477
      %3479 = vmatmul.f32.gmra.mxu0 %v3389
      %v3480 = vpop.f32.mrf.mxu0
      %v3481 = vadd.f32 %v3276, %v3480
      %3482 = vmatmul.f32.gmra.mxu0 %v3391
      %v3483 = vpop.f32.mrf.mxu0
      %v3484 = vadd.f32 %v3276, %v3483
      %3485 = vmatmul.f32.gmra.mxu0 %v3393
      %v3486 = vpop.f32.mrf.mxu0
      %v3487 = vadd.f32 %v3276, %v3486
      %3488 = vmatmul.f32.gmra.mxu0 %v3395
      %v3489 = vpop.f32.mrf.mxu0
      %v3490 = vadd.f32 %v3276, %v3489
      %3491 = vmatmul.f32.gmra.mxu0 %v3397
      %v3492 = vpop.f32.mrf.mxu0
      %v3493 = vadd.f32 %v3276, %v3492
      %3494 = vmatmul.f32.gmra.mxu0 %v3399
      %v3495 = vpop.f32.mrf.mxu0
      %v3496 = vadd.f32 %v3276, %v3495
      %3497 = vmatmul.f32.gmra.mxu0 %v3401
      %v3498 = vpop.f32.mrf.mxu0
      %v3499 = vadd.f32 %v3276, %v3498
      %3500 = vmatmul.f32.gmra.mxu0 %v3403
      %v3501 = vpop.f32.mrf.mxu0
      %v3502 = vadd.f32 %v3276, %v3501
      %3503 = vmatmul.f32.gmra.mxu0 %v3405
      %v3504 = vpop.f32.mrf.mxu0
      %v3505 = vadd.f32 %v3276, %v3504
      %3506 = vmatmul.f32.gmra.mxu0 %v3407
      %v3507 = vpop.f32.mrf.mxu0
      %v3508 = vadd.f32 %v3276, %v3507
      %3509 = vmatmul.f32.gmra.mxu0 %v3409
      %v3510 = vpop.f32.mrf.mxu0
      %v3511 = vadd.f32 %v3276, %v3510
      %3512 = vmatmul.f32.gmra.mxu0 %v3411
      %v3513 = vpop.f32.mrf.mxu0
      %v3514 = vadd.f32 %v3276, %v3513
      %3515 = vmatmul.f32.gmra.mxu0 %v3413
      %v3516 = vpop.f32.mrf.mxu0
      %v3517 = vadd.f32 %v3276, %v3516
      %3518 = vmatmul.f32.gmra.mxu0 %v3415
      %v3519 = vpop.f32.mrf.mxu0
      %v3520 = vadd.f32 %v3276, %v3519
      %3521 = vmatmul.f32.gmra.mxu0 %v3417
      %v3522 = vpop.f32.mrf.mxu0
      %v3523 = vadd.f32 %v3276, %v3522
      %3524 = vmatmul.f32.gmra.mxu0 %v3419
      %v3525 = vpop.f32.mrf.mxu0
      %v3526 = vadd.f32 %v3276, %v3525
      %3527 = vmatmul.f32.gmra.mxu0 %v3421
      %v3528 = vpop.f32.mrf.mxu0
      %v3529 = vadd.f32 %v3276, %v3528
      %3530 = vmatmul.f32.gmra.mxu0 %v3423
      %v3531 = vpop.f32.mrf.mxu0
      %v3532 = vadd.f32 %v3276, %v3531
      %3533 = vmatmul.f32.gmra.mxu0 %v3425
      %v3534 = vpop.f32.mrf.mxu0
      %v3535 = vadd.f32 %v3276, %v3534
      %3536 = vmatmul.f32.gmra.mxu0 %v3427
      %v3537 = vpop.f32.mrf.mxu0
      %v3538 = vadd.f32 %v3276, %v3537
      %3539 = vmatmul.f32.gmra.mxu0 %v3429
      %v3540 = vpop.f32.mrf.mxu0
      %v3541 = vadd.f32 %v3276, %v3540
      %3542 = vmatmul.f32.gmra.mxu0 %v3431
      %v3543 = vpop.f32.mrf.mxu0
      %v3544 = vadd.f32 %v3276, %v3543
      %3545 = vmatmul.f32.gmra.mxu0 %v3433
      %v3546 = vpop.f32.mrf.mxu0
      %v3547 = vadd.f32 %v3276, %v3546
      %3548 = vmatmul.f32.gmra.mxu0 %v3435
      %v3549 = vpop.f32.mrf.mxu0
      %v3550 = vadd.f32 %v3276, %v3549
      %3551 = vmatmul.f32.gmra.mxu0 %v3437
      %v3552 = vpop.f32.mrf.mxu0
      %v3553 = vadd.f32 %v3276, %v3552
      %3554 = vmatmul.f32.gmra.mxu0 %v3439
      %v3555 = vpop.f32.mrf.mxu0
      %v3556 = vadd.f32 %v3276, %v3555
      %3557 = vdwg.mxu0
      %v3558 = vmax.f32 %v3463, 0.0
      %v3559 = vmax.f32 %v3466, 0.0
      %v3560 = vmax.f32 %v3469, 0.0
      %v3561 = vmax.f32 %v3472, 0.0
      %v3562 = vmax.f32 %v3475, 0.0
      %v3563 = vmax.f32 %v3478, 0.0
      %v3564 = vmax.f32 %v3481, 0.0
      %v3565 = vmax.f32 %v3484, 0.0
      %v3566 = vmax.f32 %v3487, 0.0
      %v3567 = vmax.f32 %v3490, 0.0
      %v3568 = vmax.f32 %v3493, 0.0
      %v3569 = vmax.f32 %v3496, 0.0
      %v3570 = vmax.f32 %v3499, 0.0
      %v3571 = vmax.f32 %v3502, 0.0
      %v3572 = vmax.f32 %v3505, 0.0
      %v3573 = vmax.f32 %v3508, 0.0
      %v3574 = vmax.f32 %v3511, 0.0
      %v3575 = vmax.f32 %v3514, 0.0
      %v3576 = vmax.f32 %v3517, 0.0
      %v3577 = vmax.f32 %v3520, 0.0
      %v3578 = vmax.f32 %v3523, 0.0
      %v3579 = vmax.f32 %v3526, 0.0
      %v3580 = vmax.f32 %v3529, 0.0
      %v3581 = vmax.f32 %v3532, 0.0
      %v3582 = vmax.f32 %v3535, 0.0
      %v3583 = vmax.f32 %v3538, 0.0
      %v3584 = vmax.f32 %v3541, 0.0
      %v3585 = vmax.f32 %v3544, 0.0
      %v3586 = vmax.f32 %v3547, 0.0
      %v3587 = vmax.f32 %v3550, 0.0
      %v3588 = vmax.f32 %v3553, 0.0
      %v3589 = vmax.f32 %v3556, 0.0
      %v3590 = vld [vmem:[%s5] sm:$0xf]
      %v3591 = vld [vmem:[%s6] sm:$0x1]
      %v3593 = vperm.slane %v3591, 0
      %v3596 = vsel %vm2998, %v3558, 0
      %v3599 = vsel %vm2998, %v3559, 0
      %v3602 = vsel %vm2998, %v3560, 0
      %v3605 = vsel %vm2998, %v3561, 0
      %v3608 = vsel %vm2998, %v3562, 0
      %v3611 = vsel %vm2998, %v3563, 0
      %v3614 = vsel %vm2998, %v3564, 0
      %v3617 = vsel %vm2998, %v3565, 0
      %v3620 = vsel %vm2998, %v3566, 0
      %v3623 = vsel %vm2998, %v3567, 0
      %v3626 = vsel %vm2998, %v3568, 0
      %v3629 = vsel %vm2998, %v3569, 0
      %v3632 = vsel %vm2998, %v3570, 0
      %v3635 = vsel %vm2998, %v3571, 0
      %v3638 = vsel %vm2998, %v3572, 0
      %v3641 = vsel %vm2998, %v3573, 0
      %v3644 = vsel %vm2998, %v3574, 0
      %v3647 = vsel %vm2998, %v3575, 0
      %v3650 = vsel %vm2998, %v3576, 0
      %v3653 = vsel %vm2998, %v3577, 0
      %v3656 = vsel %vm2998, %v3578, 0
      %v3659 = vsel %vm2998, %v3579, 0
      %v3662 = vsel %vm2998, %v3580, 0
      %v3665 = vsel %vm2998, %v3581, 0
      %v3668 = vsel %vm2998, %v3582, 0
      %v3671 = vsel %vm2998, %v3583, 0
      %v3674 = vsel %vm2998, %v3584, 0
      %v3677 = vsel %vm2998, %v3585, 0
      %v3680 = vsel %vm2998, %v3586, 0
      %v3683 = vsel %vm2998, %v3587, 0
      %v3686 = vsel %vm2998, %v3588, 0
      %v3689 = vsel %vm2998, %v3589, 0
      %v3692 = vsel %vm3441, %v3590, 0
      %3694 = vmatpush.msra.mxu0 0.0
      %3695 = vmatpush.msra.mxu0 0.0
      %3696 = vmatpush.msra.mxu0 0.0
      %3697 = vmatpush.msra.mxu0 0.0
      %3698 = vmatpush.msra.mxu0 0.0
      %3699 = vmatpush.msra.mxu0 0.0
      %3700 = vmatpush.msra.mxu0 0.0
      %3701 = vmatpush.msra.mxu0 0.0
      %3702 = vmatpush.msra.mxu0 0.0
      %3703 = vmatpush.msra.mxu0 0.0
      %3704 = vmatpush.msra.mxu0 0.0
      %3705 = vmatpush.msra.mxu0 0.0
      %3706 = vmatpush.msra.mxu0 0.0
      %3707 = vmatpush.msra.mxu0 0.0
      %3708 = vmatpush.msra.mxu0 0.0
      %3709 = vmatpush.msra.mxu0 %v3692
      %3710 = vmatmul.f32.gmra.mxu0 %v3596
      %v3711 = vpop.f32.mrf.mxu0
      %v3712 = vadd.f32 %v3593, %v3711
      %3713 = vmatmul.f32.gmra.mxu0 %v3599
      %v3714 = vpop.f32.mrf.mxu0
      %v3715 = vadd.f32 %v3593, %v3714
      %3716 = vmatmul.f32.gmra.mxu0 %v3602
      %v3717 = vpop.f32.mrf.mxu0
      %v3718 = vadd.f32 %v3593, %v3717
      %3719 = vmatmul.f32.gmra.mxu0 %v3605
      %v3720 = vpop.f32.mrf.mxu0
      %v3721 = vadd.f32 %v3593, %v3720
      %3722 = vmatmul.f32.gmra.mxu0 %v3608
      %v3723 = vpop.f32.mrf.mxu0
      %v3724 = vadd.f32 %v3593, %v3723
      %3725 = vmatmul.f32.gmra.mxu0 %v3611
      %v3726 = vpop.f32.mrf.mxu0
      %v3727 = vadd.f32 %v3593, %v3726
      %3728 = vmatmul.f32.gmra.mxu0 %v3614
      %v3729 = vpop.f32.mrf.mxu0
      %v3730 = vadd.f32 %v3593, %v3729
      %3731 = vmatmul.f32.gmra.mxu0 %v3617
      %v3732 = vpop.f32.mrf.mxu0
      %v3733 = vadd.f32 %v3593, %v3732
      %3734 = vmatmul.f32.gmra.mxu0 %v3620
      %v3735 = vpop.f32.mrf.mxu0
      %v3736 = vadd.f32 %v3593, %v3735
      %3737 = vmatmul.f32.gmra.mxu0 %v3623
      %v3738 = vpop.f32.mrf.mxu0
      %v3739 = vadd.f32 %v3593, %v3738
      %3740 = vmatmul.f32.gmra.mxu0 %v3626
      %v3741 = vpop.f32.mrf.mxu0
      %v3742 = vadd.f32 %v3593, %v3741
      %3743 = vmatmul.f32.gmra.mxu0 %v3629
      %v3744 = vpop.f32.mrf.mxu0
      %v3745 = vadd.f32 %v3593, %v3744
      %3746 = vmatmul.f32.gmra.mxu0 %v3632
      %v3747 = vpop.f32.mrf.mxu0
      %v3748 = vadd.f32 %v3593, %v3747
      %3749 = vmatmul.f32.gmra.mxu0 %v3635
      %v3750 = vpop.f32.mrf.mxu0
      %v3751 = vadd.f32 %v3593, %v3750
      %3752 = vmatmul.f32.gmra.mxu0 %v3638
      %v3753 = vpop.f32.mrf.mxu0
      %v3754 = vadd.f32 %v3593, %v3753
      %3755 = vmatmul.f32.gmra.mxu0 %v3641
      %v3756 = vpop.f32.mrf.mxu0
      %v3757 = vadd.f32 %v3593, %v3756
      %3758 = vmatmul.f32.gmra.mxu0 %v3644
      %v3759 = vpop.f32.mrf.mxu0
      %v3760 = vadd.f32 %v3593, %v3759
      %3761 = vmatmul.f32.gmra.mxu0 %v3647
      %v3762 = vpop.f32.mrf.mxu0
      %v3763 = vadd.f32 %v3593, %v3762
      %3764 = vmatmul.f32.gmra.mxu0 %v3650
      %v3765 = vpop.f32.mrf.mxu0
      %v3766 = vadd.f32 %v3593, %v3765
      %3767 = vmatmul.f32.gmra.mxu0 %v3653
      %v3768 = vpop.f32.mrf.mxu0
      %v3769 = vadd.f32 %v3593, %v3768
      %3770 = vmatmul.f32.gmra.mxu0 %v3656
      %v3771 = vpop.f32.mrf.mxu0
      %v3772 = vadd.f32 %v3593, %v3771
      %3773 = vmatmul.f32.gmra.mxu0 %v3659
      %v3774 = vpop.f32.mrf.mxu0
      %v3775 = vadd.f32 %v3593, %v3774
      %3776 = vmatmul.f32.gmra.mxu0 %v3662
      %v3777 = vpop.f32.mrf.mxu0
      %v3778 = vadd.f32 %v3593, %v3777
      %3779 = vmatmul.f32.gmra.mxu0 %v3665
      %v3780 = vpop.f32.mrf.mxu0
      %v3781 = vadd.f32 %v3593, %v3780
      %3782 = vmatmul.f32.gmra.mxu0 %v3668
      %v3783 = vpop.f32.mrf.mxu0
      %v3784 = vadd.f32 %v3593, %v3783
      %3785 = vmatmul.f32.gmra.mxu0 %v3671
      %v3786 = vpop.f32.mrf.mxu0
      %v3787 = vadd.f32 %v3593, %v3786
      %3788 = vmatmul.f32.gmra.mxu0 %v3674
      %v3789 = vpop.f32.mrf.mxu0
      %v3790 = vadd.f32 %v3593, %v3789
      %3791 = vmatmul.f32.gmra.mxu0 %v3677
      %v3792 = vpop.f32.mrf.mxu0
      %v3793 = vadd.f32 %v3593, %v3792
      %3794 = vmatmul.f32.gmra.mxu0 %v3680
      %v3795 = vpop.f32.mrf.mxu0
      %v3796 = vadd.f32 %v3593, %v3795
      %3797 = vmatmul.f32.gmra.mxu0 %v3683
      %v3798 = vpop.f32.mrf.mxu0
      %v3799 = vadd.f32 %v3593, %v3798
      %3800 = vmatmul.f32.gmra.mxu0 %v3686
      %v3801 = vpop.f32.mrf.mxu0
      %v3802 = vadd.f32 %v3593, %v3801
      %3803 = vmatmul.f32.gmra.mxu0 %v3689
      %v3804 = vpop.f32.mrf.mxu0
      %v3805 = vadd.f32 %v3593, %v3804
      %3806 = vdwg.mxu0
      %v3807 = vadd.f32 %v3712, %v308
      %v3808 = vadd.f32 %v3715, %v309
      %v3809 = vadd.f32 %v3718, %v310
      %v3810 = vadd.f32 %v3721, %v311
      %v3811 = vadd.f32 %v3724, %v312
      %v3812 = vadd.f32 %v3727, %v313
      %v3813 = vadd.f32 %v3730, %v314
      %v3814 = vadd.f32 %v3733, %v315
      %v3815 = vadd.f32 %v3736, %v316
      %v3816 = vadd.f32 %v3739, %v317
      %v3817 = vadd.f32 %v3742, %v318
      %v3818 = vadd.f32 %v3745, %v319
      %v3819 = vadd.f32 %v3748, %v320
      %v3820 = vadd.f32 %v3751, %v321
      %v3821 = vadd.f32 %v3754, %v322
      %v3822 = vadd.f32 %v3757, %v323
      %v3823 = vadd.f32 %v3760, %v324
      %v3824 = vadd.f32 %v3763, %v325
      %v3825 = vadd.f32 %v3766, %v326
      %v3826 = vadd.f32 %v3769, %v327
      %v3827 = vadd.f32 %v3772, %v328
      %v3828 = vadd.f32 %v3775, %v329
      %v3829 = vadd.f32 %v3778, %v330
      %v3830 = vadd.f32 %v3781, %v331
      %v3831 = vadd.f32 %v3784, %v332
      %v3832 = vadd.f32 %v3787, %v333
      %v3833 = vadd.f32 %v3790, %v334
      %v3834 = vadd.f32 %v3793, %v335
      %v3835 = vadd.f32 %v3796, %v336
      %v3836 = vadd.f32 %v3799, %v337
      %v3837 = vadd.f32 %v3802, %v338
      %v3838 = vadd.f32 %v3805, %v339
      %v3839 = vmax.f32 %v3807, 0.0
      %v3840 = vmax.f32 %v3808, 0.0
      %v3841 = vmax.f32 %v3809, 0.0
      %v3842 = vmax.f32 %v3810, 0.0
      %v3843 = vmax.f32 %v3811, 0.0
      %v3844 = vmax.f32 %v3812, 0.0
      %v3845 = vmax.f32 %v3813, 0.0
      %v3846 = vmax.f32 %v3814, 0.0
      %v3847 = vmax.f32 %v3815, 0.0
      %v3848 = vmax.f32 %v3816, 0.0
      %v3849 = vmax.f32 %v3817, 0.0
      %v3850 = vmax.f32 %v3818, 0.0
      %v3851 = vmax.f32 %v3819, 0.0
      %v3852 = vmax.f32 %v3820, 0.0
      %v3853 = vmax.f32 %v3821, 0.0
      %v3854 = vmax.f32 %v3822, 0.0
      %v3855 = vmax.f32 %v3823, 0.0
      %v3856 = vmax.f32 %v3824, 0.0
      %v3857 = vmax.f32 %v3825, 0.0
      %v3858 = vmax.f32 %v3826, 0.0
      %v3859 = vmax.f32 %v3827, 0.0
      %v3860 = vmax.f32 %v3828, 0.0
      %v3861 = vmax.f32 %v3829, 0.0
      %v3862 = vmax.f32 %v3830, 0.0
      %v3863 = vmax.f32 %v3831, 0.0
      %v3864 = vmax.f32 %v3832, 0.0
      %v3865 = vmax.f32 %v3833, 0.0
      %v3866 = vmax.f32 %v3834, 0.0
      %v3867 = vmax.f32 %v3835, 0.0
      %v3868 = vmax.f32 %v3836, 0.0
      %v3869 = vmax.f32 %v3837, 0.0
      %v3870 = vmax.f32 %v3838, 0.0
      %3871 = vst.msk [vmem:[%s300] sm:$0xff] %vm343, %v3839
      %3872 = vst.msk [vmem:[%s300 + $0x8] sm:$0xff] %vm343, %v3840
      %3873 = vst.msk [vmem:[%s300 + $0x10] sm:$0xff] %vm343, %v3841
      %3874 = vst.msk [vmem:[%s300 + $0x18] sm:$0xff] %vm343, %v3842
      %3875 = vst.msk [vmem:[%s300 + $0x20] sm:$0xff] %vm343, %v3843
      %3876 = vst.msk [vmem:[%s300 + $0x28] sm:$0xff] %vm343, %v3844
      %3877 = vst.msk [vmem:[%s300 + $0x30] sm:$0xff] %vm343, %v3845
      %3878 = vst.msk [vmem:[%s300 + $0x38] sm:$0xff] %vm343, %v3846
      %3879 = vst.msk [vmem:[%s300 + $0x40] sm:$0xff] %vm343, %v3847
      %3880 = vst.msk [vmem:[%s300 + $0x48] sm:$0xff] %vm343, %v3848
      %3881 = vst.msk [vmem:[%s300 + $0x50] sm:$0xff] %vm343, %v3849
      %3882 = vst.msk [vmem:[%s300 + $0x58] sm:$0xff] %vm343, %v3850
      %3883 = vst.msk [vmem:[%s300 + $0x60] sm:$0xff] %vm343, %v3851
      %3884 = vst.msk [vmem:[%s300 + $0x68] sm:$0xff] %vm343, %v3852
      %3885 = vst.msk [vmem:[%s300 + $0x70] sm:$0xff] %vm343, %v3853
      %3886 = vst.msk [vmem:[%s300 + $0x78] sm:$0xff] %vm343, %v3854
      %3887 = vst.msk [vmem:[%s300 + $0x80] sm:$0xff] %vm343, %v3855
      %3888 = vst.msk [vmem:[%s300 + $0x88] sm:$0xff] %vm343, %v3856
      %3889 = vst.msk [vmem:[%s300 + $0x90] sm:$0xff] %vm343, %v3857
      %3890 = vst.msk [vmem:[%s300 + $0x98] sm:$0xff] %vm343, %v3858
      %3891 = vst.msk [vmem:[%s300 + $0xa0] sm:$0xff] %vm343, %v3859
      %3892 = vst.msk [vmem:[%s300 + $0xa8] sm:$0xff] %vm343, %v3860
      %3893 = vst.msk [vmem:[%s300 + $0xb0] sm:$0xff] %vm343, %v3861
      %3894 = vst.msk [vmem:[%s300 + $0xb8] sm:$0xff] %vm343, %v3862
      %3895 = vst.msk [vmem:[%s300 + $0xc0] sm:$0xff] %vm343, %v3863
      %3896 = vst.msk [vmem:[%s300 + $0xc8] sm:$0xff] %vm343, %v3864
      %3897 = vst.msk [vmem:[%s300 + $0xd0] sm:$0xff] %vm343, %v3865
      %3898 = vst.msk [vmem:[%s300 + $0xd8] sm:$0xff] %vm343, %v3866
      %3899 = vst.msk [vmem:[%s300 + $0xe0] sm:$0xff] %vm343, %v3867
      %3900 = vst.msk [vmem:[%s300 + $0xe8] sm:$0xff] %vm343, %v3868
      %3901 = vst.msk [vmem:[%s300 + $0xf0] sm:$0xff] %vm343, %v3869
      %3902 = vst.msk [vmem:[%s300 + $0xf8] sm:$0xff] %vm343, %v3870
      %s3903 = smul.u32 32, %s23
      %p3904 = scmp.lt.s32.totalorder %s22, 1
      %s3905 = scalar_select %p3904, %s22, 1
      %p3906 = scmp.lt.s32.totalorder %s3903, 31
      %s3907 = scalar_select %p3906, %s3903, 31
      %s3908 = smul.addr %s3905, 32
      %s3909 = sadd.s32 %s3907, %s3908
      %s3910 = smul.addr %s3909, 8
      %s3911 = scalar_lea.vmem %s7, %s3910
      // Predicated region
      $region49: #{tpu_custom_call.1} parent=47 // pred_check
        %p3912 = pneg %p202
      $region50: #{tpu_custom_call.1} parent=47 // pred_check_branch
        %3914 = sbr.rel (%p3912) target = $region52
      $region51: #{tpu_custom_call.1} parent=47 // pred_region
        %s3915 = smul.u32 32, %s23
      $region52: #{tpu_custom_call.1} parent=47 // pred_fallthru
        _
    $region48: #{tpu_custom_call.1} parent=5 // pred_fallthru
      _
    %p3916 = scmp.le.s32.totalorder 2, %s13
    // Predicated region
    $region53: #{tpu_custom_call.1} parent=5 // pred_check
      %p3917 = pneg %p3916
    $region54: #{tpu_custom_call.1} parent=5 // pred_check_branch
      %3919 = sbr.rel (%p3917) target = $region56
    $region55: #{tpu_custom_call.1} parent=5 // pred_region
      %s3920 = ssub.s32 %s13, 2
      // Predicated region
      $region57: #{tpu_custom_call.1} parent=55 // pred_check
        %p3921 = pneg %p208
      $region58: #{tpu_custom_call.1} parent=55 // pred_check_branch
        %3923 = sbr.rel (%p3921) target = $region60
      $region59: #{tpu_custom_call.1} parent=55 // pred_region
        %s3924 = smul.u32 32, %s25
        %p3925 = scmp.lt.s32.totalorder %s24, 1
        %s3926 = scalar_select %p3925, %s24, 1
        %p3927 = scmp.lt.s32.totalorder %s3924, 31
        %s3928 = scalar_select %p3927, %s3924, 31
        %s3929 = smul.addr %s3926, 32
        %s3930 = sadd.s32 %s3928, %s3929
        %s3931 = smul.addr %s3930, 8
        %s3932 = scalar_lea.vmem %s7, %s3931
      $region60: #{tpu_custom_call.1} parent=55 // pred_fallthru
        _
    $region56: #{tpu_custom_call.1} parent=5 // pred_fallthru
      _
  $region6: #{tpu_custom_call.1} parent=0 // loop_footer
    %s17 = sadd.s32 1, %s13
  $region7: #{tpu_custom_call.1} parent=0 // loop_footer_branch
    %12 = sbr.rel target = $region3
  $region8: #{tpu_custom_call.1} parent=0 // loop_exit
    _

</llo_original>
